<compile_context>
chip_gen: v7x
topology: tpu7x:2x2x1
jax: 0.10.0
libtpu: 0.0.40
codegen_flags: <defaults>
</compile_context>

<pallas_src>
import functools
import math

import jax
import jax.numpy as jnp
from jax.experimental import pallas as pl
from jax.experimental.pallas import tpu as pltpu

EMBEDDING_DIM = 64
_LANE = 128
_SUBLANE = 8


def _cdiv(a, b):
    return -(-a // b)


def _divisors_desc(n):
    return [d for d in range(n, 0, -1) if n % d == 0]


def _time_embedding_vec(t, embedding_dim=EMBEDDING_DIM):
    """64-dim sinusoidal embedding of scalar t (matches the PyTorch time_encoding)."""
    half_dim = embedding_dim // 2
    scale = math.log(100.0) / (half_dim - 1)
    freqs = jnp.exp(jnp.arange(half_dim, dtype=jnp.float32) * -scale)
    e = freqs * t
    return jnp.concatenate([jnp.sin(e), jnp.cos(e)])


# ----------------------------------------------------------------------------
# PATH A: small images, flattened-spatial (lane-dense) layout.
# ----------------------------------------------------------------------------
def _flat_conv_kernel(x_ref, w_ref, b_ref, o_ref, *, Cin, g, KH, KW, W, HW):
    """Lane-dense small-image conv.

    x_ref: (Bt, Cin, HW + (KH-1)*W + KW-1)  VMEM  flattened image + tap padding.
           Block index is constant across the Cout-group axis -> fetched once.
    w_ref: (Cout*Cin*KH*KW,)  SMEM  torch OIHW order, flat.
    b_ref: (Cout,)            SMEM  bias + folded time-embedding term.
    o_ref: (Bt, 1, g, HW)     VMEM  lane-dense full-H*W slab (wrapper crops to OHxOW;
                              garbage only lands in cropped positions).
    """
    grp = pl.program_id(1)
    ckk = Cin * KH * KW
    co0 = grp * g

    accs = [None] * g
    for ci in range(Cin):
        slab = x_ref[:, ci, :].astype(jnp.float32)              # (Bt, HWP) lane-dense
        for kh in range(KH):
            for kw in range(KW):
                # Tap (kh,kw) of the valid conv == flat image shifted by kh*W+kw.
                # One static lane shift per tap, reused by all g outputs of the group.
                s = kh * W + kw
                tap = slab[:, s:s + HW]                          # (Bt, HW)
                base = ci * KH * KW + kh * KW + kw
                for j in range(g):
                    wv = w_ref[(co0 + j) * ckk + base]           # SMEM scalar
                    term = tap * wv
                    accs[j] = term if accs[j] is None else accs[j] + term

    for j in range(g):
        o_ref[:, 0, j, :] = (accs[j] + b_ref[co0 + j]).astype(o_ref.dtype)


def _plan_flat(B, Cout, HW):
    """Pick (Bt, g): images per step and Cout-group size (vreg + megacore aware)."""
    Bt = max(d for d in range(1, min(B, 8) + 1) if B % d == 0)
    acc_vregs = _cdiv(Bt, _SUBLANE) * _cdiv(HW, _LANE)           # vregs per accumulator
    divs = _divisors_desc(Cout)
    fits = [d for d in divs if d * acc_vregs <= 32] or [1]       # keep accs in vregs
    multi = [d for d in fits if (B // Bt) * (Cout // d) >= 2]    # >=2 cells for v7x
    g = (multi or fits)[0]
    return Bt, g


# ----------------------------------------------------------------------------
# PATH B: wide images, NCHW row tiles with a manually DMA'd halo input block.
# ----------------------------------------------------------------------------
def _rows_conv_kernel(x_hbm, w_ref, b_ref, o_ref, xbuf, *, Cin, Cout, g, KH, KW,
                      TH, OW, W):
    """Row-tiled valid conv; only a (Cin, TH+KH-1, W) halo tile lives in VMEM.

    x_hbm: (B, Cin, H, W)     ANY/HBM  raw ref; halo tile DMA'd per grid step.
    o_ref: (1, Cout, TH, OW)  VMEM     auto-pipelined output tile.
    xbuf : (Cin, TH+KH-1, W)  VMEM     scratch halo buffer.
    """
    b = pl.program_id(0)
    r = pl.program_id(1)
    thh = TH + KH - 1
    row0 = r * TH
    if TH % _SUBLANE == 0:
        row0 = pl.multiple_of(row0, _SUBLANE)

    # Halo tile: TH+KH-1 rows instead of the whole image.  The conv is VPU
    # compute-bound (2*Cin*K^2*Cout flops per input element), so the blocking
    # copy exposes only a small DMA fraction; output writeback is still
    # auto-pipelined by the out BlockSpec.
    pltpu.sync_copy(x_hbm.at[b, :, pl.ds(row0, thh), :], xbuf)

    ckk = Cin * KH * KW
    for grp in range(Cout // g):               # only g accumulators live at a time
        accs = [None] * g
        for ci in range(Cin):
            for kh in range(KH):
                rows = xbuf[ci, kh:kh + TH, :].astype(jnp.float32)   # (TH, W)
                for kw in range(KW):
                    # shifted tap materialized once, reused across the group
                    tap = rows[:, kw:kw + OW]                        # (TH, OW)
                    base = ci * KH * KW + kh * KW + kw
                    for j in range(g):
                        co = grp * g + j
                        wv = w_ref[co * ckk + base]
                        term = tap * wv
                        accs[j] = term if accs[j] is None else accs[j] + term
        for j in range(g):
            co = grp * g + j
            o_ref[0, co] = (accs[j] + b_ref[co]).astype(o_ref.dtype)


def _plan_rows(B, OH, OW, W, Cin, Cout, KH, xbytes, obytes):
    """Pick (TH, g): row tile and Cout-group size under vreg + VMEM budgets."""
    lane_tiles = _cdiv(W, _LANE)

    def mem_ok(th):
        xbuf = Cin * (th + KH - 1) * W * xbytes
        outb = 2 * Cout * th * OW * obytes      # output block is double-buffered
        return xbuf + outb <= (36 << 20)        # leaves headroom on v7x (64 MiB VMEM)

    cands = [d for d in _divisors_desc(OH) if d % _SUBLANE == 0 or d == OH]
    good = [d for d in cands
            if _cdiv(d, _SUBLANE) * lane_tiles <= 16 and mem_ok(d)]
    if not good:
        # TODO(synk): OH with no suitable row-tile divisor (or extremely wide rows)
        # falls back to the smallest candidate; very wide rows may spill to VMEM.
        good = [min(cands)]
    multi = [d for d in good if B * (OH // d) >= 2]      # >=2 grid cells for v7x
    TH = (multi or good)[0]

    slab_vregs = _cdiv(TH, _SUBLANE) * lane_tiles
    g = next((d for d in _divisors_desc(Cout) if (d + 2) * slab_vregs <= 48), 1)
    return TH, g


# ----------------------------------------------------------------------------
# Forward wrapper.
# ----------------------------------------------------------------------------
@jax.jit
def randconcat_conv2d_v2_forward(t, x_nchw, w_x_oihw, w_time_sum, bias):
    """Forward of RandConcatConv2d_v2.

    t:          scalar time
    x_nchw:     (B, Cin, H, W)
    w_x_oihw:   (Cout, Cin, KH, KW)  conv weight for the real input channels
    w_time_sum: (Cout, 64)           sum_{kh,kw} W_full[:, :64, kh, kw]
    bias:       (Cout,)
    """
    B, Cin, H, W = x_nchw.shape
    Cout, _, KH, KW = w_x_oihw.shape
    OH, OW = H - KH + 1, W - KW + 1
    HW = H * W
    xbytes = x_nchw.dtype.itemsize
    obytes = xbytes

    # Fold the spatially-constant time embedding into the bias (exact reassociation).
    emb = _time_embedding_vec(t)                                 # (64,)
    bias_eff = (bias + w_time_sum @ emb).astype(jnp.float32)     # (Cout,)
    w_flat = w_x_oihw.reshape(-1).astype(jnp.float32)            # (Cout*Cin*KH*KW,)

    flops = 2 * B * OH * OW * Cin * KH * KW * Cout
    w_bytes = w_flat.size * 4 + bias_eff.size * 4

    pad = (KH - 1) * W + (KW - 1)
    Bt, g_flat = _plan_flat(B, Cout, HW)
    flat_in_block = Bt * Cin * (HW + pad) * xbytes
    use_flat = (OW < _LANE                          # lane-starved in row layout
                and HW <= 32 * _LANE                # accumulators stay in vregs
                and 2 * flat_in_block <= (16 << 20))

    if use_flat:
        # ------------------------- PATH A -------------------------
        g = g_flat
        G = Cout // g
        x3 = jnp.pad(x_nchw.reshape(B, Cin, HW), ((0, 0), (0, 0), (0, pad)))
        HWP = HW + pad

        out_block = Bt * g * HW * obytes
        vmem = int(min(48 << 20, max(16 << 20,
                                     2 * (flat_in_block + out_block) + (4 << 20))))

        kernel = functools.partial(_flat_conv_kernel, Cin=Cin, g=g,
                                   KH=KH, KW=KW, W=W, HW=HW)
        out4 = pl.pallas_call(
            kernel,
            out_shape=jax.ShapeDtypeStruct((B, G, g, HW), x_nchw.dtype),
            grid=(B // Bt, G),
            in_specs=[
                pl.BlockSpec((Bt, Cin, HWP), lambda b, grp: (b, 0, 0)),
                pl.BlockSpec(memory_space=pltpu.MemorySpace.SMEM),
                pl.BlockSpec(memory_space=pltpu.MemorySpace.SMEM),
            ],
            out_specs=pl.BlockSpec((Bt, 1, g, HW), lambda b, grp: (b, grp, 0, 0)),
            compiler_params=pltpu.CompilerParams(
                dimension_semantics=("parallel", "parallel"),
                vmem_limit_bytes=vmem),
            cost_estimate=pl.CostEstimate(
                flops=flops, transcendentals=0,
                bytes_accessed=B * Cin * HWP * xbytes + w_bytes
                               + B * Cout * HW * obytes),
        )(x3, w_flat, bias_eff)
        # crop the lane-dense full-H*W slab back to the valid-conv output
        return out4.reshape(B, Cout, H, W)[:, :, :OH, :OW]

    # --------------------------- PATH B ---------------------------
    TH, g = _plan_rows(B, OH, OW, W, Cin, Cout, KH, xbytes, obytes)
    R = OH // TH
    thh = TH + KH - 1

    xbuf_bytes = Cin * thh * W * xbytes
    out_block = Cout * TH * OW * obytes
    slack = 4 * TH * W * 4 + (4 << 20)          # live f32 slabs + headroom
    vmem = int(min(48 << 20, max(16 << 20, xbuf_bytes + 2 * out_block + slack)))

    kernel = functools.partial(_rows_conv_kernel, Cin=Cin, Cout=Cout, g=g,
                               KH=KH, KW=KW, TH=TH, OW=OW, W=W)
    out = pl.pallas_call(
        kernel,
        out_shape=jax.ShapeDtypeStruct((B, Cout, OH, OW), x_nchw.dtype),
        grid=(B, R),
        in_specs=[
            pl.BlockSpec(memory_space=pl.ANY),                  # stays in HBM
            pl.BlockSpec(memory_space=pltpu.MemorySpace.SMEM),
            pl.BlockSpec(memory_space=pltpu.MemorySpace.SMEM),
        ],
        out_specs=pl.BlockSpec((1, Cout, TH, OW), lambda b, r: (b, 0, r, 0)),
        scratch_shapes=[pltpu.VMEM((Cin, thh, W), x_nchw.dtype)],
        compiler_params=pltpu.CompilerParams(
            dimension_semantics=("parallel", "parallel"),
            vmem_limit_bytes=vmem),
        cost_estimate=pl.CostEstimate(
            flops=flops, transcendentals=0,
            bytes_accessed=B * R * Cin * thh * W * xbytes + w_bytes
                           + B * Cout * OH * OW * obytes),
    )(x_nchw, w_flat, bias_eff)
    return out


# ----------------------------------------------------------------------------
# Module wrapper + reference.
# ----------------------------------------------------------------------------
class RandConcatConv2dV2:
    """JAX/Pallas port of RandConcatConv2d_v2 (deterministic weights)."""

    def __init__(self, dim_in, dim_out, ksize=3, stride=1, padding=0, key=None):
        assert stride == 1 and padding == 0, "module defaults: stride=1, padding=0"
        self.embedding_dim = EMBEDDING_DIM
        self.dim_in, self.dim_out, self.ksize = dim_in, dim_out, ksize
        cin_total = dim_in + self.embedding_dim
        key = key if key is not None else jax.random.PRNGKey(42)
        kw_key, kb_key = jax.random.split(key)
        fan_in = cin_total * ksize * ksize
        bound = 1.0 / math.sqrt(fan_in)
        # Full weight in PyTorch layout (Cout, 64 + Cin, KH, KW), as nn.Conv2d holds.
        self.w_full_oihw = jax.random.uniform(
            kw_key, (dim_out, cin_total, ksize, ksize), jnp.float32, -bound, bound)
        self.bias = jax.random.uniform(kb_key, (dim_out,), jnp.float32, -bound, bound)
        # Split: time-embedding channels (folded into the bias at call time)
        # vs. real input channels (the only ones the kernel convolves).
        self.w_time_sum = jnp.sum(self.w_full_oihw[:, :EMBEDDING_DIM], axis=(2, 3))
        self.w_x_oihw = self.w_full_oihw[:, EMBEDDING_DIM:]

    def __call__(self, t, x_nchw):
        return randconcat_conv2d_v2_forward(
            t, x_nchw, self.w_x_oihw, self.w_time_sum, self.bias)


def _reference_forward(t, x, layer):
    """XLA reference on the original (concatenated) formulation."""
    B, _, H, W = x.shape
    emb = _time_embedding_vec(t)
    tt = jnp.broadcast_to(emb.reshape(1, EMBEDDING_DIM, 1, 1),
                          (B, EMBEDDING_DIM, H, W))
    ttx = jnp.concatenate([tt, x], axis=1)
    y = jax.lax.conv_general_dilated(
        ttx, layer.w_full_oihw, window_strides=(1, 1), padding="VALID",
        dimension_numbers=("NCHW", "OIHW", "NCHW"))
    return y + layer.bias.reshape(1, -1, 1, 1)


if __name__ == "__main__":
    root = jax.random.PRNGKey(0)
    kx1, kp1, kx2, kp2 = jax.random.split(root, 4)
    t = jnp.float32(0.5)

    # 1) Small image -> PATH A (lane-dense flattened-spatial layout).
    B, C, H, W = 2, 4, 16, 16
    dim_out = 8
    x = jax.random.normal(kx1, (B, C, H, W), jnp.float32)
    layer = RandConcatConv2dV2(dim_in=C, dim_out=dim_out, key=kp1)
    out = jax.block_until_ready(layer(t, x))
    assert out.shape == (B, dim_out, H - 2, W - 2), out.shape
    ref = _reference_forward(t, x, layer)
    err = float(jnp.max(jnp.abs(out - ref)))
    assert jnp.allclose(out, ref, atol=1e-3, rtol=1e-3), err

    # 2) Wide image -> PATH B (row-tiled halo-DMA path, multiple row tiles).
    B2, C2, H2, W2 = 1, 2, 130, 256
    x2 = jax.random.normal(kx2, (B2, C2, H2, W2), jnp.float32)
    layer2 = RandConcatConv2dV2(dim_in=C2, dim_out=dim_out, key=kp2)
    out2 = jax.block_until_ready(layer2(t, x2))
    assert out2.shape == (B2, dim_out, H2 - 2, W2 - 2), out2.shape
    ref2 = _reference_forward(t, x2, layer2)
    err2 = float(jnp.max(jnp.abs(out2 - ref2)))
    assert jnp.allclose(out2, ref2, atol=1e-3, rtol=1e-3), err2

    print("KERNEL_OK")
</pallas_src>

<mosaic_0001>
module attributes {stable_mosaic.version = 11 : i64} {
  func.func @_flat_conv_kernel(%arg0: i32, %arg1: i32, %arg2: memref<2x4x290xf32, #tpu.memory_space<vmem>>, %arg3: memref<288xf32, #tpu.memory_space<smem>>, %arg4: memref<8xf32, #tpu.memory_space<smem>>, %arg5: memref<2x1x4x256xf32, #tpu.memory_space<vmem>>) attributes {dimension_semantics = [#tpu.dimension_semantics<parallel>, #tpu.dimension_semantics<parallel>], iteration_bounds = array<i64: 1, 2>, scalar_prefetch = 0 : i64, scratch_operands = 0 : i64, tpu.core_type = #tpu.core_type<tc>, window_params = [{transform_indices = @transform_0, window_bounds = array<i64: 2, 4, 290>}, {transform_indices = @transform_1, window_bounds = array<i64: 288>}, {transform_indices = @transform_2, window_bounds = array<i64: 8>}, {transform_indices = @transform_3, window_bounds = array<i64: 2, 1, 4, 256>}]} {
    %c4_i32 = arith.constant 4 : i32
    %0 = arith.muli %arg1, %c4_i32 : i32
    %c0 = arith.constant 0 : index
    %c0_0 = arith.constant 0 : index
    %c0_1 = arith.constant 0 : index
    %1 = vector.load %arg2[%c0, %c0_0, %c0_1] : memref<2x4x290xf32, #tpu.memory_space<vmem>>, vector<2x1x290xf32>
    %2 = vector.shape_cast %1 : vector<2x1x290xf32> to vector<2x290xf32>
    %3 = vector.extract_strided_slice %2 {offsets = [0, 0], sizes = [2, 256], strides = [1, 1]} : vector<2x290xf32> to vector<2x256xf32>
    %c0_i32 = arith.constant 0 : i32
    %4 = arith.addi %0, %c0_i32 : i32
    %c36_i32 = arith.constant 36 : i32
    %5 = arith.muli %4, %c36_i32 : i32
    %c0_i32_2 = arith.constant 0 : i32
    %6 = arith.addi %5, %c0_i32_2 : i32
    %7 = arith.index_cast %6 : i32 to index
    %8 = memref.load %arg3[%7] : memref<288xf32, #tpu.memory_space<smem>>
    %9 = vector.broadcast %8 : f32 to vector<2x256xf32>
    %10 = arith.mulf %3, %9 : vector<2x256xf32>
    %c1_i32 = arith.constant 1 : i32
    %11 = arith.addi %0, %c1_i32 : i32
    %c36_i32_3 = arith.constant 36 : i32
    %12 = arith.muli %11, %c36_i32_3 : i32
    %c0_i32_4 = arith.constant 0 : i32
    %13 = arith.addi %12, %c0_i32_4 : i32
    %14 = arith.index_cast %13 : i32 to index
    %15 = memref.load %arg3[%14] : memref<288xf32, #tpu.memory_space<smem>>
    %16 = vector.broadcast %15 : f32 to vector<2x256xf32>
    %17 = arith.mulf %3, %16 : vector<2x256xf32>
    %c2_i32 = arith.constant 2 : i32
    %18 = arith.addi %0, %c2_i32 : i32
    %c36_i32_5 = arith.constant 36 : i32
    %19 = arith.muli %18, %c36_i32_5 : i32
    %c0_i32_6 = arith.constant 0 : i32
    %20 = arith.addi %19, %c0_i32_6 : i32
    %21 = arith.index_cast %20 : i32 to index
    %22 = memref.load %arg3[%21] : memref<288xf32, #tpu.memory_space<smem>>
    %23 = vector.broadcast %22 : f32 to vector<2x256xf32>
    %24 = arith.mulf %3, %23 : vector<2x256xf32>
    %c3_i32 = arith.constant 3 : i32
    %25 = arith.addi %0, %c3_i32 : i32
    %c36_i32_7 = arith.constant 36 : i32
    %26 = arith.muli %25, %c36_i32_7 : i32
    %c0_i32_8 = arith.constant 0 : i32
    %27 = arith.addi %26, %c0_i32_8 : i32
    %28 = arith.index_cast %27 : i32 to index
    %29 = memref.load %arg3[%28] : memref<288xf32, #tpu.memory_space<smem>>
    %30 = vector.broadcast %29 : f32 to vector<2x256xf32>
    %31 = arith.mulf %3, %30 : vector<2x256xf32>
    %32 = vector.extract_strided_slice %2 {offsets = [0, 1], sizes = [2, 256], strides = [1, 1]} : vector<2x290xf32> to vector<2x256xf32>
    %c0_i32_9 = arith.constant 0 : i32
    %33 = arith.addi %0, %c0_i32_9 : i32
    %c36_i32_10 = arith.constant 36 : i32
    %34 = arith.muli %33, %c36_i32_10 : i32
    %c1_i32_11 = arith.constant 1 : i32
    %35 = arith.addi %34, %c1_i32_11 : i32
    %36 = arith.index_cast %35 : i32 to index
    %37 = memref.load %arg3[%36] : memref<288xf32, #tpu.memory_space<smem>>
    %38 = vector.broadcast %37 : f32 to vector<2x256xf32>
    %39 = arith.mulf %32, %38 : vector<2x256xf32>
    %40 = arith.addf %10, %39 : vector<2x256xf32>
    %c1_i32_12 = arith.constant 1 : i32
    %41 = arith.addi %0, %c1_i32_12 : i32
    %c36_i32_13 = arith.constant 36 : i32
    %42 = arith.muli %41, %c36_i32_13 : i32
    %c1_i32_14 = arith.constant 1 : i32
    %43 = arith.addi %42, %c1_i32_14 : i32
    %44 = arith.index_cast %43 : i32 to index
    %45 = memref.load %arg3[%44] : memref<288xf32, #tpu.memory_space<smem>>
    %46 = vector.broadcast %45 : f32 to vector<2x256xf32>
    %47 = arith.mulf %32, %46 : vector<2x256xf32>
    %48 = arith.addf %17, %47 : vector<2x256xf32>
    %c2_i32_15 = arith.constant 2 : i32
    %49 = arith.addi %0, %c2_i32_15 : i32
    %c36_i32_16 = arith.constant 36 : i32
    %50 = arith.muli %49, %c36_i32_16 : i32
    %c1_i32_17 = arith.constant 1 : i32
    %51 = arith.addi %50, %c1_i32_17 : i32
    %52 = arith.index_cast %51 : i32 to index
    %53 = memref.load %arg3[%52] : memref<288xf32, #tpu.memory_space<smem>>
    %54 = vector.broadcast %53 : f32 to vector<2x256xf32>
    %55 = arith.mulf %32, %54 : vector<2x256xf32>
    %56 = arith.addf %24, %55 : vector<2x256xf32>
    %c3_i32_18 = arith.constant 3 : i32
    %57 = arith.addi %0, %c3_i32_18 : i32
    %c36_i32_19 = arith.constant 36 : i32
    %58 = arith.muli %57, %c36_i32_19 : i32
    %c1_i32_20 = arith.constant 1 : i32
    %59 = arith.addi %58, %c1_i32_20 : i32
    %60 = arith.index_cast %59 : i32 to index
    %61 = memref.load %arg3[%60] : memref<288xf32, #tpu.memory_space<smem>>
    %62 = vector.broadcast %61 : f32 to vector<2x256xf32>
    %63 = arith.mulf %32, %62 : vector<2x256xf32>
    %64 = arith.addf %31, %63 : vector<2x256xf32>
    %65 = vector.extract_strided_slice %2 {offsets = [0, 2], sizes = [2, 256], strides = [1, 1]} : vector<2x290xf32> to vector<2x256xf32>
    %c0_i32_21 = arith.constant 0 : i32
    %66 = arith.addi %0, %c0_i32_21 : i32
    %c36_i32_22 = arith.constant 36 : i32
    %67 = arith.muli %66, %c36_i32_22 : i32
    %c2_i32_23 = arith.constant 2 : i32
    %68 = arith.addi %67, %c2_i32_23 : i32
    %69 = arith.index_cast %68 : i32 to index
    %70 = memref.load %arg3[%69] : memref<288xf32, #tpu.memory_space<smem>>
    %71 = vector.broadcast %70 : f32 to vector<2x256xf32>
    %72 = arith.mulf %65, %71 : vector<2x256xf32>
    %73 = arith.addf %40, %72 : vector<2x256xf32>
    %c1_i32_24 = arith.constant 1 : i32
    %74 = arith.addi %0, %c1_i32_24 : i32
    %c36_i32_25 = arith.constant 36 : i32
    %75 = arith.muli %74, %c36_i32_25 : i32
    %c2_i32_26 = arith.constant 2 : i32
    %76 = arith.addi %75, %c2_i32_26 : i32
    %77 = arith.index_cast %76 : i32 to index
    %78 = memref.load %arg3[%77] : memref<288xf32, #tpu.memory_space<smem>>
    %79 = vector.broadcast %78 : f32 to vector<2x256xf32>
    %80 = arith.mulf %65, %79 : vector<2x256xf32>
    %81 = arith.addf %48, %80 : vector<2x256xf32>
    %c2_i32_27 = arith.constant 2 : i32
    %82 = arith.addi %0, %c2_i32_27 : i32
    %c36_i32_28 = arith.constant 36 : i32
    %83 = arith.muli %82, %c36_i32_28 : i32
    %c2_i32_29 = arith.constant 2 : i32
    %84 = arith.addi %83, %c2_i32_29 : i32
    %85 = arith.index_cast %84 : i32 to index
    %86 = memref.load %arg3[%85] : memref<288xf32, #tpu.memory_space<smem>>
    %87 = vector.broadcast %86 : f32 to vector<2x256xf32>
    %88 = arith.mulf %65, %87 : vector<2x256xf32>
    %89 = arith.addf %56, %88 : vector<2x256xf32>
    %c3_i32_30 = arith.constant 3 : i32
    %90 = arith.addi %0, %c3_i32_30 : i32
    %c36_i32_31 = arith.constant 36 : i32
    %91 = arith.muli %90, %c36_i32_31 : i32
    %c2_i32_32 = arith.constant 2 : i32
    %92 = arith.addi %91, %c2_i32_32 : i32
    %93 = arith.index_cast %92 : i32 to index
    %94 = memref.load %arg3[%93] : memref<288xf32, #tpu.memory_space<smem>>
    %95 = vector.broadcast %94 : f32 to vector<2x256xf32>
    %96 = arith.mulf %65, %95 : vector<2x256xf32>
    %97 = arith.addf %64, %96 : vector<2x256xf32>
    %98 = vector.extract_strided_slice %2 {offsets = [0, 16], sizes = [2, 256], strides = [1, 1]} : vector<2x290xf32> to vector<2x256xf32>
    %c0_i32_33 = arith.constant 0 : i32
    %99 = arith.addi %0, %c0_i32_33 : i32
    %c36_i32_34 = arith.constant 36 : i32
    %100 = arith.muli %99, %c36_i32_34 : i32
    %c3_i32_35 = arith.constant 3 : i32
    %101 = arith.addi %100, %c3_i32_35 : i32
    %102 = arith.index_cast %101 : i32 to index
    %103 = memref.load %arg3[%102] : memref<288xf32, #tpu.memory_space<smem>>
    %104 = vector.broadcast %103 : f32 to vector<2x256xf32>
    %105 = arith.mulf %98, %104 : vector<2x256xf32>
    %106 = arith.addf %73, %105 : vector<2x256xf32>
    %c1_i32_36 = arith.constant 1 : i32
    %107 = arith.addi %0, %c1_i32_36 : i32
    %c36_i32_37 = arith.constant 36 : i32
    %108 = arith.muli %107, %c36_i32_37 : i32
    %c3_i32_38 = arith.constant 3 : i32
    %109 = arith.addi %108, %c3_i32_38 : i32
    %110 = arith.index_cast %109 : i32 to index
    %111 = memref.load %arg3[%110] : memref<288xf32, #tpu.memory_space<smem>>
    %112 = vector.broadcast %111 : f32 to vector<2x256xf32>
    %113 = arith.mulf %98, %112 : vector<2x256xf32>
    %114 = arith.addf %81, %113 : vector<2x256xf32>
    %c2_i32_39 = arith.constant 2 : i32
    %115 = arith.addi %0, %c2_i32_39 : i32
    %c36_i32_40 = arith.constant 36 : i32
    %116 = arith.muli %115, %c36_i32_40 : i32
    %c3_i32_41 = arith.constant 3 : i32
    %117 = arith.addi %116, %c3_i32_41 : i32
    %118 = arith.index_cast %117 : i32 to index
    %119 = memref.load %arg3[%118] : memref<288xf32, #tpu.memory_space<smem>>
    %120 = vector.broadcast %119 : f32 to vector<2x256xf32>
    %121 = arith.mulf %98, %120 : vector<2x256xf32>
    %122 = arith.addf %89, %121 : vector<2x256xf32>
    %c3_i32_42 = arith.constant 3 : i32
    %123 = arith.addi %0, %c3_i32_42 : i32
    %c36_i32_43 = arith.constant 36 : i32
    %124 = arith.muli %123, %c36_i32_43 : i32
    %c3_i32_44 = arith.constant 3 : i32
    %125 = arith.addi %124, %c3_i32_44 : i32
    %126 = arith.index_cast %125 : i32 to index
    %127 = memref.load %arg3[%126] : memref<288xf32, #tpu.memory_space<smem>>
    %128 = vector.broadcast %127 : f32 to vector<2x256xf32>
    %129 = arith.mulf %98, %128 : vector<2x256xf32>
    %130 = arith.addf %97, %129 : vector<2x256xf32>
    %131 = vector.extract_strided_slice %2 {offsets = [0, 17], sizes = [2, 256], strides = [1, 1]} : vector<2x290xf32> to vector<2x256xf32>
    %c0_i32_45 = arith.constant 0 : i32
    %132 = arith.addi %0, %c0_i32_45 : i32
    %c36_i32_46 = arith.constant 36 : i32
    %133 = arith.muli %132, %c36_i32_46 : i32
    %c4_i32_47 = arith.constant 4 : i32
    %134 = arith.addi %133, %c4_i32_47 : i32
    %135 = arith.index_cast %134 : i32 to index
    %136 = memref.load %arg3[%135] : memref<288xf32, #tpu.memory_space<smem>>
    %137 = vector.broadcast %136 : f32 to vector<2x256xf32>
    %138 = arith.mulf %131, %137 : vector<2x256xf32>
    %139 = arith.addf %106, %138 : vector<2x256xf32>
    %c1_i32_48 = arith.constant 1 : i32
    %140 = arith.addi %0, %c1_i32_48 : i32
    %c36_i32_49 = arith.constant 36 : i32
    %141 = arith.muli %140, %c36_i32_49 : i32
    %c4_i32_50 = arith.constant 4 : i32
    %142 = arith.addi %141, %c4_i32_50 : i32
    %143 = arith.index_cast %142 : i32 to index
    %144 = memref.load %arg3[%143] : memref<288xf32, #tpu.memory_space<smem>>
    %145 = vector.broadcast %144 : f32 to vector<2x256xf32>
    %146 = arith.mulf %131, %145 : vector<2x256xf32>
    %147 = arith.addf %114, %146 : vector<2x256xf32>
    %c2_i32_51 = arith.constant 2 : i32
    %148 = arith.addi %0, %c2_i32_51 : i32
    %c36_i32_52 = arith.constant 36 : i32
    %149 = arith.muli %148, %c36_i32_52 : i32
    %c4_i32_53 = arith.constant 4 : i32
    %150 = arith.addi %149, %c4_i32_53 : i32
    %151 = arith.index_cast %150 : i32 to index
    %152 = memref.load %arg3[%151] : memref<288xf32, #tpu.memory_space<smem>>
    %153 = vector.broadcast %152 : f32 to vector<2x256xf32>
    %154 = arith.mulf %131, %153 : vector<2x256xf32>
    %155 = arith.addf %122, %154 : vector<2x256xf32>
    %c3_i32_54 = arith.constant 3 : i32
    %156 = arith.addi %0, %c3_i32_54 : i32
    %c36_i32_55 = arith.constant 36 : i32
    %157 = arith.muli %156, %c36_i32_55 : i32
    %c4_i32_56 = arith.constant 4 : i32
    %158 = arith.addi %157, %c4_i32_56 : i32
    %159 = arith.index_cast %158 : i32 to index
    %160 = memref.load %arg3[%159] : memref<288xf32, #tpu.memory_space<smem>>
    %161 = vector.broadcast %160 : f32 to vector<2x256xf32>
    %162 = arith.mulf %131, %161 : vector<2x256xf32>
    %163 = arith.addf %130, %162 : vector<2x256xf32>
    %164 = vector.extract_strided_slice %2 {offsets = [0, 18], sizes = [2, 256], strides = [1, 1]} : vector<2x290xf32> to vector<2x256xf32>
    %c0_i32_57 = arith.constant 0 : i32
    %165 = arith.addi %0, %c0_i32_57 : i32
    %c36_i32_58 = arith.constant 36 : i32
    %166 = arith.muli %165, %c36_i32_58 : i32
    %c5_i32 = arith.constant 5 : i32
    %167 = arith.addi %166, %c5_i32 : i32
    %168 = arith.index_cast %167 : i32 to index
    %169 = memref.load %arg3[%168] : memref<288xf32, #tpu.memory_space<smem>>
    %170 = vector.broadcast %169 : f32 to vector<2x256xf32>
    %171 = arith.mulf %164, %170 : vector<2x256xf32>
    %172 = arith.addf %139, %171 : vector<2x256xf32>
    %c1_i32_59 = arith.constant 1 : i32
    %173 = arith.addi %0, %c1_i32_59 : i32
    %c36_i32_60 = arith.constant 36 : i32
    %174 = arith.muli %173, %c36_i32_60 : i32
    %c5_i32_61 = arith.constant 5 : i32
    %175 = arith.addi %174, %c5_i32_61 : i32
    %176 = arith.index_cast %175 : i32 to index
    %177 = memref.load %arg3[%176] : memref<288xf32, #tpu.memory_space<smem>>
    %178 = vector.broadcast %177 : f32 to vector<2x256xf32>
    %179 = arith.mulf %164, %178 : vector<2x256xf32>
    %180 = arith.addf %147, %179 : vector<2x256xf32>
    %c2_i32_62 = arith.constant 2 : i32
    %181 = arith.addi %0, %c2_i32_62 : i32
    %c36_i32_63 = arith.constant 36 : i32
    %182 = arith.muli %181, %c36_i32_63 : i32
    %c5_i32_64 = arith.constant 5 : i32
    %183 = arith.addi %182, %c5_i32_64 : i32
    %184 = arith.index_cast %183 : i32 to index
    %185 = memref.load %arg3[%184] : memref<288xf32, #tpu.memory_space<smem>>
    %186 = vector.broadcast %185 : f32 to vector<2x256xf32>
    %187 = arith.mulf %164, %186 : vector<2x256xf32>
    %188 = arith.addf %155, %187 : vector<2x256xf32>
    %c3_i32_65 = arith.constant 3 : i32
    %189 = arith.addi %0, %c3_i32_65 : i32
    %c36_i32_66 = arith.constant 36 : i32
    %190 = arith.muli %189, %c36_i32_66 : i32
    %c5_i32_67 = arith.constant 5 : i32
    %191 = arith.addi %190, %c5_i32_67 : i32
    %192 = arith.index_cast %191 : i32 to index
    %193 = memref.load %arg3[%192] : memref<288xf32, #tpu.memory_space<smem>>
    %194 = vector.broadcast %193 : f32 to vector<2x256xf32>
    %195 = arith.mulf %164, %194 : vector<2x256xf32>
    %196 = arith.addf %163, %195 : vector<2x256xf32>
    %197 = vector.extract_strided_slice %2 {offsets = [0, 32], sizes = [2, 256], strides = [1, 1]} : vector<2x290xf32> to vector<2x256xf32>
    %c0_i32_68 = arith.constant 0 : i32
    %198 = arith.addi %0, %c0_i32_68 : i32
    %c36_i32_69 = arith.constant 36 : i32
    %199 = arith.muli %198, %c36_i32_69 : i32
    %c6_i32 = arith.constant 6 : i32
    %200 = arith.addi %199, %c6_i32 : i32
    %201 = arith.index_cast %200 : i32 to index
    %202 = memref.load %arg3[%201] : memref<288xf32, #tpu.memory_space<smem>>
    %203 = vector.broadcast %202 : f32 to vector<2x256xf32>
    %204 = arith.mulf %197, %203 : vector<2x256xf32>
    %205 = arith.addf %172, %204 : vector<2x256xf32>
    %c1_i32_70 = arith.constant 1 : i32
    %206 = arith.addi %0, %c1_i32_70 : i32
    %c36_i32_71 = arith.constant 36 : i32
    %207 = arith.muli %206, %c36_i32_71 : i32
    %c6_i32_72 = arith.constant 6 : i32
    %208 = arith.addi %207, %c6_i32_72 : i32
    %209 = arith.index_cast %208 : i32 to index
    %210 = memref.load %arg3[%209] : memref<288xf32, #tpu.memory_space<smem>>
    %211 = vector.broadcast %210 : f32 to vector<2x256xf32>
    %212 = arith.mulf %197, %211 : vector<2x256xf32>
    %213 = arith.addf %180, %212 : vector<2x256xf32>
    %c2_i32_73 = arith.constant 2 : i32
    %214 = arith.addi %0, %c2_i32_73 : i32
    %c36_i32_74 = arith.constant 36 : i32
    %215 = arith.muli %214, %c36_i32_74 : i32
    %c6_i32_75 = arith.constant 6 : i32
    %216 = arith.addi %215, %c6_i32_75 : i32
    %217 = arith.index_cast %216 : i32 to index
    %218 = memref.load %arg3[%217] : memref<288xf32, #tpu.memory_space<smem>>
    %219 = vector.broadcast %218 : f32 to vector<2x256xf32>
    %220 = arith.mulf %197, %219 : vector<2x256xf32>
    %221 = arith.addf %188, %220 : vector<2x256xf32>
    %c3_i32_76 = arith.constant 3 : i32
    %222 = arith.addi %0, %c3_i32_76 : i32
    %c36_i32_77 = arith.constant 36 : i32
    %223 = arith.muli %222, %c36_i32_77 : i32
    %c6_i32_78 = arith.constant 6 : i32
    %224 = arith.addi %223, %c6_i32_78 : i32
    %225 = arith.index_cast %224 : i32 to index
    %226 = memref.load %arg3[%225] : memref<288xf32, #tpu.memory_space<smem>>
    %227 = vector.broadcast %226 : f32 to vector<2x256xf32>
    %228 = arith.mulf %197, %227 : vector<2x256xf32>
    %229 = arith.addf %196, %228 : vector<2x256xf32>
    %230 = vector.extract_strided_slice %2 {offsets = [0, 33], sizes = [2, 256], strides = [1, 1]} : vector<2x290xf32> to vector<2x256xf32>
    %c0_i32_79 = arith.constant 0 : i32
    %231 = arith.addi %0, %c0_i32_79 : i32
    %c36_i32_80 = arith.constant 36 : i32
    %232 = arith.muli %231, %c36_i32_80 : i32
    %c7_i32 = arith.constant 7 : i32
    %233 = arith.addi %232, %c7_i32 : i32
    %234 = arith.index_cast %233 : i32 to index
    %235 = memref.load %arg3[%234] : memref<288xf32, #tpu.memory_space<smem>>
    %236 = vector.broadcast %235 : f32 to vector<2x256xf32>
    %237 = arith.mulf %230, %236 : vector<2x256xf32>
    %238 = arith.addf %205, %237 : vector<2x256xf32>
    %c1_i32_81 = arith.constant 1 : i32
    %239 = arith.addi %0, %c1_i32_81 : i32
    %c36_i32_82 = arith.constant 36 : i32
    %240 = arith.muli %239, %c36_i32_82 : i32
    %c7_i32_83 = arith.constant 7 : i32
    %241 = arith.addi %240, %c7_i32_83 : i32
    %242 = arith.index_cast %241 : i32 to index
    %243 = memref.load %arg3[%242] : memref<288xf32, #tpu.memory_space<smem>>
    %244 = vector.broadcast %243 : f32 to vector<2x256xf32>
    %245 = arith.mulf %230, %244 : vector<2x256xf32>
    %246 = arith.addf %213, %245 : vector<2x256xf32>
    %c2_i32_84 = arith.constant 2 : i32
    %247 = arith.addi %0, %c2_i32_84 : i32
    %c36_i32_85 = arith.constant 36 : i32
    %248 = arith.muli %247, %c36_i32_85 : i32
    %c7_i32_86 = arith.constant 7 : i32
    %249 = arith.addi %248, %c7_i32_86 : i32
    %250 = arith.index_cast %249 : i32 to index
    %251 = memref.load %arg3[%250] : memref<288xf32, #tpu.memory_space<smem>>
    %252 = vector.broadcast %251 : f32 to vector<2x256xf32>
    %253 = arith.mulf %230, %252 : vector<2x256xf32>
    %254 = arith.addf %221, %253 : vector<2x256xf32>
    %c3_i32_87 = arith.constant 3 : i32
    %255 = arith.addi %0, %c3_i32_87 : i32
    %c36_i32_88 = arith.constant 36 : i32
    %256 = arith.muli %255, %c36_i32_88 : i32
    %c7_i32_89 = arith.constant 7 : i32
    %257 = arith.addi %256, %c7_i32_89 : i32
    %258 = arith.index_cast %257 : i32 to index
    %259 = memref.load %arg3[%258] : memref<288xf32, #tpu.memory_space<smem>>
    %260 = vector.broadcast %259 : f32 to vector<2x256xf32>
    %261 = arith.mulf %230, %260 : vector<2x256xf32>
    %262 = arith.addf %229, %261 : vector<2x256xf32>
    %263 = vector.extract_strided_slice %2 {offsets = [0, 34], sizes = [2, 256], strides = [1, 1]} : vector<2x290xf32> to vector<2x256xf32>
    %c0_i32_90 = arith.constant 0 : i32
    %264 = arith.addi %0, %c0_i32_90 : i32
    %c36_i32_91 = arith.constant 36 : i32
    %265 = arith.muli %264, %c36_i32_91 : i32
    %c8_i32 = arith.constant 8 : i32
    %266 = arith.addi %265, %c8_i32 : i32
    %267 = arith.index_cast %266 : i32 to index
    %268 = memref.load %arg3[%267] : memref<288xf32, #tpu.memory_space<smem>>
    %269 = vector.broadcast %268 : f32 to vector<2x256xf32>
    %270 = arith.mulf %263, %269 : vector<2x256xf32>
    %271 = arith.addf %238, %270 : vector<2x256xf32>
    %c1_i32_92 = arith.constant 1 : i32
    %272 = arith.addi %0, %c1_i32_92 : i32
    %c36_i32_93 = arith.constant 36 : i32
    %273 = arith.muli %272, %c36_i32_93 : i32
    %c8_i32_94 = arith.constant 8 : i32
    %274 = arith.addi %273, %c8_i32_94 : i32
    %275 = arith.index_cast %274 : i32 to index
    %276 = memref.load %arg3[%275] : memref<288xf32, #tpu.memory_space<smem>>
    %277 = vector.broadcast %276 : f32 to vector<2x256xf32>
    %278 = arith.mulf %263, %277 : vector<2x256xf32>
    %279 = arith.addf %246, %278 : vector<2x256xf32>
    %c2_i32_95 = arith.constant 2 : i32
    %280 = arith.addi %0, %c2_i32_95 : i32
    %c36_i32_96 = arith.constant 36 : i32
    %281 = arith.muli %280, %c36_i32_96 : i32
    %c8_i32_97 = arith.constant 8 : i32
    %282 = arith.addi %281, %c8_i32_97 : i32
    %283 = arith.index_cast %282 : i32 to index
    %284 = memref.load %arg3[%283] : memref<288xf32, #tpu.memory_space<smem>>
    %285 = vector.broadcast %284 : f32 to vector<2x256xf32>
    %286 = arith.mulf %263, %285 : vector<2x256xf32>
    %287 = arith.addf %254, %286 : vector<2x256xf32>
    %c3_i32_98 = arith.constant 3 : i32
    %288 = arith.addi %0, %c3_i32_98 : i32
    %c36_i32_99 = arith.constant 36 : i32
    %289 = arith.muli %288, %c36_i32_99 : i32
    %c8_i32_100 = arith.constant 8 : i32
    %290 = arith.addi %289, %c8_i32_100 : i32
    %291 = arith.index_cast %290 : i32 to index
    %292 = memref.load %arg3[%291] : memref<288xf32, #tpu.memory_space<smem>>
    %293 = vector.broadcast %292 : f32 to vector<2x256xf32>
    %294 = arith.mulf %263, %293 : vector<2x256xf32>
    %295 = arith.addf %262, %294 : vector<2x256xf32>
    %c0_101 = arith.constant 0 : index
    %c1 = arith.constant 1 : index
    %c0_102 = arith.constant 0 : index
    %296 = vector.load %arg2[%c0_101, %c1, %c0_102] : memref<2x4x290xf32, #tpu.memory_space<vmem>>, vector<2x1x290xf32>
    %297 = vector.shape_cast %296 : vector<2x1x290xf32> to vector<2x290xf32>
    %298 = vector.extract_strided_slice %297 {offsets = [0, 0], sizes = [2, 256], strides = [1, 1]} : vector<2x290xf32> to vector<2x256xf32>
    %c0_i32_103 = arith.constant 0 : i32
    %299 = arith.addi %0, %c0_i32_103 : i32
    %c36_i32_104 = arith.constant 36 : i32
    %300 = arith.muli %299, %c36_i32_104 : i32
    %c9_i32 = arith.constant 9 : i32
    %301 = arith.addi %300, %c9_i32 : i32
    %302 = arith.index_cast %301 : i32 to index
    %303 = memref.load %arg3[%302] : memref<288xf32, #tpu.memory_space<smem>>
    %304 = vector.broadcast %303 : f32 to vector<2x256xf32>
    %305 = arith.mulf %298, %304 : vector<2x256xf32>
    %306 = arith.addf %271, %305 : vector<2x256xf32>
    %c1_i32_105 = arith.constant 1 : i32
    %307 = arith.addi %0, %c1_i32_105 : i32
    %c36_i32_106 = arith.constant 36 : i32
    %308 = arith.muli %307, %c36_i32_106 : i32
    %c9_i32_107 = arith.constant 9 : i32
    %309 = arith.addi %308, %c9_i32_107 : i32
    %310 = arith.index_cast %309 : i32 to index
    %311 = memref.load %arg3[%310] : memref<288xf32, #tpu.memory_space<smem>>
    %312 = vector.broadcast %311 : f32 to vector<2x256xf32>
    %313 = arith.mulf %298, %312 : vector<2x256xf32>
    %314 = arith.addf %279, %313 : vector<2x256xf32>
    %c2_i32_108 = arith.constant 2 : i32
    %315 = arith.addi %0, %c2_i32_108 : i32
    %c36_i32_109 = arith.constant 36 : i32
    %316 = arith.muli %315, %c36_i32_109 : i32
    %c9_i32_110 = arith.constant 9 : i32
    %317 = arith.addi %316, %c9_i32_110 : i32
    %318 = arith.index_cast %317 : i32 to index
    %319 = memref.load %arg3[%318] : memref<288xf32, #tpu.memory_space<smem>>
    %320 = vector.broadcast %319 : f32 to vector<2x256xf32>
    %321 = arith.mulf %298, %320 : vector<2x256xf32>
    %322 = arith.addf %287, %321 : vector<2x256xf32>
    %c3_i32_111 = arith.constant 3 : i32
    %323 = arith.addi %0, %c3_i32_111 : i32
    %c36_i32_112 = arith.constant 36 : i32
    %324 = arith.muli %323, %c36_i32_112 : i32
    %c9_i32_113 = arith.constant 9 : i32
    %325 = arith.addi %324, %c9_i32_113 : i32
    %326 = arith.index_cast %325 : i32 to index
    %327 = memref.load %arg3[%326] : memref<288xf32, #tpu.memory_space<smem>>
    %328 = vector.broadcast %327 : f32 to vector<2x256xf32>
    %329 = arith.mulf %298, %328 : vector<2x256xf32>
    %330 = arith.addf %295, %329 : vector<2x256xf32>
    %331 = vector.extract_strided_slice %297 {offsets = [0, 1], sizes = [2, 256], strides = [1, 1]} : vector<2x290xf32> to vector<2x256xf32>
    %c0_i32_114 = arith.constant 0 : i32
    %332 = arith.addi %0, %c0_i32_114 : i32
    %c36_i32_115 = arith.constant 36 : i32
    %333 = arith.muli %332, %c36_i32_115 : i32
    %c10_i32 = arith.constant 10 : i32
    %334 = arith.addi %333, %c10_i32 : i32
    %335 = arith.index_cast %334 : i32 to index
    %336 = memref.load %arg3[%335] : memref<288xf32, #tpu.memory_space<smem>>
    %337 = vector.broadcast %336 : f32 to vector<2x256xf32>
    %338 = arith.mulf %331, %337 : vector<2x256xf32>
    %339 = arith.addf %306, %338 : vector<2x256xf32>
    %c1_i32_116 = arith.constant 1 : i32
    %340 = arith.addi %0, %c1_i32_116 : i32
    %c36_i32_117 = arith.constant 36 : i32
    %341 = arith.muli %340, %c36_i32_117 : i32
    %c10_i32_118 = arith.constant 10 : i32
    %342 = arith.addi %341, %c10_i32_118 : i32
    %343 = arith.index_cast %342 : i32 to index
    %344 = memref.load %arg3[%343] : memref<288xf32, #tpu.memory_space<smem>>
    %345 = vector.broadcast %344 : f32 to vector<2x256xf32>
    %346 = arith.mulf %331, %345 : vector<2x256xf32>
    %347 = arith.addf %314, %346 : vector<2x256xf32>
    %c2_i32_119 = arith.constant 2 : i32
    %348 = arith.addi %0, %c2_i32_119 : i32
    %c36_i32_120 = arith.constant 36 : i32
    %349 = arith.muli %348, %c36_i32_120 : i32
    %c10_i32_121 = arith.constant 10 : i32
    %350 = arith.addi %349, %c10_i32_121 : i32
    %351 = arith.index_cast %350 : i32 to index
    %352 = memref.load %arg3[%351] : memref<288xf32, #tpu.memory_space<smem>>
    %353 = vector.broadcast %352 : f32 to vector<2x256xf32>
    %354 = arith.mulf %331, %353 : vector<2x256xf32>
    %355 = arith.addf %322, %354 : vector<2x256xf32>
    %c3_i32_122 = arith.constant 3 : i32
    %356 = arith.addi %0, %c3_i32_122 : i32
    %c36_i32_123 = arith.constant 36 : i32
    %357 = arith.muli %356, %c36_i32_123 : i32
    %c10_i32_124 = arith.constant 10 : i32
    %358 = arith.addi %357, %c10_i32_124 : i32
    %359 = arith.index_cast %358 : i32 to index
    %360 = memref.load %arg3[%359] : memref<288xf32, #tpu.memory_space<smem>>
    %361 = vector.broadcast %360 : f32 to vector<2x256xf32>
    %362 = arith.mulf %331, %361 : vector<2x256xf32>
    %363 = arith.addf %330, %362 : vector<2x256xf32>
    %364 = vector.extract_strided_slice %297 {offsets = [0, 2], sizes = [2, 256], strides = [1, 1]} : vector<2x290xf32> to vector<2x256xf32>
    %c0_i32_125 = arith.constant 0 : i32
    %365 = arith.addi %0, %c0_i32_125 : i32
    %c36_i32_126 = arith.constant 36 : i32
    %366 = arith.muli %365, %c36_i32_126 : i32
    %c11_i32 = arith.constant 11 : i32
    %367 = arith.addi %366, %c11_i32 : i32
    %368 = arith.index_cast %367 : i32 to index
    %369 = memref.load %arg3[%368] : memref<288xf32, #tpu.memory_space<smem>>
    %370 = vector.broadcast %369 : f32 to vector<2x256xf32>
    %371 = arith.mulf %364, %370 : vector<2x256xf32>
    %372 = arith.addf %339, %371 : vector<2x256xf32>
    %c1_i32_127 = arith.constant 1 : i32
    %373 = arith.addi %0, %c1_i32_127 : i32
    %c36_i32_128 = arith.constant 36 : i32
    %374 = arith.muli %373, %c36_i32_128 : i32
    %c11_i32_129 = arith.constant 11 : i32
    %375 = arith.addi %374, %c11_i32_129 : i32
    %376 = arith.index_cast %375 : i32 to index
    %377 = memref.load %arg3[%376] : memref<288xf32, #tpu.memory_space<smem>>
    %378 = vector.broadcast %377 : f32 to vector<2x256xf32>
    %379 = arith.mulf %364, %378 : vector<2x256xf32>
    %380 = arith.addf %347, %379 : vector<2x256xf32>
    %c2_i32_130 = arith.constant 2 : i32
    %381 = arith.addi %0, %c2_i32_130 : i32
    %c36_i32_131 = arith.constant 36 : i32
    %382 = arith.muli %381, %c36_i32_131 : i32
    %c11_i32_132 = arith.constant 11 : i32
    %383 = arith.addi %382, %c11_i32_132 : i32
    %384 = arith.index_cast %383 : i32 to index
    %385 = memref.load %arg3[%384] : memref<288xf32, #tpu.memory_space<smem>>
    %386 = vector.broadcast %385 : f32 to vector<2x256xf32>
    %387 = arith.mulf %364, %386 : vector<2x256xf32>
    %388 = arith.addf %355, %387 : vector<2x256xf32>
    %c3_i32_133 = arith.constant 3 : i32
    %389 = arith.addi %0, %c3_i32_133 : i32
    %c36_i32_134 = arith.constant 36 : i32
    %390 = arith.muli %389, %c36_i32_134 : i32
    %c11_i32_135 = arith.constant 11 : i32
    %391 = arith.addi %390, %c11_i32_135 : i32
    %392 = arith.index_cast %391 : i32 to index
    %393 = memref.load %arg3[%392] : memref<288xf32, #tpu.memory_space<smem>>
    %394 = vector.broadcast %393 : f32 to vector<2x256xf32>
    %395 = arith.mulf %364, %394 : vector<2x256xf32>
    %396 = arith.addf %363, %395 : vector<2x256xf32>
    %397 = vector.extract_strided_slice %297 {offsets = [0, 16], sizes = [2, 256], strides = [1, 1]} : vector<2x290xf32> to vector<2x256xf32>
    %c0_i32_136 = arith.constant 0 : i32
    %398 = arith.addi %0, %c0_i32_136 : i32
    %c36_i32_137 = arith.constant 36 : i32
    %399 = arith.muli %398, %c36_i32_137 : i32
    %c12_i32 = arith.constant 12 : i32
    %400 = arith.addi %399, %c12_i32 : i32
    %401 = arith.index_cast %400 : i32 to index
    %402 = memref.load %arg3[%401] : memref<288xf32, #tpu.memory_space<smem>>
    %403 = vector.broadcast %402 : f32 to vector<2x256xf32>
    %404 = arith.mulf %397, %403 : vector<2x256xf32>
    %405 = arith.addf %372, %404 : vector<2x256xf32>
    %c1_i32_138 = arith.constant 1 : i32
    %406 = arith.addi %0, %c1_i32_138 : i32
    %c36_i32_139 = arith.constant 36 : i32
    %407 = arith.muli %406, %c36_i32_139 : i32
    %c12_i32_140 = arith.constant 12 : i32
    %408 = arith.addi %407, %c12_i32_140 : i32
    %409 = arith.index_cast %408 : i32 to index
    %410 = memref.load %arg3[%409] : memref<288xf32, #tpu.memory_space<smem>>
    %411 = vector.broadcast %410 : f32 to vector<2x256xf32>
    %412 = arith.mulf %397, %411 : vector<2x256xf32>
    %413 = arith.addf %380, %412 : vector<2x256xf32>
    %c2_i32_141 = arith.constant 2 : i32
    %414 = arith.addi %0, %c2_i32_141 : i32
    %c36_i32_142 = arith.constant 36 : i32
    %415 = arith.muli %414, %c36_i32_142 : i32
    %c12_i32_143 = arith.constant 12 : i32
    %416 = arith.addi %415, %c12_i32_143 : i32
    %417 = arith.index_cast %416 : i32 to index
    %418 = memref.load %arg3[%417] : memref<288xf32, #tpu.memory_space<smem>>
    %419 = vector.broadcast %418 : f32 to vector<2x256xf32>
    %420 = arith.mulf %397, %419 : vector<2x256xf32>
    %421 = arith.addf %388, %420 : vector<2x256xf32>
    %c3_i32_144 = arith.constant 3 : i32
    %422 = arith.addi %0, %c3_i32_144 : i32
    %c36_i32_145 = arith.constant 36 : i32
    %423 = arith.muli %422, %c36_i32_145 : i32
    %c12_i32_146 = arith.constant 12 : i32
    %424 = arith.addi %423, %c12_i32_146 : i32
    %425 = arith.index_cast %424 : i32 to index
    %426 = memref.load %arg3[%425] : memref<288xf32, #tpu.memory_space<smem>>
    %427 = vector.broadcast %426 : f32 to vector<2x256xf32>
    %428 = arith.mulf %397, %427 : vector<2x256xf32>
    %429 = arith.addf %396, %428 : vector<2x256xf32>
    %430 = vector.extract_strided_slice %297 {offsets = [0, 17], sizes = [2, 256], strides = [1, 1]} : vector<2x290xf32> to vector<2x256xf32>
    %c0_i32_147 = arith.constant 0 : i32
    %431 = arith.addi %0, %c0_i32_147 : i32
    %c36_i32_148 = arith.constant 36 : i32
    %432 = arith.muli %431, %c36_i32_148 : i32
    %c13_i32 = arith.constant 13 : i32
    %433 = arith.addi %432, %c13_i32 : i32
    %434 = arith.index_cast %433 : i32 to index
    %435 = memref.load %arg3[%434] : memref<288xf32, #tpu.memory_space<smem>>
    %436 = vector.broadcast %435 : f32 to vector<2x256xf32>
    %437 = arith.mulf %430, %436 : vector<2x256xf32>
    %438 = arith.addf %405, %437 : vector<2x256xf32>
    %c1_i32_149 = arith.constant 1 : i32
    %439 = arith.addi %0, %c1_i32_149 : i32
    %c36_i32_150 = arith.constant 36 : i32
    %440 = arith.muli %439, %c36_i32_150 : i32
    %c13_i32_151 = arith.constant 13 : i32
    %441 = arith.addi %440, %c13_i32_151 : i32
    %442 = arith.index_cast %441 : i32 to index
    %443 = memref.load %arg3[%442] : memref<288xf32, #tpu.memory_space<smem>>
    %444 = vector.broadcast %443 : f32 to vector<2x256xf32>
    %445 = arith.mulf %430, %444 : vector<2x256xf32>
    %446 = arith.addf %413, %445 : vector<2x256xf32>
    %c2_i32_152 = arith.constant 2 : i32
    %447 = arith.addi %0, %c2_i32_152 : i32
    %c36_i32_153 = arith.constant 36 : i32
    %448 = arith.muli %447, %c36_i32_153 : i32
    %c13_i32_154 = arith.constant 13 : i32
    %449 = arith.addi %448, %c13_i32_154 : i32
    %450 = arith.index_cast %449 : i32 to index
    %451 = memref.load %arg3[%450] : memref<288xf32, #tpu.memory_space<smem>>
    %452 = vector.broadcast %451 : f32 to vector<2x256xf32>
    %453 = arith.mulf %430, %452 : vector<2x256xf32>
    %454 = arith.addf %421, %453 : vector<2x256xf32>
    %c3_i32_155 = arith.constant 3 : i32
    %455 = arith.addi %0, %c3_i32_155 : i32
    %c36_i32_156 = arith.constant 36 : i32
    %456 = arith.muli %455, %c36_i32_156 : i32
    %c13_i32_157 = arith.constant 13 : i32
    %457 = arith.addi %456, %c13_i32_157 : i32
    %458 = arith.index_cast %457 : i32 to index
    %459 = memref.load %arg3[%458] : memref<288xf32, #tpu.memory_space<smem>>
    %460 = vector.broadcast %459 : f32 to vector<2x256xf32>
    %461 = arith.mulf %430, %460 : vector<2x256xf32>
    %462 = arith.addf %429, %461 : vector<2x256xf32>
    %463 = vector.extract_strided_slice %297 {offsets = [0, 18], sizes = [2, 256], strides = [1, 1]} : vector<2x290xf32> to vector<2x256xf32>
    %c0_i32_158 = arith.constant 0 : i32
    %464 = arith.addi %0, %c0_i32_158 : i32
    %c36_i32_159 = arith.constant 36 : i32
    %465 = arith.muli %464, %c36_i32_159 : i32
    %c14_i32 = arith.constant 14 : i32
    %466 = arith.addi %465, %c14_i32 : i32
    %467 = arith.index_cast %466 : i32 to index
    %468 = memref.load %arg3[%467] : memref<288xf32, #tpu.memory_space<smem>>
    %469 = vector.broadcast %468 : f32 to vector<2x256xf32>
    %470 = arith.mulf %463, %469 : vector<2x256xf32>
    %471 = arith.addf %438, %470 : vector<2x256xf32>
    %c1_i32_160 = arith.constant 1 : i32
    %472 = arith.addi %0, %c1_i32_160 : i32
    %c36_i32_161 = arith.constant 36 : i32
    %473 = arith.muli %472, %c36_i32_161 : i32
    %c14_i32_162 = arith.constant 14 : i32
    %474 = arith.addi %473, %c14_i32_162 : i32
    %475 = arith.index_cast %474 : i32 to index
    %476 = memref.load %arg3[%475] : memref<288xf32, #tpu.memory_space<smem>>
    %477 = vector.broadcast %476 : f32 to vector<2x256xf32>
    %478 = arith.mulf %463, %477 : vector<2x256xf32>
    %479 = arith.addf %446, %478 : vector<2x256xf32>
    %c2_i32_163 = arith.constant 2 : i32
    %480 = arith.addi %0, %c2_i32_163 : i32
    %c36_i32_164 = arith.constant 36 : i32
    %481 = arith.muli %480, %c36_i32_164 : i32
    %c14_i32_165 = arith.constant 14 : i32
    %482 = arith.addi %481, %c14_i32_165 : i32
    %483 = arith.index_cast %482 : i32 to index
    %484 = memref.load %arg3[%483] : memref<288xf32, #tpu.memory_space<smem>>
    %485 = vector.broadcast %484 : f32 to vector<2x256xf32>
    %486 = arith.mulf %463, %485 : vector<2x256xf32>
    %487 = arith.addf %454, %486 : vector<2x256xf32>
    %c3_i32_166 = arith.constant 3 : i32
    %488 = arith.addi %0, %c3_i32_166 : i32
    %c36_i32_167 = arith.constant 36 : i32
    %489 = arith.muli %488, %c36_i32_167 : i32
    %c14_i32_168 = arith.constant 14 : i32
    %490 = arith.addi %489, %c14_i32_168 : i32
    %491 = arith.index_cast %490 : i32 to index
    %492 = memref.load %arg3[%491] : memref<288xf32, #tpu.memory_space<smem>>
    %493 = vector.broadcast %492 : f32 to vector<2x256xf32>
    %494 = arith.mulf %463, %493 : vector<2x256xf32>
    %495 = arith.addf %462, %494 : vector<2x256xf32>
    %496 = vector.extract_strided_slice %297 {offsets = [0, 32], sizes = [2, 256], strides = [1, 1]} : vector<2x290xf32> to vector<2x256xf32>
    %c0_i32_169 = arith.constant 0 : i32
    %497 = arith.addi %0, %c0_i32_169 : i32
    %c36_i32_170 = arith.constant 36 : i32
    %498 = arith.muli %497, %c36_i32_170 : i32
    %c15_i32 = arith.constant 15 : i32
    %499 = arith.addi %498, %c15_i32 : i32
    %500 = arith.index_cast %499 : i32 to index
    %501 = memref.load %arg3[%500] : memref<288xf32, #tpu.memory_space<smem>>
    %502 = vector.broadcast %501 : f32 to vector<2x256xf32>
    %503 = arith.mulf %496, %502 : vector<2x256xf32>
    %504 = arith.addf %471, %503 : vector<2x256xf32>
    %c1_i32_171 = arith.constant 1 : i32
    %505 = arith.addi %0, %c1_i32_171 : i32
    %c36_i32_172 = arith.constant 36 : i32
    %506 = arith.muli %505, %c36_i32_172 : i32
    %c15_i32_173 = arith.constant 15 : i32
    %507 = arith.addi %506, %c15_i32_173 : i32
    %508 = arith.index_cast %507 : i32 to index
    %509 = memref.load %arg3[%508] : memref<288xf32, #tpu.memory_space<smem>>
    %510 = vector.broadcast %509 : f32 to vector<2x256xf32>
    %511 = arith.mulf %496, %510 : vector<2x256xf32>
    %512 = arith.addf %479, %511 : vector<2x256xf32>
    %c2_i32_174 = arith.constant 2 : i32
    %513 = arith.addi %0, %c2_i32_174 : i32
    %c36_i32_175 = arith.constant 36 : i32
    %514 = arith.muli %513, %c36_i32_175 : i32
    %c15_i32_176 = arith.constant 15 : i32
    %515 = arith.addi %514, %c15_i32_176 : i32
    %516 = arith.index_cast %515 : i32 to index
    %517 = memref.load %arg3[%516] : memref<288xf32, #tpu.memory_space<smem>>
    %518 = vector.broadcast %517 : f32 to vector<2x256xf32>
    %519 = arith.mulf %496, %518 : vector<2x256xf32>
    %520 = arith.addf %487, %519 : vector<2x256xf32>
    %c3_i32_177 = arith.constant 3 : i32
    %521 = arith.addi %0, %c3_i32_177 : i32
    %c36_i32_178 = arith.constant 36 : i32
    %522 = arith.muli %521, %c36_i32_178 : i32
    %c15_i32_179 = arith.constant 15 : i32
    %523 = arith.addi %522, %c15_i32_179 : i32
    %524 = arith.index_cast %523 : i32 to index
    %525 = memref.load %arg3[%524] : memref<288xf32, #tpu.memory_space<smem>>
    %526 = vector.broadcast %525 : f32 to vector<2x256xf32>
    %527 = arith.mulf %496, %526 : vector<2x256xf32>
    %528 = arith.addf %495, %527 : vector<2x256xf32>
    %529 = vector.extract_strided_slice %297 {offsets = [0, 33], sizes = [2, 256], strides = [1, 1]} : vector<2x290xf32> to vector<2x256xf32>
    %c0_i32_180 = arith.constant 0 : i32
    %530 = arith.addi %0, %c0_i32_180 : i32
    %c36_i32_181 = arith.constant 36 : i32
    %531 = arith.muli %530, %c36_i32_181 : i32
    %c16_i32 = arith.constant 16 : i32
    %532 = arith.addi %531, %c16_i32 : i32
    %533 = arith.index_cast %532 : i32 to index
    %534 = memref.load %arg3[%533] : memref<288xf32, #tpu.memory_space<smem>>
    %535 = vector.broadcast %534 : f32 to vector<2x256xf32>
    %536 = arith.mulf %529, %535 : vector<2x256xf32>
    %537 = arith.addf %504, %536 : vector<2x256xf32>
    %c1_i32_182 = arith.constant 1 : i32
    %538 = arith.addi %0, %c1_i32_182 : i32
    %c36_i32_183 = arith.constant 36 : i32
    %539 = arith.muli %538, %c36_i32_183 : i32
    %c16_i32_184 = arith.constant 16 : i32
    %540 = arith.addi %539, %c16_i32_184 : i32
    %541 = arith.index_cast %540 : i32 to index
    %542 = memref.load %arg3[%541] : memref<288xf32, #tpu.memory_space<smem>>
    %543 = vector.broadcast %542 : f32 to vector<2x256xf32>
    %544 = arith.mulf %529, %543 : vector<2x256xf32>
    %545 = arith.addf %512, %544 : vector<2x256xf32>
    %c2_i32_185 = arith.constant 2 : i32
    %546 = arith.addi %0, %c2_i32_185 : i32
    %c36_i32_186 = arith.constant 36 : i32
    %547 = arith.muli %546, %c36_i32_186 : i32
    %c16_i32_187 = arith.constant 16 : i32
    %548 = arith.addi %547, %c16_i32_187 : i32
    %549 = arith.index_cast %548 : i32 to index
    %550 = memref.load %arg3[%549] : memref<288xf32, #tpu.memory_space<smem>>
    %551 = vector.broadcast %550 : f32 to vector<2x256xf32>
    %552 = arith.mulf %529, %551 : vector<2x256xf32>
    %553 = arith.addf %520, %552 : vector<2x256xf32>
    %c3_i32_188 = arith.constant 3 : i32
    %554 = arith.addi %0, %c3_i32_188 : i32
    %c36_i32_189 = arith.constant 36 : i32
    %555 = arith.muli %554, %c36_i32_189 : i32
    %c16_i32_190 = arith.constant 16 : i32
    %556 = arith.addi %555, %c16_i32_190 : i32
    %557 = arith.index_cast %556 : i32 to index
    %558 = memref.load %arg3[%557] : memref<288xf32, #tpu.memory_space<smem>>
    %559 = vector.broadcast %558 : f32 to vector<2x256xf32>
    %560 = arith.mulf %529, %559 : vector<2x256xf32>
    %561 = arith.addf %528, %560 : vector<2x256xf32>
    %562 = vector.extract_strided_slice %297 {offsets = [0, 34], sizes = [2, 256], strides = [1, 1]} : vector<2x290xf32> to vector<2x256xf32>
    %c0_i32_191 = arith.constant 0 : i32
    %563 = arith.addi %0, %c0_i32_191 : i32
    %c36_i32_192 = arith.constant 36 : i32
    %564 = arith.muli %563, %c36_i32_192 : i32
    %c17_i32 = arith.constant 17 : i32
    %565 = arith.addi %564, %c17_i32 : i32
    %566 = arith.index_cast %565 : i32 to index
    %567 = memref.load %arg3[%566] : memref<288xf32, #tpu.memory_space<smem>>
    %568 = vector.broadcast %567 : f32 to vector<2x256xf32>
    %569 = arith.mulf %562, %568 : vector<2x256xf32>
    %570 = arith.addf %537, %569 : vector<2x256xf32>
    %c1_i32_193 = arith.constant 1 : i32
    %571 = arith.addi %0, %c1_i32_193 : i32
    %c36_i32_194 = arith.constant 36 : i32
    %572 = arith.muli %571, %c36_i32_194 : i32
    %c17_i32_195 = arith.constant 17 : i32
    %573 = arith.addi %572, %c17_i32_195 : i32
    %574 = arith.index_cast %573 : i32 to index
    %575 = memref.load %arg3[%574] : memref<288xf32, #tpu.memory_space<smem>>
    %576 = vector.broadcast %575 : f32 to vector<2x256xf32>
    %577 = arith.mulf %562, %576 : vector<2x256xf32>
    %578 = arith.addf %545, %577 : vector<2x256xf32>
    %c2_i32_196 = arith.constant 2 : i32
    %579 = arith.addi %0, %c2_i32_196 : i32
    %c36_i32_197 = arith.constant 36 : i32
    %580 = arith.muli %579, %c36_i32_197 : i32
    %c17_i32_198 = arith.constant 17 : i32
    %581 = arith.addi %580, %c17_i32_198 : i32
    %582 = arith.index_cast %581 : i32 to index
    %583 = memref.load %arg3[%582] : memref<288xf32, #tpu.memory_space<smem>>
    %584 = vector.broadcast %583 : f32 to vector<2x256xf32>
    %585 = arith.mulf %562, %584 : vector<2x256xf32>
    %586 = arith.addf %553, %585 : vector<2x256xf32>
    %c3_i32_199 = arith.constant 3 : i32
    %587 = arith.addi %0, %c3_i32_199 : i32
    %c36_i32_200 = arith.constant 36 : i32
    %588 = arith.muli %587, %c36_i32_200 : i32
    %c17_i32_201 = arith.constant 17 : i32
    %589 = arith.addi %588, %c17_i32_201 : i32
    %590 = arith.index_cast %589 : i32 to index
    %591 = memref.load %arg3[%590] : memref<288xf32, #tpu.memory_space<smem>>
    %592 = vector.broadcast %591 : f32 to vector<2x256xf32>
    %593 = arith.mulf %562, %592 : vector<2x256xf32>
    %594 = arith.addf %561, %593 : vector<2x256xf32>
    %c0_202 = arith.constant 0 : index
    %c2 = arith.constant 2 : index
    %c0_203 = arith.constant 0 : index
    %595 = vector.load %arg2[%c0_202, %c2, %c0_203] : memref<2x4x290xf32, #tpu.memory_space<vmem>>, vector<2x1x290xf32>
    %596 = vector.shape_cast %595 : vector<2x1x290xf32> to vector<2x290xf32>
    %597 = vector.extract_strided_slice %596 {offsets = [0, 0], sizes = [2, 256], strides = [1, 1]} : vector<2x290xf32> to vector<2x256xf32>
    %c0_i32_204 = arith.constant 0 : i32
    %598 = arith.addi %0, %c0_i32_204 : i32
    %c36_i32_205 = arith.constant 36 : i32
    %599 = arith.muli %598, %c36_i32_205 : i32
    %c18_i32 = arith.constant 18 : i32
    %600 = arith.addi %599, %c18_i32 : i32
    %601 = arith.index_cast %600 : i32 to index
    %602 = memref.load %arg3[%601] : memref<288xf32, #tpu.memory_space<smem>>
    %603 = vector.broadcast %602 : f32 to vector<2x256xf32>
    %604 = arith.mulf %597, %603 : vector<2x256xf32>
    %605 = arith.addf %570, %604 : vector<2x256xf32>
    %c1_i32_206 = arith.constant 1 : i32
    %606 = arith.addi %0, %c1_i32_206 : i32
    %c36_i32_207 = arith.constant 36 : i32
    %607 = arith.muli %606, %c36_i32_207 : i32
    %c18_i32_208 = arith.constant 18 : i32
    %608 = arith.addi %607, %c18_i32_208 : i32
    %609 = arith.index_cast %608 : i32 to index
    %610 = memref.load %arg3[%609] : memref<288xf32, #tpu.memory_space<smem>>
    %611 = vector.broadcast %610 : f32 to vector<2x256xf32>
    %612 = arith.mulf %597, %611 : vector<2x256xf32>
    %613 = arith.addf %578, %612 : vector<2x256xf32>
    %c2_i32_209 = arith.constant 2 : i32
    %614 = arith.addi %0, %c2_i32_209 : i32
    %c36_i32_210 = arith.constant 36 : i32
    %615 = arith.muli %614, %c36_i32_210 : i32
    %c18_i32_211 = arith.constant 18 : i32
    %616 = arith.addi %615, %c18_i32_211 : i32
    %617 = arith.index_cast %616 : i32 to index
    %618 = memref.load %arg3[%617] : memref<288xf32, #tpu.memory_space<smem>>
    %619 = vector.broadcast %618 : f32 to vector<2x256xf32>
    %620 = arith.mulf %597, %619 : vector<2x256xf32>
    %621 = arith.addf %586, %620 : vector<2x256xf32>
    %c3_i32_212 = arith.constant 3 : i32
    %622 = arith.addi %0, %c3_i32_212 : i32
    %c36_i32_213 = arith.constant 36 : i32
    %623 = arith.muli %622, %c36_i32_213 : i32
    %c18_i32_214 = arith.constant 18 : i32
    %624 = arith.addi %623, %c18_i32_214 : i32
    %625 = arith.index_cast %624 : i32 to index
    %626 = memref.load %arg3[%625] : memref<288xf32, #tpu.memory_space<smem>>
    %627 = vector.broadcast %626 : f32 to vector<2x256xf32>
    %628 = arith.mulf %597, %627 : vector<2x256xf32>
    %629 = arith.addf %594, %628 : vector<2x256xf32>
    %630 = vector.extract_strided_slice %596 {offsets = [0, 1], sizes = [2, 256], strides = [1, 1]} : vector<2x290xf32> to vector<2x256xf32>
    %c0_i32_215 = arith.constant 0 : i32
    %631 = arith.addi %0, %c0_i32_215 : i32
    %c36_i32_216 = arith.constant 36 : i32
    %632 = arith.muli %631, %c36_i32_216 : i32
    %c19_i32 = arith.constant 19 : i32
    %633 = arith.addi %632, %c19_i32 : i32
    %634 = arith.index_cast %633 : i32 to index
    %635 = memref.load %arg3[%634] : memref<288xf32, #tpu.memory_space<smem>>
    %636 = vector.broadcast %635 : f32 to vector<2x256xf32>
    %637 = arith.mulf %630, %636 : vector<2x256xf32>
    %638 = arith.addf %605, %637 : vector<2x256xf32>
    %c1_i32_217 = arith.constant 1 : i32
    %639 = arith.addi %0, %c1_i32_217 : i32
    %c36_i32_218 = arith.constant 36 : i32
    %640 = arith.muli %639, %c36_i32_218 : i32
    %c19_i32_219 = arith.constant 19 : i32
    %641 = arith.addi %640, %c19_i32_219 : i32
    %642 = arith.index_cast %641 : i32 to index
    %643 = memref.load %arg3[%642] : memref<288xf32, #tpu.memory_space<smem>>
    %644 = vector.broadcast %643 : f32 to vector<2x256xf32>
    %645 = arith.mulf %630, %644 : vector<2x256xf32>
    %646 = arith.addf %613, %645 : vector<2x256xf32>
    %c2_i32_220 = arith.constant 2 : i32
    %647 = arith.addi %0, %c2_i32_220 : i32
    %c36_i32_221 = arith.constant 36 : i32
    %648 = arith.muli %647, %c36_i32_221 : i32
    %c19_i32_222 = arith.constant 19 : i32
    %649 = arith.addi %648, %c19_i32_222 : i32
    %650 = arith.index_cast %649 : i32 to index
    %651 = memref.load %arg3[%650] : memref<288xf32, #tpu.memory_space<smem>>
    %652 = vector.broadcast %651 : f32 to vector<2x256xf32>
    %653 = arith.mulf %630, %652 : vector<2x256xf32>
    %654 = arith.addf %621, %653 : vector<2x256xf32>
    %c3_i32_223 = arith.constant 3 : i32
    %655 = arith.addi %0, %c3_i32_223 : i32
    %c36_i32_224 = arith.constant 36 : i32
    %656 = arith.muli %655, %c36_i32_224 : i32
    %c19_i32_225 = arith.constant 19 : i32
    %657 = arith.addi %656, %c19_i32_225 : i32
    %658 = arith.index_cast %657 : i32 to index
    %659 = memref.load %arg3[%658] : memref<288xf32, #tpu.memory_space<smem>>
    %660 = vector.broadcast %659 : f32 to vector<2x256xf32>
    %661 = arith.mulf %630, %660 : vector<2x256xf32>
    %662 = arith.addf %629, %661 : vector<2x256xf32>
    %663 = vector.extract_strided_slice %596 {offsets = [0, 2], sizes = [2, 256], strides = [1, 1]} : vector<2x290xf32> to vector<2x256xf32>
    %c0_i32_226 = arith.constant 0 : i32
    %664 = arith.addi %0, %c0_i32_226 : i32
    %c36_i32_227 = arith.constant 36 : i32
    %665 = arith.muli %664, %c36_i32_227 : i32
    %c20_i32 = arith.constant 20 : i32
    %666 = arith.addi %665, %c20_i32 : i32
    %667 = arith.index_cast %666 : i32 to index
    %668 = memref.load %arg3[%667] : memref<288xf32, #tpu.memory_space<smem>>
    %669 = vector.broadcast %668 : f32 to vector<2x256xf32>
    %670 = arith.mulf %663, %669 : vector<2x256xf32>
    %671 = arith.addf %638, %670 : vector<2x256xf32>
    %c1_i32_228 = arith.constant 1 : i32
    %672 = arith.addi %0, %c1_i32_228 : i32
    %c36_i32_229 = arith.constant 36 : i32
    %673 = arith.muli %672, %c36_i32_229 : i32
    %c20_i32_230 = arith.constant 20 : i32
    %674 = arith.addi %673, %c20_i32_230 : i32
    %675 = arith.index_cast %674 : i32 to index
    %676 = memref.load %arg3[%675] : memref<288xf32, #tpu.memory_space<smem>>
    %677 = vector.broadcast %676 : f32 to vector<2x256xf32>
    %678 = arith.mulf %663, %677 : vector<2x256xf32>
    %679 = arith.addf %646, %678 : vector<2x256xf32>
    %c2_i32_231 = arith.constant 2 : i32
    %680 = arith.addi %0, %c2_i32_231 : i32
    %c36_i32_232 = arith.constant 36 : i32
    %681 = arith.muli %680, %c36_i32_232 : i32
    %c20_i32_233 = arith.constant 20 : i32
    %682 = arith.addi %681, %c20_i32_233 : i32
    %683 = arith.index_cast %682 : i32 to index
    %684 = memref.load %arg3[%683] : memref<288xf32, #tpu.memory_space<smem>>
    %685 = vector.broadcast %684 : f32 to vector<2x256xf32>
    %686 = arith.mulf %663, %685 : vector<2x256xf32>
    %687 = arith.addf %654, %686 : vector<2x256xf32>
    %c3_i32_234 = arith.constant 3 : i32
    %688 = arith.addi %0, %c3_i32_234 : i32
    %c36_i32_235 = arith.constant 36 : i32
    %689 = arith.muli %688, %c36_i32_235 : i32
    %c20_i32_236 = arith.constant 20 : i32
    %690 = arith.addi %689, %c20_i32_236 : i32
    %691 = arith.index_cast %690 : i32 to index
    %692 = memref.load %arg3[%691] : memref<288xf32, #tpu.memory_space<smem>>
    %693 = vector.broadcast %692 : f32 to vector<2x256xf32>
    %694 = arith.mulf %663, %693 : vector<2x256xf32>
    %695 = arith.addf %662, %694 : vector<2x256xf32>
    %696 = vector.extract_strided_slice %596 {offsets = [0, 16], sizes = [2, 256], strides = [1, 1]} : vector<2x290xf32> to vector<2x256xf32>
    %c0_i32_237 = arith.constant 0 : i32
    %697 = arith.addi %0, %c0_i32_237 : i32
    %c36_i32_238 = arith.constant 36 : i32
    %698 = arith.muli %697, %c36_i32_238 : i32
    %c21_i32 = arith.constant 21 : i32
    %699 = arith.addi %698, %c21_i32 : i32
    %700 = arith.index_cast %699 : i32 to index
    %701 = memref.load %arg3[%700] : memref<288xf32, #tpu.memory_space<smem>>
    %702 = vector.broadcast %701 : f32 to vector<2x256xf32>
    %703 = arith.mulf %696, %702 : vector<2x256xf32>
    %704 = arith.addf %671, %703 : vector<2x256xf32>
    %c1_i32_239 = arith.constant 1 : i32
    %705 = arith.addi %0, %c1_i32_239 : i32
    %c36_i32_240 = arith.constant 36 : i32
    %706 = arith.muli %705, %c36_i32_240 : i32
    %c21_i32_241 = arith.constant 21 : i32
    %707 = arith.addi %706, %c21_i32_241 : i32
    %708 = arith.index_cast %707 : i32 to index
    %709 = memref.load %arg3[%708] : memref<288xf32, #tpu.memory_space<smem>>
    %710 = vector.broadcast %709 : f32 to vector<2x256xf32>
    %711 = arith.mulf %696, %710 : vector<2x256xf32>
    %712 = arith.addf %679, %711 : vector<2x256xf32>
    %c2_i32_242 = arith.constant 2 : i32
    %713 = arith.addi %0, %c2_i32_242 : i32
    %c36_i32_243 = arith.constant 36 : i32
    %714 = arith.muli %713, %c36_i32_243 : i32
    %c21_i32_244 = arith.constant 21 : i32
    %715 = arith.addi %714, %c21_i32_244 : i32
    %716 = arith.index_cast %715 : i32 to index
    %717 = memref.load %arg3[%716] : memref<288xf32, #tpu.memory_space<smem>>
    %718 = vector.broadcast %717 : f32 to vector<2x256xf32>
    %719 = arith.mulf %696, %718 : vector<2x256xf32>
    %720 = arith.addf %687, %719 : vector<2x256xf32>
    %c3_i32_245 = arith.constant 3 : i32
    %721 = arith.addi %0, %c3_i32_245 : i32
    %c36_i32_246 = arith.constant 36 : i32
    %722 = arith.muli %721, %c36_i32_246 : i32
    %c21_i32_247 = arith.constant 21 : i32
    %723 = arith.addi %722, %c21_i32_247 : i32
    %724 = arith.index_cast %723 : i32 to index
    %725 = memref.load %arg3[%724] : memref<288xf32, #tpu.memory_space<smem>>
    %726 = vector.broadcast %725 : f32 to vector<2x256xf32>
    %727 = arith.mulf %696, %726 : vector<2x256xf32>
    %728 = arith.addf %695, %727 : vector<2x256xf32>
    %729 = vector.extract_strided_slice %596 {offsets = [0, 17], sizes = [2, 256], strides = [1, 1]} : vector<2x290xf32> to vector<2x256xf32>
    %c0_i32_248 = arith.constant 0 : i32
    %730 = arith.addi %0, %c0_i32_248 : i32
    %c36_i32_249 = arith.constant 36 : i32
    %731 = arith.muli %730, %c36_i32_249 : i32
    %c22_i32 = arith.constant 22 : i32
    %732 = arith.addi %731, %c22_i32 : i32
    %733 = arith.index_cast %732 : i32 to index
    %734 = memref.load %arg3[%733] : memref<288xf32, #tpu.memory_space<smem>>
    %735 = vector.broadcast %734 : f32 to vector<2x256xf32>
    %736 = arith.mulf %729, %735 : vector<2x256xf32>
    %737 = arith.addf %704, %736 : vector<2x256xf32>
    %c1_i32_250 = arith.constant 1 : i32
    %738 = arith.addi %0, %c1_i32_250 : i32
    %c36_i32_251 = arith.constant 36 : i32
    %739 = arith.muli %738, %c36_i32_251 : i32
    %c22_i32_252 = arith.constant 22 : i32
    %740 = arith.addi %739, %c22_i32_252 : i32
    %741 = arith.index_cast %740 : i32 to index
    %742 = memref.load %arg3[%741] : memref<288xf32, #tpu.memory_space<smem>>
    %743 = vector.broadcast %742 : f32 to vector<2x256xf32>
    %744 = arith.mulf %729, %743 : vector<2x256xf32>
    %745 = arith.addf %712, %744 : vector<2x256xf32>
    %c2_i32_253 = arith.constant 2 : i32
    %746 = arith.addi %0, %c2_i32_253 : i32
    %c36_i32_254 = arith.constant 36 : i32
    %747 = arith.muli %746, %c36_i32_254 : i32
    %c22_i32_255 = arith.constant 22 : i32
    %748 = arith.addi %747, %c22_i32_255 : i32
    %749 = arith.index_cast %748 : i32 to index
    %750 = memref.load %arg3[%749] : memref<288xf32, #tpu.memory_space<smem>>
    %751 = vector.broadcast %750 : f32 to vector<2x256xf32>
    %752 = arith.mulf %729, %751 : vector<2x256xf32>
    %753 = arith.addf %720, %752 : vector<2x256xf32>
    %c3_i32_256 = arith.constant 3 : i32
    %754 = arith.addi %0, %c3_i32_256 : i32
    %c36_i32_257 = arith.constant 36 : i32
    %755 = arith.muli %754, %c36_i32_257 : i32
    %c22_i32_258 = arith.constant 22 : i32
    %756 = arith.addi %755, %c22_i32_258 : i32
    %757 = arith.index_cast %756 : i32 to index
    %758 = memref.load %arg3[%757] : memref<288xf32, #tpu.memory_space<smem>>
    %759 = vector.broadcast %758 : f32 to vector<2x256xf32>
    %760 = arith.mulf %729, %759 : vector<2x256xf32>
    %761 = arith.addf %728, %760 : vector<2x256xf32>
    %762 = vector.extract_strided_slice %596 {offsets = [0, 18], sizes = [2, 256], strides = [1, 1]} : vector<2x290xf32> to vector<2x256xf32>
    %c0_i32_259 = arith.constant 0 : i32
    %763 = arith.addi %0, %c0_i32_259 : i32
    %c36_i32_260 = arith.constant 36 : i32
    %764 = arith.muli %763, %c36_i32_260 : i32
    %c23_i32 = arith.constant 23 : i32
    %765 = arith.addi %764, %c23_i32 : i32
    %766 = arith.index_cast %765 : i32 to index
    %767 = memref.load %arg3[%766] : memref<288xf32, #tpu.memory_space<smem>>
    %768 = vector.broadcast %767 : f32 to vector<2x256xf32>
    %769 = arith.mulf %762, %768 : vector<2x256xf32>
    %770 = arith.addf %737, %769 : vector<2x256xf32>
    %c1_i32_261 = arith.constant 1 : i32
    %771 = arith.addi %0, %c1_i32_261 : i32
    %c36_i32_262 = arith.constant 36 : i32
    %772 = arith.muli %771, %c36_i32_262 : i32
    %c23_i32_263 = arith.constant 23 : i32
    %773 = arith.addi %772, %c23_i32_263 : i32
    %774 = arith.index_cast %773 : i32 to index
    %775 = memref.load %arg3[%774] : memref<288xf32, #tpu.memory_space<smem>>
    %776 = vector.broadcast %775 : f32 to vector<2x256xf32>
    %777 = arith.mulf %762, %776 : vector<2x256xf32>
    %778 = arith.addf %745, %777 : vector<2x256xf32>
    %c2_i32_264 = arith.constant 2 : i32
    %779 = arith.addi %0, %c2_i32_264 : i32
    %c36_i32_265 = arith.constant 36 : i32
    %780 = arith.muli %779, %c36_i32_265 : i32
    %c23_i32_266 = arith.constant 23 : i32
    %781 = arith.addi %780, %c23_i32_266 : i32
    %782 = arith.index_cast %781 : i32 to index
    %783 = memref.load %arg3[%782] : memref<288xf32, #tpu.memory_space<smem>>
    %784 = vector.broadcast %783 : f32 to vector<2x256xf32>
    %785 = arith.mulf %762, %784 : vector<2x256xf32>
    %786 = arith.addf %753, %785 : vector<2x256xf32>
    %c3_i32_267 = arith.constant 3 : i32
    %787 = arith.addi %0, %c3_i32_267 : i32
    %c36_i32_268 = arith.constant 36 : i32
    %788 = arith.muli %787, %c36_i32_268 : i32
    %c23_i32_269 = arith.constant 23 : i32
    %789 = arith.addi %788, %c23_i32_269 : i32
    %790 = arith.index_cast %789 : i32 to index
    %791 = memref.load %arg3[%790] : memref<288xf32, #tpu.memory_space<smem>>
    %792 = vector.broadcast %791 : f32 to vector<2x256xf32>
    %793 = arith.mulf %762, %792 : vector<2x256xf32>
    %794 = arith.addf %761, %793 : vector<2x256xf32>
    %795 = vector.extract_strided_slice %596 {offsets = [0, 32], sizes = [2, 256], strides = [1, 1]} : vector<2x290xf32> to vector<2x256xf32>
    %c0_i32_270 = arith.constant 0 : i32
    %796 = arith.addi %0, %c0_i32_270 : i32
    %c36_i32_271 = arith.constant 36 : i32
    %797 = arith.muli %796, %c36_i32_271 : i32
    %c24_i32 = arith.constant 24 : i32
    %798 = arith.addi %797, %c24_i32 : i32
    %799 = arith.index_cast %798 : i32 to index
    %800 = memref.load %arg3[%799] : memref<288xf32, #tpu.memory_space<smem>>
    %801 = vector.broadcast %800 : f32 to vector<2x256xf32>
    %802 = arith.mulf %795, %801 : vector<2x256xf32>
    %803 = arith.addf %770, %802 : vector<2x256xf32>
    %c1_i32_272 = arith.constant 1 : i32
    %804 = arith.addi %0, %c1_i32_272 : i32
    %c36_i32_273 = arith.constant 36 : i32
    %805 = arith.muli %804, %c36_i32_273 : i32
    %c24_i32_274 = arith.constant 24 : i32
    %806 = arith.addi %805, %c24_i32_274 : i32
    %807 = arith.index_cast %806 : i32 to index
    %808 = memref.load %arg3[%807] : memref<288xf32, #tpu.memory_space<smem>>
    %809 = vector.broadcast %808 : f32 to vector<2x256xf32>
    %810 = arith.mulf %795, %809 : vector<2x256xf32>
    %811 = arith.addf %778, %810 : vector<2x256xf32>
    %c2_i32_275 = arith.constant 2 : i32
    %812 = arith.addi %0, %c2_i32_275 : i32
    %c36_i32_276 = arith.constant 36 : i32
    %813 = arith.muli %812, %c36_i32_276 : i32
    %c24_i32_277 = arith.constant 24 : i32
    %814 = arith.addi %813, %c24_i32_277 : i32
    %815 = arith.index_cast %814 : i32 to index
    %816 = memref.load %arg3[%815] : memref<288xf32, #tpu.memory_space<smem>>
    %817 = vector.broadcast %816 : f32 to vector<2x256xf32>
    %818 = arith.mulf %795, %817 : vector<2x256xf32>
    %819 = arith.addf %786, %818 : vector<2x256xf32>
    %c3_i32_278 = arith.constant 3 : i32
    %820 = arith.addi %0, %c3_i32_278 : i32
    %c36_i32_279 = arith.constant 36 : i32
    %821 = arith.muli %820, %c36_i32_279 : i32
    %c24_i32_280 = arith.constant 24 : i32
    %822 = arith.addi %821, %c24_i32_280 : i32
    %823 = arith.index_cast %822 : i32 to index
    %824 = memref.load %arg3[%823] : memref<288xf32, #tpu.memory_space<smem>>
    %825 = vector.broadcast %824 : f32 to vector<2x256xf32>
    %826 = arith.mulf %795, %825 : vector<2x256xf32>
    %827 = arith.addf %794, %826 : vector<2x256xf32>
    %828 = vector.extract_strided_slice %596 {offsets = [0, 33], sizes = [2, 256], strides = [1, 1]} : vector<2x290xf32> to vector<2x256xf32>
    %c0_i32_281 = arith.constant 0 : i32
    %829 = arith.addi %0, %c0_i32_281 : i32
    %c36_i32_282 = arith.constant 36 : i32
    %830 = arith.muli %829, %c36_i32_282 : i32
    %c25_i32 = arith.constant 25 : i32
    %831 = arith.addi %830, %c25_i32 : i32
    %832 = arith.index_cast %831 : i32 to index
    %833 = memref.load %arg3[%832] : memref<288xf32, #tpu.memory_space<smem>>
    %834 = vector.broadcast %833 : f32 to vector<2x256xf32>
    %835 = arith.mulf %828, %834 : vector<2x256xf32>
    %836 = arith.addf %803, %835 : vector<2x256xf32>
    %c1_i32_283 = arith.constant 1 : i32
    %837 = arith.addi %0, %c1_i32_283 : i32
    %c36_i32_284 = arith.constant 36 : i32
    %838 = arith.muli %837, %c36_i32_284 : i32
    %c25_i32_285 = arith.constant 25 : i32
    %839 = arith.addi %838, %c25_i32_285 : i32
    %840 = arith.index_cast %839 : i32 to index
    %841 = memref.load %arg3[%840] : memref<288xf32, #tpu.memory_space<smem>>
    %842 = vector.broadcast %841 : f32 to vector<2x256xf32>
    %843 = arith.mulf %828, %842 : vector<2x256xf32>
    %844 = arith.addf %811, %843 : vector<2x256xf32>
    %c2_i32_286 = arith.constant 2 : i32
    %845 = arith.addi %0, %c2_i32_286 : i32
    %c36_i32_287 = arith.constant 36 : i32
    %846 = arith.muli %845, %c36_i32_287 : i32
    %c25_i32_288 = arith.constant 25 : i32
    %847 = arith.addi %846, %c25_i32_288 : i32
    %848 = arith.index_cast %847 : i32 to index
    %849 = memref.load %arg3[%848] : memref<288xf32, #tpu.memory_space<smem>>
    %850 = vector.broadcast %849 : f32 to vector<2x256xf32>
    %851 = arith.mulf %828, %850 : vector<2x256xf32>
    %852 = arith.addf %819, %851 : vector<2x256xf32>
    %c3_i32_289 = arith.constant 3 : i32
    %853 = arith.addi %0, %c3_i32_289 : i32
    %c36_i32_290 = arith.constant 36 : i32
    %854 = arith.muli %853, %c36_i32_290 : i32
    %c25_i32_291 = arith.constant 25 : i32
    %855 = arith.addi %854, %c25_i32_291 : i32
    %856 = arith.index_cast %855 : i32 to index
    %857 = memref.load %arg3[%856] : memref<288xf32, #tpu.memory_space<smem>>
    %858 = vector.broadcast %857 : f32 to vector<2x256xf32>
    %859 = arith.mulf %828, %858 : vector<2x256xf32>
    %860 = arith.addf %827, %859 : vector<2x256xf32>
    %861 = vector.extract_strided_slice %596 {offsets = [0, 34], sizes = [2, 256], strides = [1, 1]} : vector<2x290xf32> to vector<2x256xf32>
    %c0_i32_292 = arith.constant 0 : i32
    %862 = arith.addi %0, %c0_i32_292 : i32
    %c36_i32_293 = arith.constant 36 : i32
    %863 = arith.muli %862, %c36_i32_293 : i32
    %c26_i32 = arith.constant 26 : i32
    %864 = arith.addi %863, %c26_i32 : i32
    %865 = arith.index_cast %864 : i32 to index
    %866 = memref.load %arg3[%865] : memref<288xf32, #tpu.memory_space<smem>>
    %867 = vector.broadcast %866 : f32 to vector<2x256xf32>
    %868 = arith.mulf %861, %867 : vector<2x256xf32>
    %869 = arith.addf %836, %868 : vector<2x256xf32>
    %c1_i32_294 = arith.constant 1 : i32
    %870 = arith.addi %0, %c1_i32_294 : i32
    %c36_i32_295 = arith.constant 36 : i32
    %871 = arith.muli %870, %c36_i32_295 : i32
    %c26_i32_296 = arith.constant 26 : i32
    %872 = arith.addi %871, %c26_i32_296 : i32
    %873 = arith.index_cast %872 : i32 to index
    %874 = memref.load %arg3[%873] : memref<288xf32, #tpu.memory_space<smem>>
    %875 = vector.broadcast %874 : f32 to vector<2x256xf32>
    %876 = arith.mulf %861, %875 : vector<2x256xf32>
    %877 = arith.addf %844, %876 : vector<2x256xf32>
    %c2_i32_297 = arith.constant 2 : i32
    %878 = arith.addi %0, %c2_i32_297 : i32
    %c36_i32_298 = arith.constant 36 : i32
    %879 = arith.muli %878, %c36_i32_298 : i32
    %c26_i32_299 = arith.constant 26 : i32
    %880 = arith.addi %879, %c26_i32_299 : i32
    %881 = arith.index_cast %880 : i32 to index
    %882 = memref.load %arg3[%881] : memref<288xf32, #tpu.memory_space<smem>>
    %883 = vector.broadcast %882 : f32 to vector<2x256xf32>
    %884 = arith.mulf %861, %883 : vector<2x256xf32>
    %885 = arith.addf %852, %884 : vector<2x256xf32>
    %c3_i32_300 = arith.constant 3 : i32
    %886 = arith.addi %0, %c3_i32_300 : i32
    %c36_i32_301 = arith.constant 36 : i32
    %887 = arith.muli %886, %c36_i32_301 : i32
    %c26_i32_302 = arith.constant 26 : i32
    %888 = arith.addi %887, %c26_i32_302 : i32
    %889 = arith.index_cast %888 : i32 to index
    %890 = memref.load %arg3[%889] : memref<288xf32, #tpu.memory_space<smem>>
    %891 = vector.broadcast %890 : f32 to vector<2x256xf32>
    %892 = arith.mulf %861, %891 : vector<2x256xf32>
    %893 = arith.addf %860, %892 : vector<2x256xf32>
    %c0_303 = arith.constant 0 : index
    %c3 = arith.constant 3 : index
    %c0_304 = arith.constant 0 : index
    %894 = vector.load %arg2[%c0_303, %c3, %c0_304] : memref<2x4x290xf32, #tpu.memory_space<vmem>>, vector<2x1x290xf32>
    %895 = vector.shape_cast %894 : vector<2x1x290xf32> to vector<2x290xf32>
    %896 = vector.extract_strided_slice %895 {offsets = [0, 0], sizes = [2, 256], strides = [1, 1]} : vector<2x290xf32> to vector<2x256xf32>
    %c0_i32_305 = arith.constant 0 : i32
    %897 = arith.addi %0, %c0_i32_305 : i32
    %c36_i32_306 = arith.constant 36 : i32
    %898 = arith.muli %897, %c36_i32_306 : i32
    %c27_i32 = arith.constant 27 : i32
    %899 = arith.addi %898, %c27_i32 : i32
    %900 = arith.index_cast %899 : i32 to index
    %901 = memref.load %arg3[%900] : memref<288xf32, #tpu.memory_space<smem>>
    %902 = vector.broadcast %901 : f32 to vector<2x256xf32>
    %903 = arith.mulf %896, %902 : vector<2x256xf32>
    %904 = arith.addf %869, %903 : vector<2x256xf32>
    %c1_i32_307 = arith.constant 1 : i32
    %905 = arith.addi %0, %c1_i32_307 : i32
    %c36_i32_308 = arith.constant 36 : i32
    %906 = arith.muli %905, %c36_i32_308 : i32
    %c27_i32_309 = arith.constant 27 : i32
    %907 = arith.addi %906, %c27_i32_309 : i32
    %908 = arith.index_cast %907 : i32 to index
    %909 = memref.load %arg3[%908] : memref<288xf32, #tpu.memory_space<smem>>
    %910 = vector.broadcast %909 : f32 to vector<2x256xf32>
    %911 = arith.mulf %896, %910 : vector<2x256xf32>
    %912 = arith.addf %877, %911 : vector<2x256xf32>
    %c2_i32_310 = arith.constant 2 : i32
    %913 = arith.addi %0, %c2_i32_310 : i32
    %c36_i32_311 = arith.constant 36 : i32
    %914 = arith.muli %913, %c36_i32_311 : i32
    %c27_i32_312 = arith.constant 27 : i32
    %915 = arith.addi %914, %c27_i32_312 : i32
    %916 = arith.index_cast %915 : i32 to index
    %917 = memref.load %arg3[%916] : memref<288xf32, #tpu.memory_space<smem>>
    %918 = vector.broadcast %917 : f32 to vector<2x256xf32>
    %919 = arith.mulf %896, %918 : vector<2x256xf32>
    %920 = arith.addf %885, %919 : vector<2x256xf32>
    %c3_i32_313 = arith.constant 3 : i32
    %921 = arith.addi %0, %c3_i32_313 : i32
    %c36_i32_314 = arith.constant 36 : i32
    %922 = arith.muli %921, %c36_i32_314 : i32
    %c27_i32_315 = arith.constant 27 : i32
    %923 = arith.addi %922, %c27_i32_315 : i32
    %924 = arith.index_cast %923 : i32 to index
    %925 = memref.load %arg3[%924] : memref<288xf32, #tpu.memory_space<smem>>
    %926 = vector.broadcast %925 : f32 to vector<2x256xf32>
    %927 = arith.mulf %896, %926 : vector<2x256xf32>
    %928 = arith.addf %893, %927 : vector<2x256xf32>
    %929 = vector.extract_strided_slice %895 {offsets = [0, 1], sizes = [2, 256], strides = [1, 1]} : vector<2x290xf32> to vector<2x256xf32>
    %c0_i32_316 = arith.constant 0 : i32
    %930 = arith.addi %0, %c0_i32_316 : i32
    %c36_i32_317 = arith.constant 36 : i32
    %931 = arith.muli %930, %c36_i32_317 : i32
    %c28_i32 = arith.constant 28 : i32
    %932 = arith.addi %931, %c28_i32 : i32
    %933 = arith.index_cast %932 : i32 to index
    %934 = memref.load %arg3[%933] : memref<288xf32, #tpu.memory_space<smem>>
    %935 = vector.broadcast %934 : f32 to vector<2x256xf32>
    %936 = arith.mulf %929, %935 : vector<2x256xf32>
    %937 = arith.addf %904, %936 : vector<2x256xf32>
    %c1_i32_318 = arith.constant 1 : i32
    %938 = arith.addi %0, %c1_i32_318 : i32
    %c36_i32_319 = arith.constant 36 : i32
    %939 = arith.muli %938, %c36_i32_319 : i32
    %c28_i32_320 = arith.constant 28 : i32
    %940 = arith.addi %939, %c28_i32_320 : i32
    %941 = arith.index_cast %940 : i32 to index
    %942 = memref.load %arg3[%941] : memref<288xf32, #tpu.memory_space<smem>>
    %943 = vector.broadcast %942 : f32 to vector<2x256xf32>
    %944 = arith.mulf %929, %943 : vector<2x256xf32>
    %945 = arith.addf %912, %944 : vector<2x256xf32>
    %c2_i32_321 = arith.constant 2 : i32
    %946 = arith.addi %0, %c2_i32_321 : i32
    %c36_i32_322 = arith.constant 36 : i32
    %947 = arith.muli %946, %c36_i32_322 : i32
    %c28_i32_323 = arith.constant 28 : i32
    %948 = arith.addi %947, %c28_i32_323 : i32
    %949 = arith.index_cast %948 : i32 to index
    %950 = memref.load %arg3[%949] : memref<288xf32, #tpu.memory_space<smem>>
    %951 = vector.broadcast %950 : f32 to vector<2x256xf32>
    %952 = arith.mulf %929, %951 : vector<2x256xf32>
    %953 = arith.addf %920, %952 : vector<2x256xf32>
    %c3_i32_324 = arith.constant 3 : i32
    %954 = arith.addi %0, %c3_i32_324 : i32
    %c36_i32_325 = arith.constant 36 : i32
    %955 = arith.muli %954, %c36_i32_325 : i32
    %c28_i32_326 = arith.constant 28 : i32
    %956 = arith.addi %955, %c28_i32_326 : i32
    %957 = arith.index_cast %956 : i32 to index
    %958 = memref.load %arg3[%957] : memref<288xf32, #tpu.memory_space<smem>>
    %959 = vector.broadcast %958 : f32 to vector<2x256xf32>
    %960 = arith.mulf %929, %959 : vector<2x256xf32>
    %961 = arith.addf %928, %960 : vector<2x256xf32>
    %962 = vector.extract_strided_slice %895 {offsets = [0, 2], sizes = [2, 256], strides = [1, 1]} : vector<2x290xf32> to vector<2x256xf32>
    %c0_i32_327 = arith.constant 0 : i32
    %963 = arith.addi %0, %c0_i32_327 : i32
    %c36_i32_328 = arith.constant 36 : i32
    %964 = arith.muli %963, %c36_i32_328 : i32
    %c29_i32 = arith.constant 29 : i32
    %965 = arith.addi %964, %c29_i32 : i32
    %966 = arith.index_cast %965 : i32 to index
    %967 = memref.load %arg3[%966] : memref<288xf32, #tpu.memory_space<smem>>
    %968 = vector.broadcast %967 : f32 to vector<2x256xf32>
    %969 = arith.mulf %962, %968 : vector<2x256xf32>
    %970 = arith.addf %937, %969 : vector<2x256xf32>
    %c1_i32_329 = arith.constant 1 : i32
    %971 = arith.addi %0, %c1_i32_329 : i32
    %c36_i32_330 = arith.constant 36 : i32
    %972 = arith.muli %971, %c36_i32_330 : i32
    %c29_i32_331 = arith.constant 29 : i32
    %973 = arith.addi %972, %c29_i32_331 : i32
    %974 = arith.index_cast %973 : i32 to index
    %975 = memref.load %arg3[%974] : memref<288xf32, #tpu.memory_space<smem>>
    %976 = vector.broadcast %975 : f32 to vector<2x256xf32>
    %977 = arith.mulf %962, %976 : vector<2x256xf32>
    %978 = arith.addf %945, %977 : vector<2x256xf32>
    %c2_i32_332 = arith.constant 2 : i32
    %979 = arith.addi %0, %c2_i32_332 : i32
    %c36_i32_333 = arith.constant 36 : i32
    %980 = arith.muli %979, %c36_i32_333 : i32
    %c29_i32_334 = arith.constant 29 : i32
    %981 = arith.addi %980, %c29_i32_334 : i32
    %982 = arith.index_cast %981 : i32 to index
    %983 = memref.load %arg3[%982] : memref<288xf32, #tpu.memory_space<smem>>
    %984 = vector.broadcast %983 : f32 to vector<2x256xf32>
    %985 = arith.mulf %962, %984 : vector<2x256xf32>
    %986 = arith.addf %953, %985 : vector<2x256xf32>
    %c3_i32_335 = arith.constant 3 : i32
    %987 = arith.addi %0, %c3_i32_335 : i32
    %c36_i32_336 = arith.constant 36 : i32
    %988 = arith.muli %987, %c36_i32_336 : i32
    %c29_i32_337 = arith.constant 29 : i32
    %989 = arith.addi %988, %c29_i32_337 : i32
    %990 = arith.index_cast %989 : i32 to index
    %991 = memref.load %arg3[%990] : memref<288xf32, #tpu.memory_space<smem>>
    %992 = vector.broadcast %991 : f32 to vector<2x256xf32>
    %993 = arith.mulf %962, %992 : vector<2x256xf32>
    %994 = arith.addf %961, %993 : vector<2x256xf32>
    %995 = vector.extract_strided_slice %895 {offsets = [0, 16], sizes = [2, 256], strides = [1, 1]} : vector<2x290xf32> to vector<2x256xf32>
    %c0_i32_338 = arith.constant 0 : i32
    %996 = arith.addi %0, %c0_i32_338 : i32
    %c36_i32_339 = arith.constant 36 : i32
    %997 = arith.muli %996, %c36_i32_339 : i32
    %c30_i32 = arith.constant 30 : i32
    %998 = arith.addi %997, %c30_i32 : i32
    %999 = arith.index_cast %998 : i32 to index
    %1000 = memref.load %arg3[%999] : memref<288xf32, #tpu.memory_space<smem>>
    %1001 = vector.broadcast %1000 : f32 to vector<2x256xf32>
    %1002 = arith.mulf %995, %1001 : vector<2x256xf32>
    %1003 = arith.addf %970, %1002 : vector<2x256xf32>
    %c1_i32_340 = arith.constant 1 : i32
    %1004 = arith.addi %0, %c1_i32_340 : i32
    %c36_i32_341 = arith.constant 36 : i32
    %1005 = arith.muli %1004, %c36_i32_341 : i32
    %c30_i32_342 = arith.constant 30 : i32
    %1006 = arith.addi %1005, %c30_i32_342 : i32
    %1007 = arith.index_cast %1006 : i32 to index
    %1008 = memref.load %arg3[%1007] : memref<288xf32, #tpu.memory_space<smem>>
    %1009 = vector.broadcast %1008 : f32 to vector<2x256xf32>
    %1010 = arith.mulf %995, %1009 : vector<2x256xf32>
    %1011 = arith.addf %978, %1010 : vector<2x256xf32>
    %c2_i32_343 = arith.constant 2 : i32
    %1012 = arith.addi %0, %c2_i32_343 : i32
    %c36_i32_344 = arith.constant 36 : i32
    %1013 = arith.muli %1012, %c36_i32_344 : i32
    %c30_i32_345 = arith.constant 30 : i32
    %1014 = arith.addi %1013, %c30_i32_345 : i32
    %1015 = arith.index_cast %1014 : i32 to index
    %1016 = memref.load %arg3[%1015] : memref<288xf32, #tpu.memory_space<smem>>
    %1017 = vector.broadcast %1016 : f32 to vector<2x256xf32>
    %1018 = arith.mulf %995, %1017 : vector<2x256xf32>
    %1019 = arith.addf %986, %1018 : vector<2x256xf32>
    %c3_i32_346 = arith.constant 3 : i32
    %1020 = arith.addi %0, %c3_i32_346 : i32
    %c36_i32_347 = arith.constant 36 : i32
    %1021 = arith.muli %1020, %c36_i32_347 : i32
    %c30_i32_348 = arith.constant 30 : i32
    %1022 = arith.addi %1021, %c30_i32_348 : i32
    %1023 = arith.index_cast %1022 : i32 to index
    %1024 = memref.load %arg3[%1023] : memref<288xf32, #tpu.memory_space<smem>>
    %1025 = vector.broadcast %1024 : f32 to vector<2x256xf32>
    %1026 = arith.mulf %995, %1025 : vector<2x256xf32>
    %1027 = arith.addf %994, %1026 : vector<2x256xf32>
    %1028 = vector.extract_strided_slice %895 {offsets = [0, 17], sizes = [2, 256], strides = [1, 1]} : vector<2x290xf32> to vector<2x256xf32>
    %c0_i32_349 = arith.constant 0 : i32
    %1029 = arith.addi %0, %c0_i32_349 : i32
    %c36_i32_350 = arith.constant 36 : i32
    %1030 = arith.muli %1029, %c36_i32_350 : i32
    %c31_i32 = arith.constant 31 : i32
    %1031 = arith.addi %1030, %c31_i32 : i32
    %1032 = arith.index_cast %1031 : i32 to index
    %1033 = memref.load %arg3[%1032] : memref<288xf32, #tpu.memory_space<smem>>
    %1034 = vector.broadcast %1033 : f32 to vector<2x256xf32>
    %1035 = arith.mulf %1028, %1034 : vector<2x256xf32>
    %1036 = arith.addf %1003, %1035 : vector<2x256xf32>
    %c1_i32_351 = arith.constant 1 : i32
    %1037 = arith.addi %0, %c1_i32_351 : i32
    %c36_i32_352 = arith.constant 36 : i32
    %1038 = arith.muli %1037, %c36_i32_352 : i32
    %c31_i32_353 = arith.constant 31 : i32
    %1039 = arith.addi %1038, %c31_i32_353 : i32
    %1040 = arith.index_cast %1039 : i32 to index
    %1041 = memref.load %arg3[%1040] : memref<288xf32, #tpu.memory_space<smem>>
    %1042 = vector.broadcast %1041 : f32 to vector<2x256xf32>
    %1043 = arith.mulf %1028, %1042 : vector<2x256xf32>
    %1044 = arith.addf %1011, %1043 : vector<2x256xf32>
    %c2_i32_354 = arith.constant 2 : i32
    %1045 = arith.addi %0, %c2_i32_354 : i32
    %c36_i32_355 = arith.constant 36 : i32
    %1046 = arith.muli %1045, %c36_i32_355 : i32
    %c31_i32_356 = arith.constant 31 : i32
    %1047 = arith.addi %1046, %c31_i32_356 : i32
    %1048 = arith.index_cast %1047 : i32 to index
    %1049 = memref.load %arg3[%1048] : memref<288xf32, #tpu.memory_space<smem>>
    %1050 = vector.broadcast %1049 : f32 to vector<2x256xf32>
    %1051 = arith.mulf %1028, %1050 : vector<2x256xf32>
    %1052 = arith.addf %1019, %1051 : vector<2x256xf32>
    %c3_i32_357 = arith.constant 3 : i32
    %1053 = arith.addi %0, %c3_i32_357 : i32
    %c36_i32_358 = arith.constant 36 : i32
    %1054 = arith.muli %1053, %c36_i32_358 : i32
    %c31_i32_359 = arith.constant 31 : i32
    %1055 = arith.addi %1054, %c31_i32_359 : i32
    %1056 = arith.index_cast %1055 : i32 to index
    %1057 = memref.load %arg3[%1056] : memref<288xf32, #tpu.memory_space<smem>>
    %1058 = vector.broadcast %1057 : f32 to vector<2x256xf32>
    %1059 = arith.mulf %1028, %1058 : vector<2x256xf32>
    %1060 = arith.addf %1027, %1059 : vector<2x256xf32>
    %1061 = vector.extract_strided_slice %895 {offsets = [0, 18], sizes = [2, 256], strides = [1, 1]} : vector<2x290xf32> to vector<2x256xf32>
    %c0_i32_360 = arith.constant 0 : i32
    %1062 = arith.addi %0, %c0_i32_360 : i32
    %c36_i32_361 = arith.constant 36 : i32
    %1063 = arith.muli %1062, %c36_i32_361 : i32
    %c32_i32 = arith.constant 32 : i32
    %1064 = arith.addi %1063, %c32_i32 : i32
    %1065 = arith.index_cast %1064 : i32 to index
    %1066 = memref.load %arg3[%1065] : memref<288xf32, #tpu.memory_space<smem>>
    %1067 = vector.broadcast %1066 : f32 to vector<2x256xf32>
    %1068 = arith.mulf %1061, %1067 : vector<2x256xf32>
    %1069 = arith.addf %1036, %1068 : vector<2x256xf32>
    %c1_i32_362 = arith.constant 1 : i32
    %1070 = arith.addi %0, %c1_i32_362 : i32
    %c36_i32_363 = arith.constant 36 : i32
    %1071 = arith.muli %1070, %c36_i32_363 : i32
    %c32_i32_364 = arith.constant 32 : i32
    %1072 = arith.addi %1071, %c32_i32_364 : i32
    %1073 = arith.index_cast %1072 : i32 to index
    %1074 = memref.load %arg3[%1073] : memref<288xf32, #tpu.memory_space<smem>>
    %1075 = vector.broadcast %1074 : f32 to vector<2x256xf32>
    %1076 = arith.mulf %1061, %1075 : vector<2x256xf32>
    %1077 = arith.addf %1044, %1076 : vector<2x256xf32>
    %c2_i32_365 = arith.constant 2 : i32
    %1078 = arith.addi %0, %c2_i32_365 : i32
    %c36_i32_366 = arith.constant 36 : i32
    %1079 = arith.muli %1078, %c36_i32_366 : i32
    %c32_i32_367 = arith.constant 32 : i32
    %1080 = arith.addi %1079, %c32_i32_367 : i32
    %1081 = arith.index_cast %1080 : i32 to index
    %1082 = memref.load %arg3[%1081] : memref<288xf32, #tpu.memory_space<smem>>
    %1083 = vector.broadcast %1082 : f32 to vector<2x256xf32>
    %1084 = arith.mulf %1061, %1083 : vector<2x256xf32>
    %1085 = arith.addf %1052, %1084 : vector<2x256xf32>
    %c3_i32_368 = arith.constant 3 : i32
    %1086 = arith.addi %0, %c3_i32_368 : i32
    %c36_i32_369 = arith.constant 36 : i32
    %1087 = arith.muli %1086, %c36_i32_369 : i32
    %c32_i32_370 = arith.constant 32 : i32
    %1088 = arith.addi %1087, %c32_i32_370 : i32
    %1089 = arith.index_cast %1088 : i32 to index
    %1090 = memref.load %arg3[%1089] : memref<288xf32, #tpu.memory_space<smem>>
    %1091 = vector.broadcast %1090 : f32 to vector<2x256xf32>
    %1092 = arith.mulf %1061, %1091 : vector<2x256xf32>
    %1093 = arith.addf %1060, %1092 : vector<2x256xf32>
    %1094 = vector.extract_strided_slice %895 {offsets = [0, 32], sizes = [2, 256], strides = [1, 1]} : vector<2x290xf32> to vector<2x256xf32>
    %c0_i32_371 = arith.constant 0 : i32
    %1095 = arith.addi %0, %c0_i32_371 : i32
    %c36_i32_372 = arith.constant 36 : i32
    %1096 = arith.muli %1095, %c36_i32_372 : i32
    %c33_i32 = arith.constant 33 : i32
    %1097 = arith.addi %1096, %c33_i32 : i32
    %1098 = arith.index_cast %1097 : i32 to index
    %1099 = memref.load %arg3[%1098] : memref<288xf32, #tpu.memory_space<smem>>
    %1100 = vector.broadcast %1099 : f32 to vector<2x256xf32>
    %1101 = arith.mulf %1094, %1100 : vector<2x256xf32>
    %1102 = arith.addf %1069, %1101 : vector<2x256xf32>
    %c1_i32_373 = arith.constant 1 : i32
    %1103 = arith.addi %0, %c1_i32_373 : i32
    %c36_i32_374 = arith.constant 36 : i32
    %1104 = arith.muli %1103, %c36_i32_374 : i32
    %c33_i32_375 = arith.constant 33 : i32
    %1105 = arith.addi %1104, %c33_i32_375 : i32
    %1106 = arith.index_cast %1105 : i32 to index
    %1107 = memref.load %arg3[%1106] : memref<288xf32, #tpu.memory_space<smem>>
    %1108 = vector.broadcast %1107 : f32 to vector<2x256xf32>
    %1109 = arith.mulf %1094, %1108 : vector<2x256xf32>
    %1110 = arith.addf %1077, %1109 : vector<2x256xf32>
    %c2_i32_376 = arith.constant 2 : i32
    %1111 = arith.addi %0, %c2_i32_376 : i32
    %c36_i32_377 = arith.constant 36 : i32
    %1112 = arith.muli %1111, %c36_i32_377 : i32
    %c33_i32_378 = arith.constant 33 : i32
    %1113 = arith.addi %1112, %c33_i32_378 : i32
    %1114 = arith.index_cast %1113 : i32 to index
    %1115 = memref.load %arg3[%1114] : memref<288xf32, #tpu.memory_space<smem>>
    %1116 = vector.broadcast %1115 : f32 to vector<2x256xf32>
    %1117 = arith.mulf %1094, %1116 : vector<2x256xf32>
    %1118 = arith.addf %1085, %1117 : vector<2x256xf32>
    %c3_i32_379 = arith.constant 3 : i32
    %1119 = arith.addi %0, %c3_i32_379 : i32
    %c36_i32_380 = arith.constant 36 : i32
    %1120 = arith.muli %1119, %c36_i32_380 : i32
    %c33_i32_381 = arith.constant 33 : i32
    %1121 = arith.addi %1120, %c33_i32_381 : i32
    %1122 = arith.index_cast %1121 : i32 to index
    %1123 = memref.load %arg3[%1122] : memref<288xf32, #tpu.memory_space<smem>>
    %1124 = vector.broadcast %1123 : f32 to vector<2x256xf32>
    %1125 = arith.mulf %1094, %1124 : vector<2x256xf32>
    %1126 = arith.addf %1093, %1125 : vector<2x256xf32>
    %1127 = vector.extract_strided_slice %895 {offsets = [0, 33], sizes = [2, 256], strides = [1, 1]} : vector<2x290xf32> to vector<2x256xf32>
    %c0_i32_382 = arith.constant 0 : i32
    %1128 = arith.addi %0, %c0_i32_382 : i32
    %c36_i32_383 = arith.constant 36 : i32
    %1129 = arith.muli %1128, %c36_i32_383 : i32
    %c34_i32 = arith.constant 34 : i32
    %1130 = arith.addi %1129, %c34_i32 : i32
    %1131 = arith.index_cast %1130 : i32 to index
    %1132 = memref.load %arg3[%1131] : memref<288xf32, #tpu.memory_space<smem>>
    %1133 = vector.broadcast %1132 : f32 to vector<2x256xf32>
    %1134 = arith.mulf %1127, %1133 : vector<2x256xf32>
    %1135 = arith.addf %1102, %1134 : vector<2x256xf32>
    %c1_i32_384 = arith.constant 1 : i32
    %1136 = arith.addi %0, %c1_i32_384 : i32
    %c36_i32_385 = arith.constant 36 : i32
    %1137 = arith.muli %1136, %c36_i32_385 : i32
    %c34_i32_386 = arith.constant 34 : i32
    %1138 = arith.addi %1137, %c34_i32_386 : i32
    %1139 = arith.index_cast %1138 : i32 to index
    %1140 = memref.load %arg3[%1139] : memref<288xf32, #tpu.memory_space<smem>>
    %1141 = vector.broadcast %1140 : f32 to vector<2x256xf32>
    %1142 = arith.mulf %1127, %1141 : vector<2x256xf32>
    %1143 = arith.addf %1110, %1142 : vector<2x256xf32>
    %c2_i32_387 = arith.constant 2 : i32
    %1144 = arith.addi %0, %c2_i32_387 : i32
    %c36_i32_388 = arith.constant 36 : i32
    %1145 = arith.muli %1144, %c36_i32_388 : i32
    %c34_i32_389 = arith.constant 34 : i32
    %1146 = arith.addi %1145, %c34_i32_389 : i32
    %1147 = arith.index_cast %1146 : i32 to index
    %1148 = memref.load %arg3[%1147] : memref<288xf32, #tpu.memory_space<smem>>
    %1149 = vector.broadcast %1148 : f32 to vector<2x256xf32>
    %1150 = arith.mulf %1127, %1149 : vector<2x256xf32>
    %1151 = arith.addf %1118, %1150 : vector<2x256xf32>
    %c3_i32_390 = arith.constant 3 : i32
    %1152 = arith.addi %0, %c3_i32_390 : i32
    %c36_i32_391 = arith.constant 36 : i32
    %1153 = arith.muli %1152, %c36_i32_391 : i32
    %c34_i32_392 = arith.constant 34 : i32
    %1154 = arith.addi %1153, %c34_i32_392 : i32
    %1155 = arith.index_cast %1154 : i32 to index
    %1156 = memref.load %arg3[%1155] : memref<288xf32, #tpu.memory_space<smem>>
    %1157 = vector.broadcast %1156 : f32 to vector<2x256xf32>
    %1158 = arith.mulf %1127, %1157 : vector<2x256xf32>
    %1159 = arith.addf %1126, %1158 : vector<2x256xf32>
    %1160 = vector.extract_strided_slice %895 {offsets = [0, 34], sizes = [2, 256], strides = [1, 1]} : vector<2x290xf32> to vector<2x256xf32>
    %c0_i32_393 = arith.constant 0 : i32
    %1161 = arith.addi %0, %c0_i32_393 : i32
    %c36_i32_394 = arith.constant 36 : i32
    %1162 = arith.muli %1161, %c36_i32_394 : i32
    %c35_i32 = arith.constant 35 : i32
    %1163 = arith.addi %1162, %c35_i32 : i32
    %1164 = arith.index_cast %1163 : i32 to index
    %1165 = memref.load %arg3[%1164] : memref<288xf32, #tpu.memory_space<smem>>
    %1166 = vector.broadcast %1165 : f32 to vector<2x256xf32>
    %1167 = arith.mulf %1160, %1166 : vector<2x256xf32>
    %1168 = arith.addf %1135, %1167 : vector<2x256xf32>
    %c1_i32_395 = arith.constant 1 : i32
    %1169 = arith.addi %0, %c1_i32_395 : i32
    %c36_i32_396 = arith.constant 36 : i32
    %1170 = arith.muli %1169, %c36_i32_396 : i32
    %c35_i32_397 = arith.constant 35 : i32
    %1171 = arith.addi %1170, %c35_i32_397 : i32
    %1172 = arith.index_cast %1171 : i32 to index
    %1173 = memref.load %arg3[%1172] : memref<288xf32, #tpu.memory_space<smem>>
    %1174 = vector.broadcast %1173 : f32 to vector<2x256xf32>
    %1175 = arith.mulf %1160, %1174 : vector<2x256xf32>
    %1176 = arith.addf %1143, %1175 : vector<2x256xf32>
    %c2_i32_398 = arith.constant 2 : i32
    %1177 = arith.addi %0, %c2_i32_398 : i32
    %c36_i32_399 = arith.constant 36 : i32
    %1178 = arith.muli %1177, %c36_i32_399 : i32
    %c35_i32_400 = arith.constant 35 : i32
    %1179 = arith.addi %1178, %c35_i32_400 : i32
    %1180 = arith.index_cast %1179 : i32 to index
    %1181 = memref.load %arg3[%1180] : memref<288xf32, #tpu.memory_space<smem>>
    %1182 = vector.broadcast %1181 : f32 to vector<2x256xf32>
    %1183 = arith.mulf %1160, %1182 : vector<2x256xf32>
    %1184 = arith.addf %1151, %1183 : vector<2x256xf32>
    %c3_i32_401 = arith.constant 3 : i32
    %1185 = arith.addi %0, %c3_i32_401 : i32
    %c36_i32_402 = arith.constant 36 : i32
    %1186 = arith.muli %1185, %c36_i32_402 : i32
    %c35_i32_403 = arith.constant 35 : i32
    %1187 = arith.addi %1186, %c35_i32_403 : i32
    %1188 = arith.index_cast %1187 : i32 to index
    %1189 = memref.load %arg3[%1188] : memref<288xf32, #tpu.memory_space<smem>>
    %1190 = vector.broadcast %1189 : f32 to vector<2x256xf32>
    %1191 = arith.mulf %1160, %1190 : vector<2x256xf32>
    %1192 = arith.addf %1159, %1191 : vector<2x256xf32>
    %c0_i32_404 = arith.constant 0 : i32
    %1193 = arith.addi %0, %c0_i32_404 : i32
    %1194 = arith.index_cast %1193 : i32 to index
    %1195 = memref.load %arg4[%1194] : memref<8xf32, #tpu.memory_space<smem>>
    %1196 = vector.broadcast %1195 : f32 to vector<2x256xf32>
    %1197 = arith.addf %1168, %1196 : vector<2x256xf32>
    %c0_405 = arith.constant 0 : index
    %c0_406 = arith.constant 0 : index
    %c0_407 = arith.constant 0 : index
    %c0_408 = arith.constant 0 : index
    %1198 = vector.load %arg5[%c0_405, %c0_406, %c0_407, %c0_408] : memref<2x1x4x256xf32, #tpu.memory_space<vmem>>, vector<2x1x1x256xf32>
    %1199 = vector.shape_cast %1198 : vector<2x1x1x256xf32> to vector<2x256xf32>
    %1200 = vector.shape_cast %1197 : vector<2x256xf32> to vector<2x1x1x256xf32>
    tpu.vector_store %arg5[%c0_405, %c0_406, %c0_407, %c0_408], %1200 {strides = array<i32>} : memref<2x1x4x256xf32, #tpu.memory_space<vmem>>, vector<2x1x1x256xf32>,
    %c1_i32_409 = arith.constant 1 : i32
    %1201 = arith.addi %0, %c1_i32_409 : i32
    %1202 = arith.index_cast %1201 : i32 to index
    %1203 = memref.load %arg4[%1202] : memref<8xf32, #tpu.memory_space<smem>>
    %1204 = vector.broadcast %1203 : f32 to vector<2x256xf32>
    %1205 = arith.addf %1176, %1204 : vector<2x256xf32>
    %c0_410 = arith.constant 0 : index
    %c0_411 = arith.constant 0 : index
    %c1_412 = arith.constant 1 : index
    %c0_413 = arith.constant 0 : index
    %1206 = vector.load %arg5[%c0_410, %c0_411, %c1_412, %c0_413] : memref<2x1x4x256xf32, #tpu.memory_space<vmem>>, vector<2x1x1x256xf32>
    %1207 = vector.shape_cast %1206 : vector<2x1x1x256xf32> to vector<2x256xf32>
    %1208 = vector.shape_cast %1205 : vector<2x256xf32> to vector<2x1x1x256xf32>
    tpu.vector_store %arg5[%c0_410, %c0_411, %c1_412, %c0_413], %1208 {strides = array<i32>} : memref<2x1x4x256xf32, #tpu.memory_space<vmem>>, vector<2x1x1x256xf32>,
    %c2_i32_414 = arith.constant 2 : i32
    %1209 = arith.addi %0, %c2_i32_414 : i32
    %1210 = arith.index_cast %1209 : i32 to index
    %1211 = memref.load %arg4[%1210] : memref<8xf32, #tpu.memory_space<smem>>
    %1212 = vector.broadcast %1211 : f32 to vector<2x256xf32>
    %1213 = arith.addf %1184, %1212 : vector<2x256xf32>
    %c0_415 = arith.constant 0 : index
    %c0_416 = arith.constant 0 : index
    %c2_417 = arith.constant 2 : index
    %c0_418 = arith.constant 0 : index
    %1214 = vector.load %arg5[%c0_415, %c0_416, %c2_417, %c0_418] : memref<2x1x4x256xf32, #tpu.memory_space<vmem>>, vector<2x1x1x256xf32>
    %1215 = vector.shape_cast %1214 : vector<2x1x1x256xf32> to vector<2x256xf32>
    %1216 = vector.shape_cast %1213 : vector<2x256xf32> to vector<2x1x1x256xf32>
    tpu.vector_store %arg5[%c0_415, %c0_416, %c2_417, %c0_418], %1216 {strides = array<i32>} : memref<2x1x4x256xf32, #tpu.memory_space<vmem>>, vector<2x1x1x256xf32>,
    %c3_i32_419 = arith.constant 3 : i32
    %1217 = arith.addi %0, %c3_i32_419 : i32
    %1218 = arith.index_cast %1217 : i32 to index
    %1219 = memref.load %arg4[%1218] : memref<8xf32, #tpu.memory_space<smem>>
    %1220 = vector.broadcast %1219 : f32 to vector<2x256xf32>
    %1221 = arith.addf %1192, %1220 : vector<2x256xf32>
    %c0_420 = arith.constant 0 : index
    %c0_421 = arith.constant 0 : index
    %c3_422 = arith.constant 3 : index
    %c0_423 = arith.constant 0 : index
    %1222 = vector.load %arg5[%c0_420, %c0_421, %c3_422, %c0_423] : memref<2x1x4x256xf32, #tpu.memory_space<vmem>>, vector<2x1x1x256xf32>
    %1223 = vector.shape_cast %1222 : vector<2x1x1x256xf32> to vector<2x256xf32>
    %1224 = vector.shape_cast %1221 : vector<2x256xf32> to vector<2x1x1x256xf32>
    tpu.vector_store %arg5[%c0_420, %c0_421, %c3_422, %c0_423], %1224 {strides = array<i32>} : memref<2x1x4x256xf32, #tpu.memory_space<vmem>>, vector<2x1x1x256xf32>,
    return
  }
  func.func @transform_0(%arg0: i32, %arg1: i32) -> (i32, i32, i32) {
    %c0_i32 = arith.constant 0 : i32
    %c0_i32_0 = arith.constant 0 : i32
    %c0_i32_1 = arith.constant 0 : i32
    return %arg0, %c0_i32, %c0_i32_0 : i32, i32, i32
  }
  func.func @transform_1(%arg0: i32, %arg1: i32) -> i32 {
    %c0_i32 = arith.constant 0 : i32
    %c0_i32_0 = arith.constant 0 : i32
    return %c0_i32 : i32
  }
  func.func @transform_2(%arg0: i32, %arg1: i32) -> i32 {
    %c0_i32 = arith.constant 0 : i32
    %c0_i32_0 = arith.constant 0 : i32
    return %c0_i32 : i32
  }
  func.func @transform_3(%arg0: i32, %arg1: i32) -> (i32, i32, i32, i32) {
    %c0_i32 = arith.constant 0 : i32
    %c0_i32_0 = arith.constant 0 : i32
    %c0_i32_1 = arith.constant 0 : i32
    return %arg0, %arg1, %c0_i32, %c0_i32_0 : i32, i32, i32, i32
  }
}

</mosaic_0001>

<llo_original>
// kernel: randconcat_conv2d_v2_forward.1
$region0: #{randconcat_conv2d_v2_forward.1}
  #allocation0 [shape = 'u32[]', space=smem, size = 0x4, offset = 0x4, fixed_abs, tag = 'smem constant byte address 0x4 - core index']
  #allocation1 [shape = 'u32[144,128]{1,0:T(1,128)}', space=vmem, size = 0x12000, scoped, tag = 'internal scratch']
  %s0 = inlined_call_operand.vmem [shape: f32[2,4,290], index: 0, kind: input, shape index: {}]
  %s1 = inlined_call_operand.vmem [shape: f32[288], index: 1, kind: input, shape index: {}]
  %s2 = inlined_call_operand.vmem [shape: f32[8], index: 2, kind: input, shape index: {}]
  %s3 = inlined_call_operand.vmem [shape: f32[2,2,4,256], index: 3, kind: output, shape index: {}]
  %s4 = sld [smem:[#allocation0]]
  $region87: #{randconcat_conv2d_v2_forward.1} parent=0
    _
  %s6 = ssub.s32 1, %s4
  %s7 = scalar_select 0, %s6, %s4
  $region1: #{randconcat_conv2d_v2_forward.1} parent=0
    #allocation2 [shape = 'u8[1536]{0}', space=smem, size = 0x600, scoped, tag = 'input window, operand 1, single buffered']
    #allocation3 [shape = 's32[2]{0}', space=sflag, size = 0x8, scoped, tag = 'scoped memory for randconcat_conv2d_v2_forward.1']
    #allocation4 [shape = 'u8[512]{0}', space=smem, size = 0x200, scoped, tag = 'input window, operand 2, single buffered']
    #allocation5 [shape = 's32[1]{0}', space=sflag, size = 0x4, scoped, tag = 'scoped memory for randconcat_conv2d_v2_forward.1']
    #allocation6 [shape = 'u8[16384]{0}', space=vmem, size = 0x4000, scoped, tag = 'output window, operand 0']
    %8 = vsyncpa [#allocation3], 0
    %9 = vsyncpa [#allocation5], 0
    loop: start=0, step=1, limit=4
    $region2: #{randconcat_conv2d_v2_forward.1} parent=1 // loop_pre_header
      _
    $region3: #{randconcat_conv2d_v2_forward.1} parent=1 // loop_header
      %s11 = sphi 0, %s15
      %p12 = scmp.ge.s32.totalorder %s11, 4
      %s18 = sphi 0, %s30
      %s19 = sphi 0, %s26
      %s20 = sphi 0, %s18
      %s21 = sphi 0, %s19
      %s22 = sphi 0, %s20
      %s23 = sphi 0, %s21
      %s33 = sphi 0, %s35
      %s36 = sphi 0, %s33
      %s37 = sphi 0, %s36
      %s53 = sphi 0, %s37
      %s57 = sphi 0, %s57
      %s59 = sphi 0, %s57
      %s60 = sphi 0, %s59
      %s74 = sphi 0, %s60
      %s78 = sphi 0, %s78
      %s80 = sphi 0, %s78
      %s81 = sphi 0, %s80
      %s95 = sphi 0, %s81
      %s103 = sphi 0, %s105
      %s106 = sphi 0, %s103
      %s107 = sphi 0, %s106
      %s123 = sphi 0, %s107
    $region4: #{randconcat_conv2d_v2_forward.1} parent=1 // loop_header_branch
      %14 = sbr.rel (%p12) target = $region8
    $region5: #{randconcat_conv2d_v2_forward.1} parent=1 // loop_body
      %s16 = ssub.s32 %s11, 1
      %s17 = ssub.s32 %s11, 2
      %s24 = sadd.s32 1, %s19
      %p25 = scmp.ge.s32.totalorder %s24, 2
      %s26 = scalar_select %p25, 0, %s24
      %s27 = sadd.s32 1, %s18
      %s28 = scalar_select %p25, %s27, %s18
      %p29 = scmp.ge.s32.totalorder %s28, 1
      %s30 = scalar_select %p29, 0, %s28
      %s31 = ssub.s32 %s18, %s30
      %p32 = scmp.eq.s32.totalorder %s31, 0
      %s34 = sadd.s32 %s33, 1
      %s35 = scalar_select %p32, %s33, %s34
      %p38 = pneg %p32
      %p39 = scmp.eq.s32.totalorder %s11, 1
      %p40 = por %p38, %p39
      %p41 = scmp.ne.s32.totalorder %s33, %s36
      %p42 = scmp.eq.s32.totalorder %s11, 0
      %p43 = por %p41, %p42
      %p44 = scmp.ne.s32.totalorder %s33, %s36
      %p45 = scmp.eq.s32.totalorder %s16, 1
      %p46 = por %p44, %p45
      %p47 = scmp.ne.s32.totalorder %s36, %s37
      %p48 = scmp.eq.s32.totalorder %s16, 0
      %p49 = por %p47, %p48
      %p50 = scmp.ne.s32.totalorder %s36, %s37
      %p51 = scmp.eq.s32.totalorder %s17, 1
      %p52 = por %p50, %p51
      %p54 = scmp.ne.s32.totalorder %s37, %s53
      %p55 = scmp.eq.s32.totalorder %s17, 0
      %p56 = por %p54, %p55
      %s58 = sadd.s32 %s57, 1
      %p61 = scmp.eq.s32.totalorder %s11, 1
      %p62 = scmp.ne.s32.totalorder %s57, %s59
      %p63 = scmp.eq.s32.totalorder %s11, 0
      %p64 = por %p62, %p63
      %p65 = scmp.ne.s32.totalorder %s57, %s59
      %p66 = scmp.eq.s32.totalorder %s16, 1
      %p67 = por %p65, %p66
      %p68 = scmp.ne.s32.totalorder %s59, %s60
      %p69 = scmp.eq.s32.totalorder %s16, 0
      %p70 = por %p68, %p69
      %p71 = scmp.ne.s32.totalorder %s59, %s60
      %p72 = scmp.eq.s32.totalorder %s17, 1
      %p73 = por %p71, %p72
      %p75 = scmp.ne.s32.totalorder %s60, %s74
      %p76 = scmp.eq.s32.totalorder %s17, 0
      %p77 = por %p75, %p76
      %s79 = sadd.s32 %s78, 1
      %p82 = scmp.eq.s32.totalorder %s11, 1
      %p83 = scmp.ne.s32.totalorder %s78, %s80
      %p84 = scmp.eq.s32.totalorder %s11, 0
      %p85 = por %p83, %p84
      %p86 = scmp.ne.s32.totalorder %s78, %s80
      %p87 = scmp.eq.s32.totalorder %s16, 1
      %p88 = por %p86, %p87
      %p89 = scmp.ne.s32.totalorder %s80, %s81
      %p90 = scmp.eq.s32.totalorder %s16, 0
      %p91 = por %p89, %p90
      %p92 = scmp.ne.s32.totalorder %s80, %s81
      %p93 = scmp.eq.s32.totalorder %s17, 1
      %p94 = por %p92, %p93
      %p96 = scmp.ne.s32.totalorder %s81, %s95
      %p97 = scmp.eq.s32.totalorder %s17, 0
      %p98 = por %p96, %p97
      %s99 = ssub.s32 %s18, %s30
      %s100 = ssub.s32 %s19, %s26
      %s101 = sor.u32 %s99, %s100
      %p102 = scmp.eq.s32.totalorder %s101, 0
      %s104 = sadd.s32 %s103, 1
      %s105 = scalar_select %p102, %s103, %s104
      %p108 = pneg %p102
      %p109 = scmp.eq.s32.totalorder %s11, 1
      %p110 = por %p108, %p109
      %p111 = scmp.ne.s32.totalorder %s103, %s106
      %p112 = scmp.eq.s32.totalorder %s11, 0
      %p113 = por %p111, %p112
      %p114 = scmp.ne.s32.totalorder %s103, %s106
      %p115 = scmp.eq.s32.totalorder %s16, 1
      %p116 = por %p114, %p115
      %p117 = scmp.ne.s32.totalorder %s106, %s107
      %p118 = scmp.eq.s32.totalorder %s16, 0
      %p119 = por %p117, %p118
      %p120 = scmp.ne.s32.totalorder %s106, %s107
      %p121 = scmp.eq.s32.totalorder %s17, 1
      %p122 = por %p120, %p121
      %p124 = scmp.ne.s32.totalorder %s107, %s123
      %p125 = scmp.eq.s32.totalorder %s17, 0
      %p126 = por %p124, %p125
      %p127 = scmp.le.s32.totalorder 1, %s11
      %p128 = scmp.lt.s32.totalorder %s11, 3
      %p129 = pnand %p127, %p128
      %p130 = pneg %p129
      // Predicated region
      $region9: #{randconcat_conv2d_v2_forward.1} parent=5 // pred_check
        _
      $region10: #{randconcat_conv2d_v2_forward.1} parent=5 // pred_check_branch
        %132 = sbr.rel (%p129) target = $region12
      $region11: #{randconcat_conv2d_v2_forward.1} parent=5 // pred_region
        %s133 = ssub.s32 %s11, 1
        // Predicated region
        $region13: #{randconcat_conv2d_v2_forward.1} parent=11 // pred_check
          %p134 = pneg %p49
        $region14: #{randconcat_conv2d_v2_forward.1} parent=11 // pred_check_branch
          %136 = sbr.rel (%p134) target = $region16
        $region15: #{randconcat_conv2d_v2_forward.1} parent=11 // pred_region
          %s137 = smul.u32 2, %s20
          %p138 = scmp.lt.s32.totalorder %s137, 1
          %s139 = scalar_select %p138, %s137, 1
          %s140 = smul.addr %s139, 3
          %s141 = smul.addr %s140, 4
          %s142 = scalar_lea.vmem %s0, %s141
          %s143 = smul.u32 2, %s20
        $region16: #{randconcat_conv2d_v2_forward.1} parent=11 // pred_fallthru
          _
        // Predicated region
        $region17: #{randconcat_conv2d_v2_forward.1} parent=11 // pred_check
          %p144 = pneg %p70
        $region18: #{randconcat_conv2d_v2_forward.1} parent=11 // pred_check_branch
          %146 = sbr.rel (%p144) target = $region20
        $region19: #{randconcat_conv2d_v2_forward.1} parent=11 // pred_region
          %s148 = ssub.s32 48, 48
          %149 = vsyncadd [#allocation3], %s148
          %s151 = sshll.u32 %s1, 4
          %s152 = int_to_ptr.vmem [resolvable:$true] %s151
          %154 = dma.vmem_to_smem %s152, 48, [#allocation2], [#allocation3]
        $region20: #{randconcat_conv2d_v2_forward.1} parent=11 // pred_fallthru
          _
        // Predicated region
        $region21: #{randconcat_conv2d_v2_forward.1} parent=11 // pred_check
          %p155 = pneg %p91
        $region22: #{randconcat_conv2d_v2_forward.1} parent=11 // pred_check_branch
          %157 = sbr.rel (%p155) target = $region24
        $region23: #{randconcat_conv2d_v2_forward.1} parent=11 // pred_region
          %s159 = ssub.s32 16, 16
          %160 = vsyncadd [#allocation5], %s159
          %s162 = sshll.u32 %s2, 4
          %s163 = int_to_ptr.vmem [resolvable:$true] %s162
          %165 = dma.vmem_to_smem %s163, 16, [#allocation4], [#allocation5]
        $region24: #{randconcat_conv2d_v2_forward.1} parent=11 // pred_fallthru
          _
      $region12: #{randconcat_conv2d_v2_forward.1} parent=5 // pred_fallthru
        _
      %p166 = scmp.lt.s32.totalorder %s11, 2
      // Predicated region
      $region25: #{randconcat_conv2d_v2_forward.1} parent=5 // pred_check
        %p167 = pneg %p166
      $region26: #{randconcat_conv2d_v2_forward.1} parent=5 // pred_check_branch
        %169 = sbr.rel (%p167) target = $region28
      $region27: #{randconcat_conv2d_v2_forward.1} parent=5 // pred_region
        _
      $region28: #{randconcat_conv2d_v2_forward.1} parent=5 // pred_fallthru
        _
      %p170 = scmp.le.s32.totalorder 1, %s11
      %p171 = scmp.lt.s32.totalorder %s11, 3
      %p172 = pnand %p170, %p171
      %p173 = pneg %p172
      // Predicated region
      $region29: #{randconcat_conv2d_v2_forward.1} parent=5 // pred_check
        _
      $region30: #{randconcat_conv2d_v2_forward.1} parent=5 // pred_check_branch
        %175 = sbr.rel (%p172) target = $region32
      $region31: #{randconcat_conv2d_v2_forward.1} parent=5 // pred_region
        %s176 = ssub.s32 %s11, 1
        // Predicated region
        $region33: #{randconcat_conv2d_v2_forward.1} parent=31 // pred_check
          %p177 = pneg %p70
        $region34: #{randconcat_conv2d_v2_forward.1} parent=31 // pred_check_branch
          %179 = sbr.rel (%p177) target = $region36
        $region35: #{randconcat_conv2d_v2_forward.1} parent=31 // pred_region
          %180 = dma.done [#allocation3], 48
        $region36: #{randconcat_conv2d_v2_forward.1} parent=31 // pred_fallthru
          _
        // Predicated region
        $region37: #{randconcat_conv2d_v2_forward.1} parent=31 // pred_check
          %p181 = pneg %p91
        $region38: #{randconcat_conv2d_v2_forward.1} parent=31 // pred_check_branch
          %183 = sbr.rel (%p181) target = $region40
        $region39: #{randconcat_conv2d_v2_forward.1} parent=31 // pred_region
          %184 = dma.done [#allocation5], 16
        $region40: #{randconcat_conv2d_v2_forward.1} parent=31 // pred_fallthru
          _
        %185 = sfence
        %s186 = smul.u32 2, %s20
        %p187 = scmp.lt.s32.totalorder %s186, 1
        %s188 = scalar_select %p187, %s186, 1
        %s189 = smul.addr %s188, 3
        %s190 = smul.addr %s189, 4
        %s191 = scalar_lea.vmem %s0, %s190
        %p192 = pneg %p49
        %p193 = pneg %p46
        %p194 = pneg %p70
        %p195 = pneg %p67
        %p196 = pneg %p91
        %p197 = pneg %p88
        %p198 = pneg %p119
        %p199 = pneg %p116
        %s200 = sand.u32 %s106, 1
        %s201 = sand.u32 %s106, 1
        %s202 = smul.addr %s201, 16
        %s203 = scalar_lea.vmem [#allocation6], %s202
        %s204 = smul.u32 2, %s20
        %p205 = scmp.lt.s32.totalorder %s204, 1
        %s206 = scalar_select %p205, %s204, 1
        %s207 = smul.addr %s206, 3
        %s208 = smul.addr %s207, 4
        %s209 = scalar_lea.vmem %s0, %s208
        %s210 = smul.u32 2, %s20
        %s211 = smul.u32 2, %s20
        %s212 = smul.u32 %s21, 4
        %v213 = vld [vmem:[%s209] ss:$4 sm:$0x7]
        %s214 = scalar_lea.vmem %s209, 12
        %v215 = vld [vmem:[%s214] ss:$4 sm:$0x7]
        %s216 = smul.u32 %s21, 144
        %s217 = sld [smem:[#allocation2 + %s216]]
        %v218 = vstv %s217
        %v219 = vmul.f32 %v213, %v218
        %v220 = vmul.f32 %v215, %v218
        %s221 = sadd.s32 %s212, 1
        %s222 = smul.u32 %s221, 36
        %s223 = sld [smem:[#allocation2 + %s222]]
        %v224 = vstv %s223
        %v225 = vmul.f32 %v213, %v224
        %v226 = vmul.f32 %v215, %v224
        %s227 = sadd.s32 %s212, 2
        %s228 = smul.u32 %s227, 36
        %s229 = sld [smem:[#allocation2 + %s228]]
        %v230 = vstv %s229
        %v231 = vmul.f32 %v213, %v230
        %v232 = vmul.f32 %v215, %v230
        %s233 = sadd.s32 %s212, 3
        %s234 = smul.u32 %s233, 36
        %s235 = sld [smem:[#allocation2 + %s234]]
        %v236 = vstv %s235
        %v237 = vmul.f32 %v213, %v236
        %v238 = vmul.f32 %v215, %v236
        %s239 = sadd.s32 %s216, 1
        %s240 = sld [smem:[#allocation2 + %s239]]
        %v241 = vstv %s240
        %v242 = vmul.f32 %v213, %v241
        %v243 = vmul.f32 %v215, %v241
        %246 = vrot.lane.b32.xlu0 %v242, 127
        %v247 = vpop.permute.xlu0 %246
        %248 = vrot.lane.b32.xlu0 %v243, 127
        %v249 = vpop.permute.xlu0 %248
        %v250 = vrot.slane %v247, 1
        %v251 = vrot.slane %v249, 1
        %vm252 = vcmask 1039360
        %v253 = vsel %vm252, %v247, %v250
        %v254 = vsel %vm252, %v249, %v251
        %v257 = vadd.f32 %v219, %v253
        %v258 = vadd.f32 %v220, %v254
        %s259 = sadd.s32 %s222, 1
        %s260 = sld [smem:[#allocation2 + %s259]]
        %v261 = vstv %s260
        %v262 = vmul.f32 %v213, %v261
        %v263 = vmul.f32 %v215, %v261
        %266 = vrot.lane.b32.xlu0 %v262, 127
        %v267 = vpop.permute.xlu0 %266
        %268 = vrot.lane.b32.xlu0 %v263, 127
        %v269 = vpop.permute.xlu0 %268
        %v270 = vrot.slane %v267, 1
        %v271 = vrot.slane %v269, 1
        %v272 = vsel %vm252, %v267, %v270
        %v273 = vsel %vm252, %v269, %v271
        %v276 = vadd.f32 %v225, %v272
        %v277 = vadd.f32 %v226, %v273
        %s278 = sadd.s32 %s228, 1
        %s279 = sld [smem:[#allocation2 + %s278]]
        %v280 = vstv %s279
        %v281 = vmul.f32 %v213, %v280
        %v282 = vmul.f32 %v215, %v280
        %285 = vrot.lane.b32.xlu0 %v281, 127
        %v286 = vpop.permute.xlu0 %285
        %287 = vrot.lane.b32.xlu0 %v282, 127
        %v288 = vpop.permute.xlu0 %287
        %v289 = vrot.slane %v286, 1
        %v290 = vrot.slane %v288, 1
        %v291 = vsel %vm252, %v286, %v289
        %v292 = vsel %vm252, %v288, %v290
        %v295 = vadd.f32 %v231, %v291
        %v296 = vadd.f32 %v232, %v292
        %s297 = sadd.s32 %s234, 1
        %s298 = sld [smem:[#allocation2 + %s297]]
        %v299 = vstv %s298
        %v300 = vmul.f32 %v213, %v299
        %v301 = vmul.f32 %v215, %v299
        %304 = vrot.lane.b32.xlu0 %v300, 127
        %v305 = vpop.permute.xlu0 %304
        %306 = vrot.lane.b32.xlu0 %v301, 127
        %v307 = vpop.permute.xlu0 %306
        %v308 = vrot.slane %v305, 1
        %v309 = vrot.slane %v307, 1
        %v310 = vsel %vm252, %v305, %v308
        %v311 = vsel %vm252, %v307, %v309
        %v314 = vadd.f32 %v237, %v310
        %v315 = vadd.f32 %v238, %v311
        %s316 = sadd.s32 %s216, 2
        %s317 = sld [smem:[#allocation2 + %s316]]
        %v318 = vstv %s317
        %v319 = vmul.f32 %v213, %v318
        %v320 = vmul.f32 %v215, %v318
        %323 = vrot.lane.b32.xlu0 %v319, 126
        %v324 = vpop.permute.xlu0 %323
        %325 = vrot.lane.b32.xlu0 %v320, 126
        %v326 = vpop.permute.xlu0 %325
        %v327 = vrot.slane %v324, 1
        %v328 = vrot.slane %v326, 1
        %vm329 = vcmask 1031168
        %v330 = vsel %vm329, %v324, %v327
        %v331 = vsel %vm329, %v326, %v328
        %v334 = vadd.f32 %v257, %v330
        %v335 = vadd.f32 %v258, %v331
        %s336 = sadd.s32 %s222, 2
        %s337 = sld [smem:[#allocation2 + %s336]]
        %v338 = vstv %s337
        %v339 = vmul.f32 %v213, %v338
        %v340 = vmul.f32 %v215, %v338
        %343 = vrot.lane.b32.xlu0 %v339, 126
        %v344 = vpop.permute.xlu0 %343
        %345 = vrot.lane.b32.xlu0 %v340, 126
        %v346 = vpop.permute.xlu0 %345
        %v347 = vrot.slane %v344, 1
        %v348 = vrot.slane %v346, 1
        %v349 = vsel %vm329, %v344, %v347
        %v350 = vsel %vm329, %v346, %v348
        %v353 = vadd.f32 %v276, %v349
        %v354 = vadd.f32 %v277, %v350
        %s355 = sadd.s32 %s228, 2
        %s356 = sld [smem:[#allocation2 + %s355]]
        %v357 = vstv %s356
        %v358 = vmul.f32 %v213, %v357
        %v359 = vmul.f32 %v215, %v357
        %362 = vrot.lane.b32.xlu0 %v358, 126
        %v363 = vpop.permute.xlu0 %362
        %364 = vrot.lane.b32.xlu0 %v359, 126
        %v365 = vpop.permute.xlu0 %364
        %v366 = vrot.slane %v363, 1
        %v367 = vrot.slane %v365, 1
        %v368 = vsel %vm329, %v363, %v366
        %v369 = vsel %vm329, %v365, %v367
        %v372 = vadd.f32 %v295, %v368
        %v373 = vadd.f32 %v296, %v369
        %s374 = sadd.s32 %s234, 2
        %s375 = sld [smem:[#allocation2 + %s374]]
        %v376 = vstv %s375
        %v377 = vmul.f32 %v213, %v376
        %v378 = vmul.f32 %v215, %v376
        %381 = vrot.lane.b32.xlu0 %v377, 126
        %v382 = vpop.permute.xlu0 %381
        %383 = vrot.lane.b32.xlu0 %v378, 126
        %v384 = vpop.permute.xlu0 %383
        %v385 = vrot.slane %v382, 1
        %v386 = vrot.slane %v384, 1
        %v387 = vsel %vm329, %v382, %v385
        %v388 = vsel %vm329, %v384, %v386
        %v391 = vadd.f32 %v314, %v387
        %v392 = vadd.f32 %v315, %v388
        %s393 = sadd.s32 %s216, 3
        %s394 = sld [smem:[#allocation2 + %s393]]
        %v395 = vstv %s394
        %v396 = vmul.f32 %v213, %v395
        %v397 = vmul.f32 %v215, %v395
        %400 = vrot.lane.b32.xlu0 %v396, 112
        %v401 = vpop.permute.xlu0 %400
        %402 = vrot.lane.b32.xlu0 %v397, 112
        %v403 = vpop.permute.xlu0 %402
        %v404 = vrot.slane %v401, 1
        %v405 = vrot.slane %v403, 1
        %vm406 = vcmask 916480
        %v407 = vsel %vm406, %v401, %v404
        %v408 = vsel %vm406, %v403, %v405
        %v411 = vadd.f32 %v334, %v407
        %v412 = vadd.f32 %v335, %v408
        %s413 = sadd.s32 %s222, 3
        %s414 = sld [smem:[#allocation2 + %s413]]
        %v415 = vstv %s414
        %v416 = vmul.f32 %v213, %v415
        %v417 = vmul.f32 %v215, %v415
        %420 = vrot.lane.b32.xlu0 %v416, 112
        %v421 = vpop.permute.xlu0 %420
        %422 = vrot.lane.b32.xlu0 %v417, 112
        %v423 = vpop.permute.xlu0 %422
        %v424 = vrot.slane %v421, 1
        %v425 = vrot.slane %v423, 1
        %v426 = vsel %vm406, %v421, %v424
        %v427 = vsel %vm406, %v423, %v425
        %v430 = vadd.f32 %v353, %v426
        %v431 = vadd.f32 %v354, %v427
        %s432 = sadd.s32 %s228, 3
        %s433 = sld [smem:[#allocation2 + %s432]]
        %v434 = vstv %s433
        %v435 = vmul.f32 %v213, %v434
        %v436 = vmul.f32 %v215, %v434
        %439 = vrot.lane.b32.xlu0 %v435, 112
        %v440 = vpop.permute.xlu0 %439
        %441 = vrot.lane.b32.xlu0 %v436, 112
        %v442 = vpop.permute.xlu0 %441
        %v443 = vrot.slane %v440, 1
        %v444 = vrot.slane %v442, 1
        %v445 = vsel %vm406, %v440, %v443
        %v446 = vsel %vm406, %v442, %v444
        %v449 = vadd.f32 %v372, %v445
        %v450 = vadd.f32 %v373, %v446
        %s451 = sadd.s32 %s234, 3
        %s452 = sld [smem:[#allocation2 + %s451]]
        %v453 = vstv %s452
        %v454 = vmul.f32 %v213, %v453
        %v455 = vmul.f32 %v215, %v453
        %458 = vrot.lane.b32.xlu0 %v454, 112
        %v459 = vpop.permute.xlu0 %458
        %460 = vrot.lane.b32.xlu0 %v455, 112
        %v461 = vpop.permute.xlu0 %460
        %v462 = vrot.slane %v459, 1
        %v463 = vrot.slane %v461, 1
        %v464 = vsel %vm406, %v459, %v462
        %v465 = vsel %vm406, %v461, %v463
        %v468 = vadd.f32 %v391, %v464
        %v469 = vadd.f32 %v392, %v465
        %s470 = sadd.s32 %s216, 4
        %s471 = sld [smem:[#allocation2 + %s470]]
        %v472 = vstv %s471
        %v473 = vmul.f32 %v213, %v472
        %v474 = vmul.f32 %v215, %v472
        %477 = vrot.lane.b32.xlu0 %v473, 111
        %v478 = vpop.permute.xlu0 %477
        %479 = vrot.lane.b32.xlu0 %v474, 111
        %v480 = vpop.permute.xlu0 %479
        %v481 = vrot.slane %v478, 1
        %v482 = vrot.slane %v480, 1
        %vm483 = vcmask 908288
        %v484 = vsel %vm483, %v478, %v481
        %v485 = vsel %vm483, %v480, %v482
        %v488 = vadd.f32 %v411, %v484
        %v489 = vadd.f32 %v412, %v485
        %s490 = sadd.s32 %s222, 4
        %s491 = sld [smem:[#allocation2 + %s490]]
        %v492 = vstv %s491
        %v493 = vmul.f32 %v213, %v492
        %v494 = vmul.f32 %v215, %v492
        %497 = vrot.lane.b32.xlu0 %v493, 111
        %v498 = vpop.permute.xlu0 %497
        %499 = vrot.lane.b32.xlu0 %v494, 111
        %v500 = vpop.permute.xlu0 %499
        %v501 = vrot.slane %v498, 1
        %v502 = vrot.slane %v500, 1
        %v503 = vsel %vm483, %v498, %v501
        %v504 = vsel %vm483, %v500, %v502
        %v507 = vadd.f32 %v430, %v503
        %v508 = vadd.f32 %v431, %v504
        %s509 = sadd.s32 %s228, 4
        %s510 = sld [smem:[#allocation2 + %s509]]
        %v511 = vstv %s510
        %v512 = vmul.f32 %v213, %v511
        %v513 = vmul.f32 %v215, %v511
        %516 = vrot.lane.b32.xlu0 %v512, 111
        %v517 = vpop.permute.xlu0 %516
        %518 = vrot.lane.b32.xlu0 %v513, 111
        %v519 = vpop.permute.xlu0 %518
        %v520 = vrot.slane %v517, 1
        %v521 = vrot.slane %v519, 1
        %v522 = vsel %vm483, %v517, %v520
        %v523 = vsel %vm483, %v519, %v521
        %v526 = vadd.f32 %v449, %v522
        %v527 = vadd.f32 %v450, %v523
        %s528 = sadd.s32 %s234, 4
        %s529 = sld [smem:[#allocation2 + %s528]]
        %v530 = vstv %s529
        %v531 = vmul.f32 %v213, %v530
        %v532 = vmul.f32 %v215, %v530
        %535 = vrot.lane.b32.xlu0 %v531, 111
        %v536 = vpop.permute.xlu0 %535
        %537 = vrot.lane.b32.xlu0 %v532, 111
        %v538 = vpop.permute.xlu0 %537
        %v539 = vrot.slane %v536, 1
        %v540 = vrot.slane %v538, 1
        %v541 = vsel %vm483, %v536, %v539
        %v542 = vsel %vm483, %v538, %v540
        %v545 = vadd.f32 %v468, %v541
        %v546 = vadd.f32 %v469, %v542
        %s547 = sadd.s32 %s216, 5
        %s548 = sld [smem:[#allocation2 + %s547]]
        %v549 = vstv %s548
        %v550 = vmul.f32 %v213, %v549
        %v551 = vmul.f32 %v215, %v549
        %554 = vrot.lane.b32.xlu0 %v550, 110
        %v555 = vpop.permute.xlu0 %554
        %556 = vrot.lane.b32.xlu0 %v551, 110
        %v557 = vpop.permute.xlu0 %556
        %v558 = vrot.slane %v555, 1
        %v559 = vrot.slane %v557, 1
        %vm560 = vcmask 900096
        %v561 = vsel %vm560, %v555, %v558
        %v562 = vsel %vm560, %v557, %v559
        %v565 = vadd.f32 %v488, %v561
        %v566 = vadd.f32 %v489, %v562
        %s567 = sadd.s32 %s222, 5
        %s568 = sld [smem:[#allocation2 + %s567]]
        %v569 = vstv %s568
        %v570 = vmul.f32 %v213, %v569
        %v571 = vmul.f32 %v215, %v569
        %574 = vrot.lane.b32.xlu0 %v570, 110
        %v575 = vpop.permute.xlu0 %574
        %576 = vrot.lane.b32.xlu0 %v571, 110
        %v577 = vpop.permute.xlu0 %576
        %v578 = vrot.slane %v575, 1
        %v579 = vrot.slane %v577, 1
        %v580 = vsel %vm560, %v575, %v578
        %v581 = vsel %vm560, %v577, %v579
        %v584 = vadd.f32 %v507, %v580
        %v585 = vadd.f32 %v508, %v581
        %s586 = sadd.s32 %s228, 5
        %s587 = sld [smem:[#allocation2 + %s586]]
        %v588 = vstv %s587
        %v589 = vmul.f32 %v213, %v588
        %v590 = vmul.f32 %v215, %v588
        %593 = vrot.lane.b32.xlu0 %v589, 110
        %v594 = vpop.permute.xlu0 %593
        %595 = vrot.lane.b32.xlu0 %v590, 110
        %v596 = vpop.permute.xlu0 %595
        %v597 = vrot.slane %v594, 1
        %v598 = vrot.slane %v596, 1
        %v599 = vsel %vm560, %v594, %v597
        %v600 = vsel %vm560, %v596, %v598
        %v603 = vadd.f32 %v526, %v599
        %v604 = vadd.f32 %v527, %v600
        %s605 = sadd.s32 %s234, 5
        %s606 = sld [smem:[#allocation2 + %s605]]
        %v607 = vstv %s606
        %v608 = vmul.f32 %v213, %v607
        %v609 = vmul.f32 %v215, %v607
        %612 = vrot.lane.b32.xlu0 %v608, 110
        %v613 = vpop.permute.xlu0 %612
        %614 = vrot.lane.b32.xlu0 %v609, 110
        %v615 = vpop.permute.xlu0 %614
        %v616 = vrot.slane %v613, 1
        %v617 = vrot.slane %v615, 1
        %v618 = vsel %vm560, %v613, %v616
        %v619 = vsel %vm560, %v615, %v617
        %v622 = vadd.f32 %v545, %v618
        %v623 = vadd.f32 %v546, %v619
        %s624 = sadd.s32 %s216, 6
        %s625 = sld [smem:[#allocation2 + %s624]]
        %v626 = vstv %s625
        %v627 = vmul.f32 %v213, %v626
        %v628 = vmul.f32 %v215, %v626
        %631 = vrot.lane.b32.xlu0 %v627, 96
        %v632 = vpop.permute.xlu0 %631
        %633 = vrot.lane.b32.xlu0 %v628, 96
        %v634 = vpop.permute.xlu0 %633
        %v635 = vrot.slane %v632, 1
        %v636 = vrot.slane %v634, 1
        %vm637 = vcmask 785408
        %v638 = vsel %vm637, %v632, %v635
        %v639 = vsel %vm637, %v634, %v636
        %v642 = vadd.f32 %v565, %v638
        %v643 = vadd.f32 %v566, %v639
        %s644 = sadd.s32 %s222, 6
        %s645 = sld [smem:[#allocation2 + %s644]]
        %v646 = vstv %s645
        %v647 = vmul.f32 %v213, %v646
        %v648 = vmul.f32 %v215, %v646
        %651 = vrot.lane.b32.xlu0 %v647, 96
        %v652 = vpop.permute.xlu0 %651
        %653 = vrot.lane.b32.xlu0 %v648, 96
        %v654 = vpop.permute.xlu0 %653
        %v655 = vrot.slane %v652, 1
        %v656 = vrot.slane %v654, 1
        %v657 = vsel %vm637, %v652, %v655
        %v658 = vsel %vm637, %v654, %v656
        %v661 = vadd.f32 %v584, %v657
        %v662 = vadd.f32 %v585, %v658
        %s663 = sadd.s32 %s228, 6
        %s664 = sld [smem:[#allocation2 + %s663]]
        %v665 = vstv %s664
        %v666 = vmul.f32 %v213, %v665
        %v667 = vmul.f32 %v215, %v665
        %670 = vrot.lane.b32.xlu0 %v666, 96
        %v671 = vpop.permute.xlu0 %670
        %672 = vrot.lane.b32.xlu0 %v667, 96
        %v673 = vpop.permute.xlu0 %672
        %v674 = vrot.slane %v671, 1
        %v675 = vrot.slane %v673, 1
        %v676 = vsel %vm637, %v671, %v674
        %v677 = vsel %vm637, %v673, %v675
        %v680 = vadd.f32 %v603, %v676
        %v681 = vadd.f32 %v604, %v677
        %s682 = sadd.s32 %s234, 6
        %s683 = sld [smem:[#allocation2 + %s682]]
        %v684 = vstv %s683
        %v685 = vmul.f32 %v213, %v684
        %v686 = vmul.f32 %v215, %v684
        %689 = vrot.lane.b32.xlu0 %v685, 96
        %v690 = vpop.permute.xlu0 %689
        %691 = vrot.lane.b32.xlu0 %v686, 96
        %v692 = vpop.permute.xlu0 %691
        %v693 = vrot.slane %v690, 1
        %v694 = vrot.slane %v692, 1
        %v695 = vsel %vm637, %v690, %v693
        %v696 = vsel %vm637, %v692, %v694
        %v699 = vadd.f32 %v622, %v695
        %v700 = vadd.f32 %v623, %v696
        %s701 = sadd.s32 %s216, 7
        %s702 = sld [smem:[#allocation2 + %s701]]
        %v703 = vstv %s702
        %v704 = vmul.f32 %v213, %v703
        %v705 = vmul.f32 %v215, %v703
        %708 = vrot.lane.b32.xlu0 %v704, 95
        %v709 = vpop.permute.xlu0 %708
        %710 = vrot.lane.b32.xlu0 %v705, 95
        %v711 = vpop.permute.xlu0 %710
        %v712 = vrot.slane %v709, 1
        %v713 = vrot.slane %v711, 1
        %vm714 = vcmask 777216
        %v715 = vsel %vm714, %v709, %v712
        %v716 = vsel %vm714, %v711, %v713
        %v719 = vadd.f32 %v642, %v715
        %v720 = vadd.f32 %v643, %v716
        %s721 = sadd.s32 %s222, 7
        %s722 = sld [smem:[#allocation2 + %s721]]
        %v723 = vstv %s722
        %v724 = vmul.f32 %v213, %v723
        %v725 = vmul.f32 %v215, %v723
        %728 = vrot.lane.b32.xlu0 %v724, 95
        %v729 = vpop.permute.xlu0 %728
        %730 = vrot.lane.b32.xlu0 %v725, 95
        %v731 = vpop.permute.xlu0 %730
        %v732 = vrot.slane %v729, 1
        %v733 = vrot.slane %v731, 1
        %v734 = vsel %vm714, %v729, %v732
        %v735 = vsel %vm714, %v731, %v733
        %v738 = vadd.f32 %v661, %v734
        %v739 = vadd.f32 %v662, %v735
        %s740 = sadd.s32 %s228, 7
        %s741 = sld [smem:[#allocation2 + %s740]]
        %v742 = vstv %s741
        %v743 = vmul.f32 %v213, %v742
        %v744 = vmul.f32 %v215, %v742
        %747 = vrot.lane.b32.xlu0 %v743, 95
        %v748 = vpop.permute.xlu0 %747
        %749 = vrot.lane.b32.xlu0 %v744, 95
        %v750 = vpop.permute.xlu0 %749
        %v751 = vrot.slane %v748, 1
        %v752 = vrot.slane %v750, 1
        %v753 = vsel %vm714, %v748, %v751
        %v754 = vsel %vm714, %v750, %v752
        %v757 = vadd.f32 %v680, %v753
        %v758 = vadd.f32 %v681, %v754
        %s759 = sadd.s32 %s234, 7
        %s760 = sld [smem:[#allocation2 + %s759]]
        %v761 = vstv %s760
        %v762 = vmul.f32 %v213, %v761
        %v763 = vmul.f32 %v215, %v761
        %766 = vrot.lane.b32.xlu0 %v762, 95
        %v767 = vpop.permute.xlu0 %766
        %768 = vrot.lane.b32.xlu0 %v763, 95
        %v769 = vpop.permute.xlu0 %768
        %v770 = vrot.slane %v767, 1
        %v771 = vrot.slane %v769, 1
        %v772 = vsel %vm714, %v767, %v770
        %v773 = vsel %vm714, %v769, %v771
        %v776 = vadd.f32 %v699, %v772
        %v777 = vadd.f32 %v700, %v773
        %s778 = sadd.s32 %s216, 8
        %s779 = sld [smem:[#allocation2 + %s778]]
        %v780 = vstv %s779
        %v781 = vmul.f32 %v213, %v780
        %v782 = vmul.f32 %v215, %v780
        %785 = vrot.lane.b32.xlu0 %v781, 94
        %v786 = vpop.permute.xlu0 %785
        %787 = vrot.lane.b32.xlu0 %v782, 94
        %v788 = vpop.permute.xlu0 %787
        %v789 = vrot.slane %v786, 1
        %v790 = vrot.slane %v788, 1
        %vm791 = vcmask 769024
        %v792 = vsel %vm791, %v786, %v789
        %v793 = vsel %vm791, %v788, %v790
        %v796 = vadd.f32 %v719, %v792
        %v797 = vadd.f32 %v720, %v793
        %s798 = sadd.s32 %s222, 8
        %s799 = sld [smem:[#allocation2 + %s798]]
        %v800 = vstv %s799
        %v801 = vmul.f32 %v213, %v800
        %v802 = vmul.f32 %v215, %v800
        %805 = vrot.lane.b32.xlu0 %v801, 94
        %v806 = vpop.permute.xlu0 %805
        %807 = vrot.lane.b32.xlu0 %v802, 94
        %v808 = vpop.permute.xlu0 %807
        %v809 = vrot.slane %v806, 1
        %v810 = vrot.slane %v808, 1
        %v811 = vsel %vm791, %v806, %v809
        %v812 = vsel %vm791, %v808, %v810
        %v815 = vadd.f32 %v738, %v811
        %v816 = vadd.f32 %v739, %v812
        %s817 = sadd.s32 %s228, 8
        %s818 = sld [smem:[#allocation2 + %s817]]
        %v819 = vstv %s818
        %v820 = vmul.f32 %v213, %v819
        %v821 = vmul.f32 %v215, %v819
        %824 = vrot.lane.b32.xlu0 %v820, 94
        %v825 = vpop.permute.xlu0 %824
        %826 = vrot.lane.b32.xlu0 %v821, 94
        %v827 = vpop.permute.xlu0 %826
        %v828 = vrot.slane %v825, 1
        %v829 = vrot.slane %v827, 1
        %v830 = vsel %vm791, %v825, %v828
        %v831 = vsel %vm791, %v827, %v829
        %v834 = vadd.f32 %v757, %v830
        %v835 = vadd.f32 %v758, %v831
        %s836 = sadd.s32 %s234, 8
        %s837 = sld [smem:[#allocation2 + %s836]]
        %v838 = vstv %s837
        %v839 = vmul.f32 %v213, %v838
        %v840 = vmul.f32 %v215, %v838
        %843 = vrot.lane.b32.xlu0 %v839, 94
        %v844 = vpop.permute.xlu0 %843
        %845 = vrot.lane.b32.xlu0 %v840, 94
        %v846 = vpop.permute.xlu0 %845
        %v847 = vrot.slane %v844, 1
        %v848 = vrot.slane %v846, 1
        %v849 = vsel %vm791, %v844, %v847
        %v850 = vsel %vm791, %v846, %v848
        %v853 = vadd.f32 %v776, %v849
        %v854 = vadd.f32 %v777, %v850
        %s855 = scalar_lea.vmem %s209, 1
        %v856 = vld [vmem:[%s855] ss:$4 sm:$0x7]
        %s857 = scalar_lea.vmem %s209, 13
        %v858 = vld [vmem:[%s857] ss:$4 sm:$0x7]
        %s859 = sadd.s32 %s216, 9
        %s860 = sld [smem:[#allocation2 + %s859]]
        %v861 = vstv %s860
        %v862 = vmul.f32 %v856, %v861
        %v863 = vmul.f32 %v858, %v861
        %v864 = vadd.f32 %v796, %v862
        %v865 = vadd.f32 %v797, %v863
        %s866 = sadd.s32 %s222, 9
        %s867 = sld [smem:[#allocation2 + %s866]]
        %v868 = vstv %s867
        %v869 = vmul.f32 %v856, %v868
        %v870 = vmul.f32 %v858, %v868
        %v871 = vadd.f32 %v815, %v869
        %v872 = vadd.f32 %v816, %v870
        %s873 = sadd.s32 %s228, 9
        %s874 = sld [smem:[#allocation2 + %s873]]
        %v875 = vstv %s874
        %v876 = vmul.f32 %v856, %v875
        %v877 = vmul.f32 %v858, %v875
        %v878 = vadd.f32 %v834, %v876
        %v879 = vadd.f32 %v835, %v877
        %s880 = sadd.s32 %s234, 9
        %s881 = sld [smem:[#allocation2 + %s880]]
        %v882 = vstv %s881
        %v883 = vmul.f32 %v856, %v882
        %v884 = vmul.f32 %v858, %v882
        %v885 = vadd.f32 %v853, %v883
        %v886 = vadd.f32 %v854, %v884
        %s887 = sadd.s32 %s216, 10
        %s888 = sld [smem:[#allocation2 + %s887]]
        %v889 = vstv %s888
        %v890 = vmul.f32 %v856, %v889
        %v891 = vmul.f32 %v858, %v889
        %894 = vrot.lane.b32.xlu0 %v890, 127
        %v895 = vpop.permute.xlu0 %894
        %896 = vrot.lane.b32.xlu0 %v891, 127
        %v897 = vpop.permute.xlu0 %896
        %v898 = vrot.slane %v895, 1
        %v899 = vrot.slane %v897, 1
        %v900 = vsel %vm252, %v895, %v898
        %v901 = vsel %vm252, %v897, %v899
        %v904 = vadd.f32 %v864, %v900
        %v905 = vadd.f32 %v865, %v901
        %s906 = sadd.s32 %s222, 10
        %s907 = sld [smem:[#allocation2 + %s906]]
        %v908 = vstv %s907
        %v909 = vmul.f32 %v856, %v908
        %v910 = vmul.f32 %v858, %v908
        %913 = vrot.lane.b32.xlu0 %v909, 127
        %v914 = vpop.permute.xlu0 %913
        %915 = vrot.lane.b32.xlu0 %v910, 127
        %v916 = vpop.permute.xlu0 %915
        %v917 = vrot.slane %v914, 1
        %v918 = vrot.slane %v916, 1
        %v919 = vsel %vm252, %v914, %v917
        %v920 = vsel %vm252, %v916, %v918
        %v923 = vadd.f32 %v871, %v919
        %v924 = vadd.f32 %v872, %v920
        %s925 = sadd.s32 %s228, 10
        %s926 = sld [smem:[#allocation2 + %s925]]
        %v927 = vstv %s926
        %v928 = vmul.f32 %v856, %v927
        %v929 = vmul.f32 %v858, %v927
        %932 = vrot.lane.b32.xlu0 %v928, 127
        %v933 = vpop.permute.xlu0 %932
        %934 = vrot.lane.b32.xlu0 %v929, 127
        %v935 = vpop.permute.xlu0 %934
        %v936 = vrot.slane %v933, 1
        %v937 = vrot.slane %v935, 1
        %v938 = vsel %vm252, %v933, %v936
        %v939 = vsel %vm252, %v935, %v937
        %v942 = vadd.f32 %v878, %v938
        %v943 = vadd.f32 %v879, %v939
        %s944 = sadd.s32 %s234, 10
        %s945 = sld [smem:[#allocation2 + %s944]]
        %v946 = vstv %s945
        %v947 = vmul.f32 %v856, %v946
        %v948 = vmul.f32 %v858, %v946
        %951 = vrot.lane.b32.xlu0 %v947, 127
        %v952 = vpop.permute.xlu0 %951
        %953 = vrot.lane.b32.xlu0 %v948, 127
        %v954 = vpop.permute.xlu0 %953
        %v955 = vrot.slane %v952, 1
        %v956 = vrot.slane %v954, 1
        %v957 = vsel %vm252, %v952, %v955
        %v958 = vsel %vm252, %v954, %v956
        %v961 = vadd.f32 %v885, %v957
        %v962 = vadd.f32 %v886, %v958
        %s963 = sadd.s32 %s216, 11
        %s964 = sld [smem:[#allocation2 + %s963]]
        %v965 = vstv %s964
        %v966 = vmul.f32 %v856, %v965
        %v967 = vmul.f32 %v858, %v965
        %970 = vrot.lane.b32.xlu0 %v966, 126
        %v971 = vpop.permute.xlu0 %970
        %972 = vrot.lane.b32.xlu0 %v967, 126
        %v973 = vpop.permute.xlu0 %972
        %v974 = vrot.slane %v971, 1
        %v975 = vrot.slane %v973, 1
        %v976 = vsel %vm329, %v971, %v974
        %v977 = vsel %vm329, %v973, %v975
        %v980 = vadd.f32 %v904, %v976
        %v981 = vadd.f32 %v905, %v977
        %s982 = sadd.s32 %s222, 11
        %s983 = sld [smem:[#allocation2 + %s982]]
        %v984 = vstv %s983
        %v985 = vmul.f32 %v856, %v984
        %v986 = vmul.f32 %v858, %v984
        %989 = vrot.lane.b32.xlu0 %v985, 126
        %v990 = vpop.permute.xlu0 %989
        %991 = vrot.lane.b32.xlu0 %v986, 126
        %v992 = vpop.permute.xlu0 %991
        %v993 = vrot.slane %v990, 1
        %v994 = vrot.slane %v992, 1
        %v995 = vsel %vm329, %v990, %v993
        %v996 = vsel %vm329, %v992, %v994
        %v999 = vadd.f32 %v923, %v995
        %v1000 = vadd.f32 %v924, %v996
        %s1001 = sadd.s32 %s228, 11
        %s1002 = sld [smem:[#allocation2 + %s1001]]
        %v1003 = vstv %s1002
        %v1004 = vmul.f32 %v856, %v1003
        %v1005 = vmul.f32 %v858, %v1003
        %1008 = vrot.lane.b32.xlu0 %v1004, 126
        %v1009 = vpop.permute.xlu0 %1008
        %1010 = vrot.lane.b32.xlu0 %v1005, 126
        %v1011 = vpop.permute.xlu0 %1010
        %v1012 = vrot.slane %v1009, 1
        %v1013 = vrot.slane %v1011, 1
        %v1014 = vsel %vm329, %v1009, %v1012
        %v1015 = vsel %vm329, %v1011, %v1013
        %v1018 = vadd.f32 %v942, %v1014
        %v1019 = vadd.f32 %v943, %v1015
        %s1020 = sadd.s32 %s234, 11
        %s1021 = sld [smem:[#allocation2 + %s1020]]
        %v1022 = vstv %s1021
        %v1023 = vmul.f32 %v856, %v1022
        %v1024 = vmul.f32 %v858, %v1022
        %1027 = vrot.lane.b32.xlu0 %v1023, 126
        %v1028 = vpop.permute.xlu0 %1027
        %1029 = vrot.lane.b32.xlu0 %v1024, 126
        %v1030 = vpop.permute.xlu0 %1029
        %v1031 = vrot.slane %v1028, 1
        %v1032 = vrot.slane %v1030, 1
        %v1033 = vsel %vm329, %v1028, %v1031
        %v1034 = vsel %vm329, %v1030, %v1032
        %v1037 = vadd.f32 %v961, %v1033
        %v1038 = vadd.f32 %v962, %v1034
        %s1039 = sadd.s32 %s216, 12
        %s1040 = sld [smem:[#allocation2 + %s1039]]
        %v1041 = vstv %s1040
        %v1042 = vmul.f32 %v856, %v1041
        %v1043 = vmul.f32 %v858, %v1041
        %1046 = vrot.lane.b32.xlu0 %v1042, 112
        %v1047 = vpop.permute.xlu0 %1046
        %1048 = vrot.lane.b32.xlu0 %v1043, 112
        %v1049 = vpop.permute.xlu0 %1048
        %v1050 = vrot.slane %v1047, 1
        %v1051 = vrot.slane %v1049, 1
        %v1052 = vsel %vm406, %v1047, %v1050
        %v1053 = vsel %vm406, %v1049, %v1051
        %v1056 = vadd.f32 %v980, %v1052
        %v1057 = vadd.f32 %v981, %v1053
        %s1058 = sadd.s32 %s222, 12
        %s1059 = sld [smem:[#allocation2 + %s1058]]
        %v1060 = vstv %s1059
        %v1061 = vmul.f32 %v856, %v1060
        %v1062 = vmul.f32 %v858, %v1060
        %1065 = vrot.lane.b32.xlu0 %v1061, 112
        %v1066 = vpop.permute.xlu0 %1065
        %1067 = vrot.lane.b32.xlu0 %v1062, 112
        %v1068 = vpop.permute.xlu0 %1067
        %v1069 = vrot.slane %v1066, 1
        %v1070 = vrot.slane %v1068, 1
        %v1071 = vsel %vm406, %v1066, %v1069
        %v1072 = vsel %vm406, %v1068, %v1070
        %v1075 = vadd.f32 %v999, %v1071
        %v1076 = vadd.f32 %v1000, %v1072
        %s1077 = sadd.s32 %s228, 12
        %s1078 = sld [smem:[#allocation2 + %s1077]]
        %v1079 = vstv %s1078
        %v1080 = vmul.f32 %v856, %v1079
        %v1081 = vmul.f32 %v858, %v1079
        %1084 = vrot.lane.b32.xlu0 %v1080, 112
        %v1085 = vpop.permute.xlu0 %1084
        %1086 = vrot.lane.b32.xlu0 %v1081, 112
        %v1087 = vpop.permute.xlu0 %1086
        %v1088 = vrot.slane %v1085, 1
        %v1089 = vrot.slane %v1087, 1
        %v1090 = vsel %vm406, %v1085, %v1088
        %v1091 = vsel %vm406, %v1087, %v1089
        %v1094 = vadd.f32 %v1018, %v1090
        %v1095 = vadd.f32 %v1019, %v1091
        %s1096 = sadd.s32 %s234, 12
        %s1097 = sld [smem:[#allocation2 + %s1096]]
        %v1098 = vstv %s1097
        %v1099 = vmul.f32 %v856, %v1098
        %v1100 = vmul.f32 %v858, %v1098
        %1103 = vrot.lane.b32.xlu0 %v1099, 112
        %v1104 = vpop.permute.xlu0 %1103
        %1105 = vrot.lane.b32.xlu0 %v1100, 112
        %v1106 = vpop.permute.xlu0 %1105
        %v1107 = vrot.slane %v1104, 1
        %v1108 = vrot.slane %v1106, 1
        %v1109 = vsel %vm406, %v1104, %v1107
        %v1110 = vsel %vm406, %v1106, %v1108
        %v1113 = vadd.f32 %v1037, %v1109
        %v1114 = vadd.f32 %v1038, %v1110
        %s1115 = sadd.s32 %s216, 13
        %s1116 = sld [smem:[#allocation2 + %s1115]]
        %v1117 = vstv %s1116
        %v1118 = vmul.f32 %v856, %v1117
        %v1119 = vmul.f32 %v858, %v1117
        %1122 = vrot.lane.b32.xlu0 %v1118, 111
        %v1123 = vpop.permute.xlu0 %1122
        %1124 = vrot.lane.b32.xlu0 %v1119, 111
        %v1125 = vpop.permute.xlu0 %1124
        %v1126 = vrot.slane %v1123, 1
        %v1127 = vrot.slane %v1125, 1
        %v1128 = vsel %vm483, %v1123, %v1126
        %v1129 = vsel %vm483, %v1125, %v1127
        %v1132 = vadd.f32 %v1056, %v1128
        %v1133 = vadd.f32 %v1057, %v1129
        %s1134 = sadd.s32 %s222, 13
        %s1135 = sld [smem:[#allocation2 + %s1134]]
        %v1136 = vstv %s1135
        %v1137 = vmul.f32 %v856, %v1136
        %v1138 = vmul.f32 %v858, %v1136
        %1141 = vrot.lane.b32.xlu0 %v1137, 111
        %v1142 = vpop.permute.xlu0 %1141
        %1143 = vrot.lane.b32.xlu0 %v1138, 111
        %v1144 = vpop.permute.xlu0 %1143
        %v1145 = vrot.slane %v1142, 1
        %v1146 = vrot.slane %v1144, 1
        %v1147 = vsel %vm483, %v1142, %v1145
        %v1148 = vsel %vm483, %v1144, %v1146
        %v1151 = vadd.f32 %v1075, %v1147
        %v1152 = vadd.f32 %v1076, %v1148
        %s1153 = sadd.s32 %s228, 13
        %s1154 = sld [smem:[#allocation2 + %s1153]]
        %v1155 = vstv %s1154
        %v1156 = vmul.f32 %v856, %v1155
        %v1157 = vmul.f32 %v858, %v1155
        %1160 = vrot.lane.b32.xlu0 %v1156, 111
        %v1161 = vpop.permute.xlu0 %1160
        %1162 = vrot.lane.b32.xlu0 %v1157, 111
        %v1163 = vpop.permute.xlu0 %1162
        %v1164 = vrot.slane %v1161, 1
        %v1165 = vrot.slane %v1163, 1
        %v1166 = vsel %vm483, %v1161, %v1164
        %v1167 = vsel %vm483, %v1163, %v1165
        %v1170 = vadd.f32 %v1094, %v1166
        %v1171 = vadd.f32 %v1095, %v1167
        %s1172 = sadd.s32 %s234, 13
        %s1173 = sld [smem:[#allocation2 + %s1172]]
        %v1174 = vstv %s1173
        %v1175 = vmul.f32 %v856, %v1174
        %v1176 = vmul.f32 %v858, %v1174
        %1179 = vrot.lane.b32.xlu0 %v1175, 111
        %v1180 = vpop.permute.xlu0 %1179
        %1181 = vrot.lane.b32.xlu0 %v1176, 111
        %v1182 = vpop.permute.xlu0 %1181
        %v1183 = vrot.slane %v1180, 1
        %v1184 = vrot.slane %v1182, 1
        %v1185 = vsel %vm483, %v1180, %v1183
        %v1186 = vsel %vm483, %v1182, %v1184
        %v1189 = vadd.f32 %v1113, %v1185
        %v1190 = vadd.f32 %v1114, %v1186
        %s1191 = sadd.s32 %s216, 14
        %s1192 = sld [smem:[#allocation2 + %s1191]]
        %v1193 = vstv %s1192
        %v1194 = vmul.f32 %v856, %v1193
        %v1195 = vmul.f32 %v858, %v1193
        %1198 = vrot.lane.b32.xlu0 %v1194, 110
        %v1199 = vpop.permute.xlu0 %1198
        %1200 = vrot.lane.b32.xlu0 %v1195, 110
        %v1201 = vpop.permute.xlu0 %1200
        %v1202 = vrot.slane %v1199, 1
        %v1203 = vrot.slane %v1201, 1
        %v1204 = vsel %vm560, %v1199, %v1202
        %v1205 = vsel %vm560, %v1201, %v1203
        %v1208 = vadd.f32 %v1132, %v1204
        %v1209 = vadd.f32 %v1133, %v1205
        %s1210 = sadd.s32 %s222, 14
        %s1211 = sld [smem:[#allocation2 + %s1210]]
        %v1212 = vstv %s1211
        %v1213 = vmul.f32 %v856, %v1212
        %v1214 = vmul.f32 %v858, %v1212
        %1217 = vrot.lane.b32.xlu0 %v1213, 110
        %v1218 = vpop.permute.xlu0 %1217
        %1219 = vrot.lane.b32.xlu0 %v1214, 110
        %v1220 = vpop.permute.xlu0 %1219
        %v1221 = vrot.slane %v1218, 1
        %v1222 = vrot.slane %v1220, 1
        %v1223 = vsel %vm560, %v1218, %v1221
        %v1224 = vsel %vm560, %v1220, %v1222
        %v1227 = vadd.f32 %v1151, %v1223
        %v1228 = vadd.f32 %v1152, %v1224
        %s1229 = sadd.s32 %s228, 14
        %s1230 = sld [smem:[#allocation2 + %s1229]]
        %v1231 = vstv %s1230
        %v1232 = vmul.f32 %v856, %v1231
        %v1233 = vmul.f32 %v858, %v1231
        %1236 = vrot.lane.b32.xlu0 %v1232, 110
        %v1237 = vpop.permute.xlu0 %1236
        %1238 = vrot.lane.b32.xlu0 %v1233, 110
        %v1239 = vpop.permute.xlu0 %1238
        %v1240 = vrot.slane %v1237, 1
        %v1241 = vrot.slane %v1239, 1
        %v1242 = vsel %vm560, %v1237, %v1240
        %v1243 = vsel %vm560, %v1239, %v1241
        %v1246 = vadd.f32 %v1170, %v1242
        %v1247 = vadd.f32 %v1171, %v1243
        %s1248 = sadd.s32 %s234, 14
        %s1249 = sld [smem:[#allocation2 + %s1248]]
        %v1250 = vstv %s1249
        %v1251 = vmul.f32 %v856, %v1250
        %v1252 = vmul.f32 %v858, %v1250
        %1255 = vrot.lane.b32.xlu0 %v1251, 110
        %v1256 = vpop.permute.xlu0 %1255
        %1257 = vrot.lane.b32.xlu0 %v1252, 110
        %v1258 = vpop.permute.xlu0 %1257
        %v1259 = vrot.slane %v1256, 1
        %v1260 = vrot.slane %v1258, 1
        %v1261 = vsel %vm560, %v1256, %v1259
        %v1262 = vsel %vm560, %v1258, %v1260
        %v1265 = vadd.f32 %v1189, %v1261
        %v1266 = vadd.f32 %v1190, %v1262
        %s1267 = sadd.s32 %s216, 15
        %s1268 = sld [smem:[#allocation2 + %s1267]]
        %v1269 = vstv %s1268
        %v1270 = vmul.f32 %v856, %v1269
        %v1271 = vmul.f32 %v858, %v1269
        %1274 = vrot.lane.b32.xlu0 %v1270, 96
        %v1275 = vpop.permute.xlu0 %1274
        %1276 = vrot.lane.b32.xlu0 %v1271, 96
        %v1277 = vpop.permute.xlu0 %1276
        %v1278 = vrot.slane %v1275, 1
        %v1279 = vrot.slane %v1277, 1
        %v1280 = vsel %vm637, %v1275, %v1278
        %v1281 = vsel %vm637, %v1277, %v1279
        %v1284 = vadd.f32 %v1208, %v1280
        %v1285 = vadd.f32 %v1209, %v1281
        %s1286 = sadd.s32 %s222, 15
        %s1287 = sld [smem:[#allocation2 + %s1286]]
        %v1288 = vstv %s1287
        %v1289 = vmul.f32 %v856, %v1288
        %v1290 = vmul.f32 %v858, %v1288
        %1293 = vrot.lane.b32.xlu0 %v1289, 96
        %v1294 = vpop.permute.xlu0 %1293
        %1295 = vrot.lane.b32.xlu0 %v1290, 96
        %v1296 = vpop.permute.xlu0 %1295
        %v1297 = vrot.slane %v1294, 1
        %v1298 = vrot.slane %v1296, 1
        %v1299 = vsel %vm637, %v1294, %v1297
        %v1300 = vsel %vm637, %v1296, %v1298
        %v1303 = vadd.f32 %v1227, %v1299
        %v1304 = vadd.f32 %v1228, %v1300
        %s1305 = sadd.s32 %s228, 15
        %s1306 = sld [smem:[#allocation2 + %s1305]]
        %v1307 = vstv %s1306
        %v1308 = vmul.f32 %v856, %v1307
        %v1309 = vmul.f32 %v858, %v1307
        %1312 = vrot.lane.b32.xlu0 %v1308, 96
        %v1313 = vpop.permute.xlu0 %1312
        %1314 = vrot.lane.b32.xlu0 %v1309, 96
        %v1315 = vpop.permute.xlu0 %1314
        %v1316 = vrot.slane %v1313, 1
        %v1317 = vrot.slane %v1315, 1
        %v1318 = vsel %vm637, %v1313, %v1316
        %v1319 = vsel %vm637, %v1315, %v1317
        %v1322 = vadd.f32 %v1246, %v1318
        %v1323 = vadd.f32 %v1247, %v1319
        %s1324 = sadd.s32 %s234, 15
        %s1325 = sld [smem:[#allocation2 + %s1324]]
        %v1326 = vstv %s1325
        %v1327 = vmul.f32 %v856, %v1326
        %v1328 = vmul.f32 %v858, %v1326
        %1331 = vrot.lane.b32.xlu0 %v1327, 96
        %v1332 = vpop.permute.xlu0 %1331
        %1333 = vrot.lane.b32.xlu0 %v1328, 96
        %v1334 = vpop.permute.xlu0 %1333
        %v1335 = vrot.slane %v1332, 1
        %v1336 = vrot.slane %v1334, 1
        %v1337 = vsel %vm637, %v1332, %v1335
        %v1338 = vsel %vm637, %v1334, %v1336
        %v1341 = vadd.f32 %v1265, %v1337
        %v1342 = vadd.f32 %v1266, %v1338
        %s1343 = sadd.s32 %s216, 16
        %s1344 = sld [smem:[#allocation2 + %s1343]]
        %v1345 = vstv %s1344
        %v1346 = vmul.f32 %v856, %v1345
        %v1347 = vmul.f32 %v858, %v1345
        %1350 = vrot.lane.b32.xlu0 %v1346, 95
        %v1351 = vpop.permute.xlu0 %1350
        %1352 = vrot.lane.b32.xlu0 %v1347, 95
        %v1353 = vpop.permute.xlu0 %1352
        %v1354 = vrot.slane %v1351, 1
        %v1355 = vrot.slane %v1353, 1
        %v1356 = vsel %vm714, %v1351, %v1354
        %v1357 = vsel %vm714, %v1353, %v1355
        %v1360 = vadd.f32 %v1284, %v1356
        %v1361 = vadd.f32 %v1285, %v1357
        %s1362 = sadd.s32 %s222, 16
        %s1363 = sld [smem:[#allocation2 + %s1362]]
        %v1364 = vstv %s1363
        %v1365 = vmul.f32 %v856, %v1364
        %v1366 = vmul.f32 %v858, %v1364
        %1369 = vrot.lane.b32.xlu0 %v1365, 95
        %v1370 = vpop.permute.xlu0 %1369
        %1371 = vrot.lane.b32.xlu0 %v1366, 95
        %v1372 = vpop.permute.xlu0 %1371
        %v1373 = vrot.slane %v1370, 1
        %v1374 = vrot.slane %v1372, 1
        %v1375 = vsel %vm714, %v1370, %v1373
        %v1376 = vsel %vm714, %v1372, %v1374
        %v1379 = vadd.f32 %v1303, %v1375
        %v1380 = vadd.f32 %v1304, %v1376
        %s1381 = sadd.s32 %s228, 16
        %s1382 = sld [smem:[#allocation2 + %s1381]]
        %v1383 = vstv %s1382
        %v1384 = vmul.f32 %v856, %v1383
        %v1385 = vmul.f32 %v858, %v1383
        %1388 = vrot.lane.b32.xlu0 %v1384, 95
        %v1389 = vpop.permute.xlu0 %1388
        %1390 = vrot.lane.b32.xlu0 %v1385, 95
        %v1391 = vpop.permute.xlu0 %1390
        %v1392 = vrot.slane %v1389, 1
        %v1393 = vrot.slane %v1391, 1
        %v1394 = vsel %vm714, %v1389, %v1392
        %v1395 = vsel %vm714, %v1391, %v1393
        %v1398 = vadd.f32 %v1322, %v1394
        %v1399 = vadd.f32 %v1323, %v1395
        %s1400 = sadd.s32 %s234, 16
        %s1401 = sld [smem:[#allocation2 + %s1400]]
        %v1402 = vstv %s1401
        %v1403 = vmul.f32 %v856, %v1402
        %v1404 = vmul.f32 %v858, %v1402
        %1407 = vrot.lane.b32.xlu0 %v1403, 95
        %v1408 = vpop.permute.xlu0 %1407
        %1409 = vrot.lane.b32.xlu0 %v1404, 95
        %v1410 = vpop.permute.xlu0 %1409
        %v1411 = vrot.slane %v1408, 1
        %v1412 = vrot.slane %v1410, 1
        %v1413 = vsel %vm714, %v1408, %v1411
        %v1414 = vsel %vm714, %v1410, %v1412
        %v1417 = vadd.f32 %v1341, %v1413
        %v1418 = vadd.f32 %v1342, %v1414
        %s1419 = sadd.s32 %s216, 17
        %s1420 = sld [smem:[#allocation2 + %s1419]]
        %v1421 = vstv %s1420
        %v1422 = vmul.f32 %v856, %v1421
        %v1423 = vmul.f32 %v858, %v1421
        %1426 = vrot.lane.b32.xlu0 %v1422, 94
        %v1427 = vpop.permute.xlu0 %1426
        %1428 = vrot.lane.b32.xlu0 %v1423, 94
        %v1429 = vpop.permute.xlu0 %1428
        %v1430 = vrot.slane %v1427, 1
        %v1431 = vrot.slane %v1429, 1
        %v1432 = vsel %vm791, %v1427, %v1430
        %v1433 = vsel %vm791, %v1429, %v1431
        %v1436 = vadd.f32 %v1360, %v1432
        %v1437 = vadd.f32 %v1361, %v1433
        %s1438 = sadd.s32 %s222, 17
        %s1439 = sld [smem:[#allocation2 + %s1438]]
        %v1440 = vstv %s1439
        %v1441 = vmul.f32 %v856, %v1440
        %v1442 = vmul.f32 %v858, %v1440
        %1445 = vrot.lane.b32.xlu0 %v1441, 94
        %v1446 = vpop.permute.xlu0 %1445
        %1447 = vrot.lane.b32.xlu0 %v1442, 94
        %v1448 = vpop.permute.xlu0 %1447
        %v1449 = vrot.slane %v1446, 1
        %v1450 = vrot.slane %v1448, 1
        %v1451 = vsel %vm791, %v1446, %v1449
        %v1452 = vsel %vm791, %v1448, %v1450
        %v1455 = vadd.f32 %v1379, %v1451
        %v1456 = vadd.f32 %v1380, %v1452
        %s1457 = sadd.s32 %s228, 17
        %s1458 = sld [smem:[#allocation2 + %s1457]]
        %v1459 = vstv %s1458
        %v1460 = vmul.f32 %v856, %v1459
        %v1461 = vmul.f32 %v858, %v1459
        %1464 = vrot.lane.b32.xlu0 %v1460, 94
        %v1465 = vpop.permute.xlu0 %1464
        %1466 = vrot.lane.b32.xlu0 %v1461, 94
        %v1467 = vpop.permute.xlu0 %1466
        %v1468 = vrot.slane %v1465, 1
        %v1469 = vrot.slane %v1467, 1
        %v1470 = vsel %vm791, %v1465, %v1468
        %v1471 = vsel %vm791, %v1467, %v1469
        %v1474 = vadd.f32 %v1398, %v1470
        %v1475 = vadd.f32 %v1399, %v1471
        %s1476 = sadd.s32 %s234, 17
        %s1477 = sld [smem:[#allocation2 + %s1476]]
        %v1478 = vstv %s1477
        %v1479 = vmul.f32 %v856, %v1478
        %v1480 = vmul.f32 %v858, %v1478
        %1483 = vrot.lane.b32.xlu0 %v1479, 94
        %v1484 = vpop.permute.xlu0 %1483
        %1485 = vrot.lane.b32.xlu0 %v1480, 94
        %v1486 = vpop.permute.xlu0 %1485
        %v1487 = vrot.slane %v1484, 1
        %v1488 = vrot.slane %v1486, 1
        %v1489 = vsel %vm791, %v1484, %v1487
        %v1490 = vsel %vm791, %v1486, %v1488
        %v1493 = vadd.f32 %v1417, %v1489
        %v1494 = vadd.f32 %v1418, %v1490
        %s1495 = scalar_lea.vmem %s209, 2
        %v1496 = vld [vmem:[%s1495] ss:$4 sm:$0x7]
        %s1497 = scalar_lea.vmem %s209, 14
        %v1498 = vld [vmem:[%s1497] ss:$4 sm:$0x7]
        %s1499 = sadd.s32 %s216, 18
        %s1500 = sld [smem:[#allocation2 + %s1499]]
        %v1501 = vstv %s1500
        %v1502 = vmul.f32 %v1496, %v1501
        %v1503 = vmul.f32 %v1498, %v1501
        %v1504 = vadd.f32 %v1436, %v1502
        %v1505 = vadd.f32 %v1437, %v1503
        %s1506 = sadd.s32 %s222, 18
        %s1507 = sld [smem:[#allocation2 + %s1506]]
        %v1508 = vstv %s1507
        %v1509 = vmul.f32 %v1496, %v1508
        %v1510 = vmul.f32 %v1498, %v1508
        %v1511 = vadd.f32 %v1455, %v1509
        %v1512 = vadd.f32 %v1456, %v1510
        %s1513 = sadd.s32 %s228, 18
        %s1514 = sld [smem:[#allocation2 + %s1513]]
        %v1515 = vstv %s1514
        %v1516 = vmul.f32 %v1496, %v1515
        %v1517 = vmul.f32 %v1498, %v1515
        %v1518 = vadd.f32 %v1474, %v1516
        %v1519 = vadd.f32 %v1475, %v1517
        %s1520 = sadd.s32 %s234, 18
        %s1521 = sld [smem:[#allocation2 + %s1520]]
        %v1522 = vstv %s1521
        %v1523 = vmul.f32 %v1496, %v1522
        %v1524 = vmul.f32 %v1498, %v1522
        %v1525 = vadd.f32 %v1493, %v1523
        %v1526 = vadd.f32 %v1494, %v1524
        %s1527 = sadd.s32 %s216, 19
        %s1528 = sld [smem:[#allocation2 + %s1527]]
        %v1529 = vstv %s1528
        %v1530 = vmul.f32 %v1496, %v1529
        %v1531 = vmul.f32 %v1498, %v1529
        %1534 = vrot.lane.b32.xlu0 %v1530, 127
        %v1535 = vpop.permute.xlu0 %1534
        %1536 = vrot.lane.b32.xlu0 %v1531, 127
        %v1537 = vpop.permute.xlu0 %1536
        %v1538 = vrot.slane %v1535, 1
        %v1539 = vrot.slane %v1537, 1
        %v1540 = vsel %vm252, %v1535, %v1538
        %v1541 = vsel %vm252, %v1537, %v1539
        %v1544 = vadd.f32 %v1504, %v1540
        %v1545 = vadd.f32 %v1505, %v1541
        %s1546 = sadd.s32 %s222, 19
        %s1547 = sld [smem:[#allocation2 + %s1546]]
        %v1548 = vstv %s1547
        %v1549 = vmul.f32 %v1496, %v1548
        %v1550 = vmul.f32 %v1498, %v1548
        %1553 = vrot.lane.b32.xlu0 %v1549, 127
        %v1554 = vpop.permute.xlu0 %1553
        %1555 = vrot.lane.b32.xlu0 %v1550, 127
        %v1556 = vpop.permute.xlu0 %1555
        %v1557 = vrot.slane %v1554, 1
        %v1558 = vrot.slane %v1556, 1
        %v1559 = vsel %vm252, %v1554, %v1557
        %v1560 = vsel %vm252, %v1556, %v1558
        %v1563 = vadd.f32 %v1511, %v1559
        %v1564 = vadd.f32 %v1512, %v1560
        %s1565 = sadd.s32 %s228, 19
        %s1566 = sld [smem:[#allocation2 + %s1565]]
        %v1567 = vstv %s1566
        %v1568 = vmul.f32 %v1496, %v1567
        %v1569 = vmul.f32 %v1498, %v1567
        %1572 = vrot.lane.b32.xlu0 %v1568, 127
        %v1573 = vpop.permute.xlu0 %1572
        %1574 = vrot.lane.b32.xlu0 %v1569, 127
        %v1575 = vpop.permute.xlu0 %1574
        %v1576 = vrot.slane %v1573, 1
        %v1577 = vrot.slane %v1575, 1
        %v1578 = vsel %vm252, %v1573, %v1576
        %v1579 = vsel %vm252, %v1575, %v1577
        %v1582 = vadd.f32 %v1518, %v1578
        %v1583 = vadd.f32 %v1519, %v1579
        %s1584 = sadd.s32 %s234, 19
        %s1585 = sld [smem:[#allocation2 + %s1584]]
        %v1586 = vstv %s1585
        %v1587 = vmul.f32 %v1496, %v1586
        %v1588 = vmul.f32 %v1498, %v1586
        %1591 = vrot.lane.b32.xlu0 %v1587, 127
        %v1592 = vpop.permute.xlu0 %1591
        %1593 = vrot.lane.b32.xlu0 %v1588, 127
        %v1594 = vpop.permute.xlu0 %1593
        %v1595 = vrot.slane %v1592, 1
        %v1596 = vrot.slane %v1594, 1
        %v1597 = vsel %vm252, %v1592, %v1595
        %v1598 = vsel %vm252, %v1594, %v1596
        %v1601 = vadd.f32 %v1525, %v1597
        %v1602 = vadd.f32 %v1526, %v1598
        %s1603 = sadd.s32 %s216, 20
        %s1604 = sld [smem:[#allocation2 + %s1603]]
        %v1605 = vstv %s1604
        %v1606 = vmul.f32 %v1496, %v1605
        %v1607 = vmul.f32 %v1498, %v1605
        %1610 = vrot.lane.b32.xlu0 %v1606, 126
        %v1611 = vpop.permute.xlu0 %1610
        %1612 = vrot.lane.b32.xlu0 %v1607, 126
        %v1613 = vpop.permute.xlu0 %1612
        %v1614 = vrot.slane %v1611, 1
        %v1615 = vrot.slane %v1613, 1
        %v1616 = vsel %vm329, %v1611, %v1614
        %v1617 = vsel %vm329, %v1613, %v1615
        %v1620 = vadd.f32 %v1544, %v1616
        %v1621 = vadd.f32 %v1545, %v1617
        %s1622 = sadd.s32 %s222, 20
        %s1623 = sld [smem:[#allocation2 + %s1622]]
        %v1624 = vstv %s1623
        %v1625 = vmul.f32 %v1496, %v1624
        %v1626 = vmul.f32 %v1498, %v1624
        %1629 = vrot.lane.b32.xlu0 %v1625, 126
        %v1630 = vpop.permute.xlu0 %1629
        %1631 = vrot.lane.b32.xlu0 %v1626, 126
        %v1632 = vpop.permute.xlu0 %1631
        %v1633 = vrot.slane %v1630, 1
        %v1634 = vrot.slane %v1632, 1
        %v1635 = vsel %vm329, %v1630, %v1633
        %v1636 = vsel %vm329, %v1632, %v1634
        %v1639 = vadd.f32 %v1563, %v1635
        %v1640 = vadd.f32 %v1564, %v1636
        %s1641 = sadd.s32 %s228, 20
        %s1642 = sld [smem:[#allocation2 + %s1641]]
        %v1643 = vstv %s1642
        %v1644 = vmul.f32 %v1496, %v1643
        %v1645 = vmul.f32 %v1498, %v1643
        %1648 = vrot.lane.b32.xlu0 %v1644, 126
        %v1649 = vpop.permute.xlu0 %1648
        %1650 = vrot.lane.b32.xlu0 %v1645, 126
        %v1651 = vpop.permute.xlu0 %1650
        %v1652 = vrot.slane %v1649, 1
        %v1653 = vrot.slane %v1651, 1
        %v1654 = vsel %vm329, %v1649, %v1652
        %v1655 = vsel %vm329, %v1651, %v1653
        %v1658 = vadd.f32 %v1582, %v1654
        %v1659 = vadd.f32 %v1583, %v1655
        %s1660 = sadd.s32 %s234, 20
        %s1661 = sld [smem:[#allocation2 + %s1660]]
        %v1662 = vstv %s1661
        %v1663 = vmul.f32 %v1496, %v1662
        %v1664 = vmul.f32 %v1498, %v1662
        %1667 = vrot.lane.b32.xlu0 %v1663, 126
        %v1668 = vpop.permute.xlu0 %1667
        %1669 = vrot.lane.b32.xlu0 %v1664, 126
        %v1670 = vpop.permute.xlu0 %1669
        %v1671 = vrot.slane %v1668, 1
        %v1672 = vrot.slane %v1670, 1
        %v1673 = vsel %vm329, %v1668, %v1671
        %v1674 = vsel %vm329, %v1670, %v1672
        %v1677 = vadd.f32 %v1601, %v1673
        %v1678 = vadd.f32 %v1602, %v1674
        %s1679 = sadd.s32 %s216, 21
        %s1680 = sld [smem:[#allocation2 + %s1679]]
        %v1681 = vstv %s1680
        %v1682 = vmul.f32 %v1496, %v1681
        %v1683 = vmul.f32 %v1498, %v1681
        %1686 = vrot.lane.b32.xlu0 %v1682, 112
        %v1687 = vpop.permute.xlu0 %1686
        %1688 = vrot.lane.b32.xlu0 %v1683, 112
        %v1689 = vpop.permute.xlu0 %1688
        %v1690 = vrot.slane %v1687, 1
        %v1691 = vrot.slane %v1689, 1
        %v1692 = vsel %vm406, %v1687, %v1690
        %v1693 = vsel %vm406, %v1689, %v1691
        %v1696 = vadd.f32 %v1620, %v1692
        %v1697 = vadd.f32 %v1621, %v1693
        %s1698 = sadd.s32 %s222, 21
        %s1699 = sld [smem:[#allocation2 + %s1698]]
        %v1700 = vstv %s1699
        %v1701 = vmul.f32 %v1496, %v1700
        %v1702 = vmul.f32 %v1498, %v1700
        %1705 = vrot.lane.b32.xlu0 %v1701, 112
        %v1706 = vpop.permute.xlu0 %1705
        %1707 = vrot.lane.b32.xlu0 %v1702, 112
        %v1708 = vpop.permute.xlu0 %1707
        %v1709 = vrot.slane %v1706, 1
        %v1710 = vrot.slane %v1708, 1
        %v1711 = vsel %vm406, %v1706, %v1709
        %v1712 = vsel %vm406, %v1708, %v1710
        %v1715 = vadd.f32 %v1639, %v1711
        %v1716 = vadd.f32 %v1640, %v1712
        %s1717 = sadd.s32 %s228, 21
        %s1718 = sld [smem:[#allocation2 + %s1717]]
        %v1719 = vstv %s1718
        %v1720 = vmul.f32 %v1496, %v1719
        %v1721 = vmul.f32 %v1498, %v1719
        %1724 = vrot.lane.b32.xlu0 %v1720, 112
        %v1725 = vpop.permute.xlu0 %1724
        %1726 = vrot.lane.b32.xlu0 %v1721, 112
        %v1727 = vpop.permute.xlu0 %1726
        %v1728 = vrot.slane %v1725, 1
        %v1729 = vrot.slane %v1727, 1
        %v1730 = vsel %vm406, %v1725, %v1728
        %v1731 = vsel %vm406, %v1727, %v1729
        %v1734 = vadd.f32 %v1658, %v1730
        %v1735 = vadd.f32 %v1659, %v1731
        %s1736 = sadd.s32 %s234, 21
        %s1737 = sld [smem:[#allocation2 + %s1736]]
        %v1738 = vstv %s1737
        %v1739 = vmul.f32 %v1496, %v1738
        %v1740 = vmul.f32 %v1498, %v1738
        %1743 = vrot.lane.b32.xlu0 %v1739, 112
        %v1744 = vpop.permute.xlu0 %1743
        %1745 = vrot.lane.b32.xlu0 %v1740, 112
        %v1746 = vpop.permute.xlu0 %1745
        %v1747 = vrot.slane %v1744, 1
        %v1748 = vrot.slane %v1746, 1
        %v1749 = vsel %vm406, %v1744, %v1747
        %v1750 = vsel %vm406, %v1746, %v1748
        %v1753 = vadd.f32 %v1677, %v1749
        %v1754 = vadd.f32 %v1678, %v1750
        %s1755 = sadd.s32 %s216, 22
        %s1756 = sld [smem:[#allocation2 + %s1755]]
        %v1757 = vstv %s1756
        %v1758 = vmul.f32 %v1496, %v1757
        %v1759 = vmul.f32 %v1498, %v1757
        %1762 = vrot.lane.b32.xlu0 %v1758, 111
        %v1763 = vpop.permute.xlu0 %1762
        %1764 = vrot.lane.b32.xlu0 %v1759, 111
        %v1765 = vpop.permute.xlu0 %1764
        %v1766 = vrot.slane %v1763, 1
        %v1767 = vrot.slane %v1765, 1
        %v1768 = vsel %vm483, %v1763, %v1766
        %v1769 = vsel %vm483, %v1765, %v1767
        %v1772 = vadd.f32 %v1696, %v1768
        %v1773 = vadd.f32 %v1697, %v1769
        %s1774 = sadd.s32 %s222, 22
        %s1775 = sld [smem:[#allocation2 + %s1774]]
        %v1776 = vstv %s1775
        %v1777 = vmul.f32 %v1496, %v1776
        %v1778 = vmul.f32 %v1498, %v1776
        %1781 = vrot.lane.b32.xlu0 %v1777, 111
        %v1782 = vpop.permute.xlu0 %1781
        %1783 = vrot.lane.b32.xlu0 %v1778, 111
        %v1784 = vpop.permute.xlu0 %1783
        %v1785 = vrot.slane %v1782, 1
        %v1786 = vrot.slane %v1784, 1
        %v1787 = vsel %vm483, %v1782, %v1785
        %v1788 = vsel %vm483, %v1784, %v1786
        %v1791 = vadd.f32 %v1715, %v1787
        %v1792 = vadd.f32 %v1716, %v1788
        %s1793 = sadd.s32 %s228, 22
        %s1794 = sld [smem:[#allocation2 + %s1793]]
        %v1795 = vstv %s1794
        %v1796 = vmul.f32 %v1496, %v1795
        %v1797 = vmul.f32 %v1498, %v1795
        %1800 = vrot.lane.b32.xlu0 %v1796, 111
        %v1801 = vpop.permute.xlu0 %1800
        %1802 = vrot.lane.b32.xlu0 %v1797, 111
        %v1803 = vpop.permute.xlu0 %1802
        %v1804 = vrot.slane %v1801, 1
        %v1805 = vrot.slane %v1803, 1
        %v1806 = vsel %vm483, %v1801, %v1804
        %v1807 = vsel %vm483, %v1803, %v1805
        %v1810 = vadd.f32 %v1734, %v1806
        %v1811 = vadd.f32 %v1735, %v1807
        %s1812 = sadd.s32 %s234, 22
        %s1813 = sld [smem:[#allocation2 + %s1812]]
        %v1814 = vstv %s1813
        %v1815 = vmul.f32 %v1496, %v1814
        %v1816 = vmul.f32 %v1498, %v1814
        %1819 = vrot.lane.b32.xlu0 %v1815, 111
        %v1820 = vpop.permute.xlu0 %1819
        %1821 = vrot.lane.b32.xlu0 %v1816, 111
        %v1822 = vpop.permute.xlu0 %1821
        %v1823 = vrot.slane %v1820, 1
        %v1824 = vrot.slane %v1822, 1
        %v1825 = vsel %vm483, %v1820, %v1823
        %v1826 = vsel %vm483, %v1822, %v1824
        %v1829 = vadd.f32 %v1753, %v1825
        %v1830 = vadd.f32 %v1754, %v1826
        %s1831 = sadd.s32 %s216, 23
        %s1832 = sld [smem:[#allocation2 + %s1831]]
        %v1833 = vstv %s1832
        %v1834 = vmul.f32 %v1496, %v1833
        %v1835 = vmul.f32 %v1498, %v1833
        %1838 = vrot.lane.b32.xlu0 %v1834, 110
        %v1839 = vpop.permute.xlu0 %1838
        %1840 = vrot.lane.b32.xlu0 %v1835, 110
        %v1841 = vpop.permute.xlu0 %1840
        %v1842 = vrot.slane %v1839, 1
        %v1843 = vrot.slane %v1841, 1
        %v1844 = vsel %vm560, %v1839, %v1842
        %v1845 = vsel %vm560, %v1841, %v1843
        %v1848 = vadd.f32 %v1772, %v1844
        %v1849 = vadd.f32 %v1773, %v1845
        %s1850 = sadd.s32 %s222, 23
        %s1851 = sld [smem:[#allocation2 + %s1850]]
        %v1852 = vstv %s1851
        %v1853 = vmul.f32 %v1496, %v1852
        %v1854 = vmul.f32 %v1498, %v1852
        %1857 = vrot.lane.b32.xlu0 %v1853, 110
        %v1858 = vpop.permute.xlu0 %1857
        %1859 = vrot.lane.b32.xlu0 %v1854, 110
        %v1860 = vpop.permute.xlu0 %1859
        %v1861 = vrot.slane %v1858, 1
        %v1862 = vrot.slane %v1860, 1
        %v1863 = vsel %vm560, %v1858, %v1861
        %v1864 = vsel %vm560, %v1860, %v1862
        %v1867 = vadd.f32 %v1791, %v1863
        %v1868 = vadd.f32 %v1792, %v1864
        %s1869 = sadd.s32 %s228, 23
        %s1870 = sld [smem:[#allocation2 + %s1869]]
        %v1871 = vstv %s1870
        %v1872 = vmul.f32 %v1496, %v1871
        %v1873 = vmul.f32 %v1498, %v1871
        %1876 = vrot.lane.b32.xlu0 %v1872, 110
        %v1877 = vpop.permute.xlu0 %1876
        %1878 = vrot.lane.b32.xlu0 %v1873, 110
        %v1879 = vpop.permute.xlu0 %1878
        %v1880 = vrot.slane %v1877, 1
        %v1881 = vrot.slane %v1879, 1
        %v1882 = vsel %vm560, %v1877, %v1880
        %v1883 = vsel %vm560, %v1879, %v1881
        %v1886 = vadd.f32 %v1810, %v1882
        %v1887 = vadd.f32 %v1811, %v1883
        %s1888 = sadd.s32 %s234, 23
        %s1889 = sld [smem:[#allocation2 + %s1888]]
        %v1890 = vstv %s1889
        %v1891 = vmul.f32 %v1496, %v1890
        %v1892 = vmul.f32 %v1498, %v1890
        %1895 = vrot.lane.b32.xlu0 %v1891, 110
        %v1896 = vpop.permute.xlu0 %1895
        %1897 = vrot.lane.b32.xlu0 %v1892, 110
        %v1898 = vpop.permute.xlu0 %1897
        %v1899 = vrot.slane %v1896, 1
        %v1900 = vrot.slane %v1898, 1
        %v1901 = vsel %vm560, %v1896, %v1899
        %v1902 = vsel %vm560, %v1898, %v1900
        %v1905 = vadd.f32 %v1829, %v1901
        %v1906 = vadd.f32 %v1830, %v1902
        %s1907 = sadd.s32 %s216, 24
        %s1908 = sld [smem:[#allocation2 + %s1907]]
        %v1909 = vstv %s1908
        %v1910 = vmul.f32 %v1496, %v1909
        %v1911 = vmul.f32 %v1498, %v1909
        %1914 = vrot.lane.b32.xlu0 %v1910, 96
        %v1915 = vpop.permute.xlu0 %1914
        %1916 = vrot.lane.b32.xlu0 %v1911, 96
        %v1917 = vpop.permute.xlu0 %1916
        %v1918 = vrot.slane %v1915, 1
        %v1919 = vrot.slane %v1917, 1
        %v1920 = vsel %vm637, %v1915, %v1918
        %v1921 = vsel %vm637, %v1917, %v1919
        %v1924 = vadd.f32 %v1848, %v1920
        %v1925 = vadd.f32 %v1849, %v1921
        %s1926 = sadd.s32 %s222, 24
        %s1927 = sld [smem:[#allocation2 + %s1926]]
        %v1928 = vstv %s1927
        %v1929 = vmul.f32 %v1496, %v1928
        %v1930 = vmul.f32 %v1498, %v1928
        %1933 = vrot.lane.b32.xlu0 %v1929, 96
        %v1934 = vpop.permute.xlu0 %1933
        %1935 = vrot.lane.b32.xlu0 %v1930, 96
        %v1936 = vpop.permute.xlu0 %1935
        %v1937 = vrot.slane %v1934, 1
        %v1938 = vrot.slane %v1936, 1
        %v1939 = vsel %vm637, %v1934, %v1937
        %v1940 = vsel %vm637, %v1936, %v1938
        %v1943 = vadd.f32 %v1867, %v1939
        %v1944 = vadd.f32 %v1868, %v1940
        %s1945 = sadd.s32 %s228, 24
        %s1946 = sld [smem:[#allocation2 + %s1945]]
        %v1947 = vstv %s1946
        %v1948 = vmul.f32 %v1496, %v1947
        %v1949 = vmul.f32 %v1498, %v1947
        %1952 = vrot.lane.b32.xlu0 %v1948, 96
        %v1953 = vpop.permute.xlu0 %1952
        %1954 = vrot.lane.b32.xlu0 %v1949, 96
        %v1955 = vpop.permute.xlu0 %1954
        %v1956 = vrot.slane %v1953, 1
        %v1957 = vrot.slane %v1955, 1
        %v1958 = vsel %vm637, %v1953, %v1956
        %v1959 = vsel %vm637, %v1955, %v1957
        %v1962 = vadd.f32 %v1886, %v1958
        %v1963 = vadd.f32 %v1887, %v1959
        %s1964 = sadd.s32 %s234, 24
        %s1965 = sld [smem:[#allocation2 + %s1964]]
        %v1966 = vstv %s1965
        %v1967 = vmul.f32 %v1496, %v1966
        %v1968 = vmul.f32 %v1498, %v1966
        %1971 = vrot.lane.b32.xlu0 %v1967, 96
        %v1972 = vpop.permute.xlu0 %1971
        %1973 = vrot.lane.b32.xlu0 %v1968, 96
        %v1974 = vpop.permute.xlu0 %1973
        %v1975 = vrot.slane %v1972, 1
        %v1976 = vrot.slane %v1974, 1
        %v1977 = vsel %vm637, %v1972, %v1975
        %v1978 = vsel %vm637, %v1974, %v1976
        %v1981 = vadd.f32 %v1905, %v1977
        %v1982 = vadd.f32 %v1906, %v1978
        %s1983 = sadd.s32 %s216, 25
        %s1984 = sld [smem:[#allocation2 + %s1983]]
        %v1985 = vstv %s1984
        %v1986 = vmul.f32 %v1496, %v1985
        %v1987 = vmul.f32 %v1498, %v1985
        %1990 = vrot.lane.b32.xlu0 %v1986, 95
        %v1991 = vpop.permute.xlu0 %1990
        %1992 = vrot.lane.b32.xlu0 %v1987, 95
        %v1993 = vpop.permute.xlu0 %1992
        %v1994 = vrot.slane %v1991, 1
        %v1995 = vrot.slane %v1993, 1
        %v1996 = vsel %vm714, %v1991, %v1994
        %v1997 = vsel %vm714, %v1993, %v1995
        %v2000 = vadd.f32 %v1924, %v1996
        %v2001 = vadd.f32 %v1925, %v1997
        %s2002 = sadd.s32 %s222, 25
        %s2003 = sld [smem:[#allocation2 + %s2002]]
        %v2004 = vstv %s2003
        %v2005 = vmul.f32 %v1496, %v2004
        %v2006 = vmul.f32 %v1498, %v2004
        %2009 = vrot.lane.b32.xlu0 %v2005, 95
        %v2010 = vpop.permute.xlu0 %2009
        %2011 = vrot.lane.b32.xlu0 %v2006, 95
        %v2012 = vpop.permute.xlu0 %2011
        %v2013 = vrot.slane %v2010, 1
        %v2014 = vrot.slane %v2012, 1
        %v2015 = vsel %vm714, %v2010, %v2013
        %v2016 = vsel %vm714, %v2012, %v2014
        %v2019 = vadd.f32 %v1943, %v2015
        %v2020 = vadd.f32 %v1944, %v2016
        %s2021 = sadd.s32 %s228, 25
        %s2022 = sld [smem:[#allocation2 + %s2021]]
        %v2023 = vstv %s2022
        %v2024 = vmul.f32 %v1496, %v2023
        %v2025 = vmul.f32 %v1498, %v2023
        %2028 = vrot.lane.b32.xlu0 %v2024, 95
        %v2029 = vpop.permute.xlu0 %2028
        %2030 = vrot.lane.b32.xlu0 %v2025, 95
        %v2031 = vpop.permute.xlu0 %2030
        %v2032 = vrot.slane %v2029, 1
        %v2033 = vrot.slane %v2031, 1
        %v2034 = vsel %vm714, %v2029, %v2032
        %v2035 = vsel %vm714, %v2031, %v2033
        %v2038 = vadd.f32 %v1962, %v2034
        %v2039 = vadd.f32 %v1963, %v2035
        %s2040 = sadd.s32 %s234, 25
        %s2041 = sld [smem:[#allocation2 + %s2040]]
        %v2042 = vstv %s2041
        %v2043 = vmul.f32 %v1496, %v2042
        %v2044 = vmul.f32 %v1498, %v2042
        %2047 = vrot.lane.b32.xlu0 %v2043, 95
        %v2048 = vpop.permute.xlu0 %2047
        %2049 = vrot.lane.b32.xlu0 %v2044, 95
        %v2050 = vpop.permute.xlu0 %2049
        %v2051 = vrot.slane %v2048, 1
        %v2052 = vrot.slane %v2050, 1
        %v2053 = vsel %vm714, %v2048, %v2051
        %v2054 = vsel %vm714, %v2050, %v2052
        %v2057 = vadd.f32 %v1981, %v2053
        %v2058 = vadd.f32 %v1982, %v2054
        %s2059 = sadd.s32 %s216, 26
        %s2060 = sld [smem:[#allocation2 + %s2059]]
        %v2061 = vstv %s2060
        %v2062 = vmul.f32 %v1496, %v2061
        %v2063 = vmul.f32 %v1498, %v2061
        %2066 = vrot.lane.b32.xlu0 %v2062, 94
        %v2067 = vpop.permute.xlu0 %2066
        %2068 = vrot.lane.b32.xlu0 %v2063, 94
        %v2069 = vpop.permute.xlu0 %2068
        %v2070 = vrot.slane %v2067, 1
        %v2071 = vrot.slane %v2069, 1
        %v2072 = vsel %vm791, %v2067, %v2070
        %v2073 = vsel %vm791, %v2069, %v2071
        %v2076 = vadd.f32 %v2000, %v2072
        %v2077 = vadd.f32 %v2001, %v2073
        %s2078 = sadd.s32 %s222, 26
        %s2079 = sld [smem:[#allocation2 + %s2078]]
        %v2080 = vstv %s2079
        %v2081 = vmul.f32 %v1496, %v2080
        %v2082 = vmul.f32 %v1498, %v2080
        %2085 = vrot.lane.b32.xlu0 %v2081, 94
        %v2086 = vpop.permute.xlu0 %2085
        %2087 = vrot.lane.b32.xlu0 %v2082, 94
        %v2088 = vpop.permute.xlu0 %2087
        %v2089 = vrot.slane %v2086, 1
        %v2090 = vrot.slane %v2088, 1
        %v2091 = vsel %vm791, %v2086, %v2089
        %v2092 = vsel %vm791, %v2088, %v2090
        %v2095 = vadd.f32 %v2019, %v2091
        %v2096 = vadd.f32 %v2020, %v2092
        %s2097 = sadd.s32 %s228, 26
        %s2098 = sld [smem:[#allocation2 + %s2097]]
        %v2099 = vstv %s2098
        %v2100 = vmul.f32 %v1496, %v2099
        %v2101 = vmul.f32 %v1498, %v2099
        %2104 = vrot.lane.b32.xlu0 %v2100, 94
        %v2105 = vpop.permute.xlu0 %2104
        %2106 = vrot.lane.b32.xlu0 %v2101, 94
        %v2107 = vpop.permute.xlu0 %2106
        %v2108 = vrot.slane %v2105, 1
        %v2109 = vrot.slane %v2107, 1
        %v2110 = vsel %vm791, %v2105, %v2108
        %v2111 = vsel %vm791, %v2107, %v2109
        %v2114 = vadd.f32 %v2038, %v2110
        %v2115 = vadd.f32 %v2039, %v2111
        %s2116 = sadd.s32 %s234, 26
        %s2117 = sld [smem:[#allocation2 + %s2116]]
        %v2118 = vstv %s2117
        %v2119 = vmul.f32 %v1496, %v2118
        %v2120 = vmul.f32 %v1498, %v2118
        %2123 = vrot.lane.b32.xlu0 %v2119, 94
        %v2124 = vpop.permute.xlu0 %2123
        %2125 = vrot.lane.b32.xlu0 %v2120, 94
        %v2126 = vpop.permute.xlu0 %2125
        %v2127 = vrot.slane %v2124, 1
        %v2128 = vrot.slane %v2126, 1
        %v2129 = vsel %vm791, %v2124, %v2127
        %v2130 = vsel %vm791, %v2126, %v2128
        %v2133 = vadd.f32 %v2057, %v2129
        %v2134 = vadd.f32 %v2058, %v2130
        %s2135 = scalar_lea.vmem %s209, 3
        %v2136 = vld [vmem:[%s2135] ss:$4 sm:$0x7]
        %s2137 = scalar_lea.vmem %s209, 15
        %v2138 = vld [vmem:[%s2137] ss:$4 sm:$0x7]
        %s2139 = sadd.s32 %s216, 27
        %s2140 = sld [smem:[#allocation2 + %s2139]]
        %v2141 = vstv %s2140
        %v2142 = vmul.f32 %v2136, %v2141
        %v2143 = vmul.f32 %v2138, %v2141
        %v2144 = vadd.f32 %v2076, %v2142
        %v2145 = vadd.f32 %v2077, %v2143
        %s2146 = sadd.s32 %s222, 27
        %s2147 = sld [smem:[#allocation2 + %s2146]]
        %v2148 = vstv %s2147
        %v2149 = vmul.f32 %v2136, %v2148
        %v2150 = vmul.f32 %v2138, %v2148
        %v2151 = vadd.f32 %v2095, %v2149
        %v2152 = vadd.f32 %v2096, %v2150
        %s2153 = sadd.s32 %s228, 27
        %s2154 = sld [smem:[#allocation2 + %s2153]]
        %v2155 = vstv %s2154
        %v2156 = vmul.f32 %v2136, %v2155
        %v2157 = vmul.f32 %v2138, %v2155
        %v2158 = vadd.f32 %v2114, %v2156
        %v2159 = vadd.f32 %v2115, %v2157
        %s2160 = sadd.s32 %s234, 27
        %s2161 = sld [smem:[#allocation2 + %s2160]]
        %v2162 = vstv %s2161
        %v2163 = vmul.f32 %v2136, %v2162
        %v2164 = vmul.f32 %v2138, %v2162
        %v2165 = vadd.f32 %v2133, %v2163
        %v2166 = vadd.f32 %v2134, %v2164
        %s2167 = sadd.s32 %s216, 28
        %s2168 = sld [smem:[#allocation2 + %s2167]]
        %v2169 = vstv %s2168
        %v2170 = vmul.f32 %v2136, %v2169
        %v2171 = vmul.f32 %v2138, %v2169
        %2174 = vrot.lane.b32.xlu0 %v2170, 127
        %v2175 = vpop.permute.xlu0 %2174
        %2176 = vrot.lane.b32.xlu0 %v2171, 127
        %v2177 = vpop.permute.xlu0 %2176
        %v2178 = vrot.slane %v2175, 1
        %v2179 = vrot.slane %v2177, 1
        %v2180 = vsel %vm252, %v2175, %v2178
        %v2181 = vsel %vm252, %v2177, %v2179
        %v2184 = vadd.f32 %v2144, %v2180
        %v2185 = vadd.f32 %v2145, %v2181
        %s2186 = sadd.s32 %s222, 28
        %s2187 = sld [smem:[#allocation2 + %s2186]]
        %v2188 = vstv %s2187
        %v2189 = vmul.f32 %v2136, %v2188
        %v2190 = vmul.f32 %v2138, %v2188
        %2193 = vrot.lane.b32.xlu0 %v2189, 127
        %v2194 = vpop.permute.xlu0 %2193
        %2195 = vrot.lane.b32.xlu0 %v2190, 127
        %v2196 = vpop.permute.xlu0 %2195
        %v2197 = vrot.slane %v2194, 1
        %v2198 = vrot.slane %v2196, 1
        %v2199 = vsel %vm252, %v2194, %v2197
        %v2200 = vsel %vm252, %v2196, %v2198
        %v2203 = vadd.f32 %v2151, %v2199
        %v2204 = vadd.f32 %v2152, %v2200
        %s2205 = sadd.s32 %s228, 28
        %s2206 = sld [smem:[#allocation2 + %s2205]]
        %v2207 = vstv %s2206
        %v2208 = vmul.f32 %v2136, %v2207
        %v2209 = vmul.f32 %v2138, %v2207
        %2212 = vrot.lane.b32.xlu0 %v2208, 127
        %v2213 = vpop.permute.xlu0 %2212
        %2214 = vrot.lane.b32.xlu0 %v2209, 127
        %v2215 = vpop.permute.xlu0 %2214
        %v2216 = vrot.slane %v2213, 1
        %v2217 = vrot.slane %v2215, 1
        %v2218 = vsel %vm252, %v2213, %v2216
        %v2219 = vsel %vm252, %v2215, %v2217
        %v2222 = vadd.f32 %v2158, %v2218
        %v2223 = vadd.f32 %v2159, %v2219
        %s2224 = sadd.s32 %s234, 28
        %s2225 = sld [smem:[#allocation2 + %s2224]]
        %v2226 = vstv %s2225
        %v2227 = vmul.f32 %v2136, %v2226
        %v2228 = vmul.f32 %v2138, %v2226
        %2231 = vrot.lane.b32.xlu0 %v2227, 127
        %v2232 = vpop.permute.xlu0 %2231
        %2233 = vrot.lane.b32.xlu0 %v2228, 127
        %v2234 = vpop.permute.xlu0 %2233
        %v2235 = vrot.slane %v2232, 1
        %v2236 = vrot.slane %v2234, 1
        %v2237 = vsel %vm252, %v2232, %v2235
        %v2238 = vsel %vm252, %v2234, %v2236
        %v2241 = vadd.f32 %v2165, %v2237
        %v2242 = vadd.f32 %v2166, %v2238
        %s2243 = sadd.s32 %s216, 29
        %s2244 = sld [smem:[#allocation2 + %s2243]]
        %v2245 = vstv %s2244
        %v2246 = vmul.f32 %v2136, %v2245
        %v2247 = vmul.f32 %v2138, %v2245
        %2250 = vrot.lane.b32.xlu0 %v2246, 126
        %v2251 = vpop.permute.xlu0 %2250
        %2252 = vrot.lane.b32.xlu0 %v2247, 126
        %v2253 = vpop.permute.xlu0 %2252
        %v2254 = vrot.slane %v2251, 1
        %v2255 = vrot.slane %v2253, 1
        %v2256 = vsel %vm329, %v2251, %v2254
        %v2257 = vsel %vm329, %v2253, %v2255
        %v2260 = vadd.f32 %v2184, %v2256
        %v2261 = vadd.f32 %v2185, %v2257
        %s2262 = sadd.s32 %s222, 29
        %s2263 = sld [smem:[#allocation2 + %s2262]]
        %v2264 = vstv %s2263
        %v2265 = vmul.f32 %v2136, %v2264
        %v2266 = vmul.f32 %v2138, %v2264
        %2269 = vrot.lane.b32.xlu0 %v2265, 126
        %v2270 = vpop.permute.xlu0 %2269
        %2271 = vrot.lane.b32.xlu0 %v2266, 126
        %v2272 = vpop.permute.xlu0 %2271
        %v2273 = vrot.slane %v2270, 1
        %v2274 = vrot.slane %v2272, 1
        %v2275 = vsel %vm329, %v2270, %v2273
        %v2276 = vsel %vm329, %v2272, %v2274
        %v2279 = vadd.f32 %v2203, %v2275
        %v2280 = vadd.f32 %v2204, %v2276
        %s2281 = sadd.s32 %s228, 29
        %s2282 = sld [smem:[#allocation2 + %s2281]]
        %v2283 = vstv %s2282
        %v2284 = vmul.f32 %v2136, %v2283
        %v2285 = vmul.f32 %v2138, %v2283
        %2288 = vrot.lane.b32.xlu0 %v2284, 126
        %v2289 = vpop.permute.xlu0 %2288
        %2290 = vrot.lane.b32.xlu0 %v2285, 126
        %v2291 = vpop.permute.xlu0 %2290
        %v2292 = vrot.slane %v2289, 1
        %v2293 = vrot.slane %v2291, 1
        %v2294 = vsel %vm329, %v2289, %v2292
        %v2295 = vsel %vm329, %v2291, %v2293
        %v2298 = vadd.f32 %v2222, %v2294
        %v2299 = vadd.f32 %v2223, %v2295
        %s2300 = sadd.s32 %s234, 29
        %s2301 = sld [smem:[#allocation2 + %s2300]]
        %v2302 = vstv %s2301
        %v2303 = vmul.f32 %v2136, %v2302
        %v2304 = vmul.f32 %v2138, %v2302
        %2307 = vrot.lane.b32.xlu0 %v2303, 126
        %v2308 = vpop.permute.xlu0 %2307
        %2309 = vrot.lane.b32.xlu0 %v2304, 126
        %v2310 = vpop.permute.xlu0 %2309
        %v2311 = vrot.slane %v2308, 1
        %v2312 = vrot.slane %v2310, 1
        %v2313 = vsel %vm329, %v2308, %v2311
        %v2314 = vsel %vm329, %v2310, %v2312
        %v2317 = vadd.f32 %v2241, %v2313
        %v2318 = vadd.f32 %v2242, %v2314
        %s2319 = sadd.s32 %s216, 30
        %s2320 = sld [smem:[#allocation2 + %s2319]]
        %v2321 = vstv %s2320
        %v2322 = vmul.f32 %v2136, %v2321
        %v2323 = vmul.f32 %v2138, %v2321
        %2326 = vrot.lane.b32.xlu0 %v2322, 112
        %v2327 = vpop.permute.xlu0 %2326
        %2328 = vrot.lane.b32.xlu0 %v2323, 112
        %v2329 = vpop.permute.xlu0 %2328
        %v2330 = vrot.slane %v2327, 1
        %v2331 = vrot.slane %v2329, 1
        %v2332 = vsel %vm406, %v2327, %v2330
        %v2333 = vsel %vm406, %v2329, %v2331
        %v2336 = vadd.f32 %v2260, %v2332
        %v2337 = vadd.f32 %v2261, %v2333
        %s2338 = sadd.s32 %s222, 30
        %s2339 = sld [smem:[#allocation2 + %s2338]]
        %v2340 = vstv %s2339
        %v2341 = vmul.f32 %v2136, %v2340
        %v2342 = vmul.f32 %v2138, %v2340
        %2345 = vrot.lane.b32.xlu0 %v2341, 112
        %v2346 = vpop.permute.xlu0 %2345
        %2347 = vrot.lane.b32.xlu0 %v2342, 112
        %v2348 = vpop.permute.xlu0 %2347
        %v2349 = vrot.slane %v2346, 1
        %v2350 = vrot.slane %v2348, 1
        %v2351 = vsel %vm406, %v2346, %v2349
        %v2352 = vsel %vm406, %v2348, %v2350
        %v2355 = vadd.f32 %v2279, %v2351
        %v2356 = vadd.f32 %v2280, %v2352
        %s2357 = sadd.s32 %s228, 30
        %s2358 = sld [smem:[#allocation2 + %s2357]]
        %v2359 = vstv %s2358
        %v2360 = vmul.f32 %v2136, %v2359
        %v2361 = vmul.f32 %v2138, %v2359
        %2364 = vrot.lane.b32.xlu0 %v2360, 112
        %v2365 = vpop.permute.xlu0 %2364
        %2366 = vrot.lane.b32.xlu0 %v2361, 112
        %v2367 = vpop.permute.xlu0 %2366
        %v2368 = vrot.slane %v2365, 1
        %v2369 = vrot.slane %v2367, 1
        %v2370 = vsel %vm406, %v2365, %v2368
        %v2371 = vsel %vm406, %v2367, %v2369
        %v2374 = vadd.f32 %v2298, %v2370
        %v2375 = vadd.f32 %v2299, %v2371
        %s2376 = sadd.s32 %s234, 30
        %s2377 = sld [smem:[#allocation2 + %s2376]]
        %v2378 = vstv %s2377
        %v2379 = vmul.f32 %v2136, %v2378
        %v2380 = vmul.f32 %v2138, %v2378
        %2383 = vrot.lane.b32.xlu0 %v2379, 112
        %v2384 = vpop.permute.xlu0 %2383
        %2385 = vrot.lane.b32.xlu0 %v2380, 112
        %v2386 = vpop.permute.xlu0 %2385
        %v2387 = vrot.slane %v2384, 1
        %v2388 = vrot.slane %v2386, 1
        %v2389 = vsel %vm406, %v2384, %v2387
        %v2390 = vsel %vm406, %v2386, %v2388
        %v2393 = vadd.f32 %v2317, %v2389
        %v2394 = vadd.f32 %v2318, %v2390
        %s2395 = sadd.s32 %s216, 31
        %s2396 = sld [smem:[#allocation2 + %s2395]]
        %v2397 = vstv %s2396
        %v2398 = vmul.f32 %v2136, %v2397
        %v2399 = vmul.f32 %v2138, %v2397
        %2402 = vrot.lane.b32.xlu0 %v2398, 111
        %v2403 = vpop.permute.xlu0 %2402
        %2404 = vrot.lane.b32.xlu0 %v2399, 111
        %v2405 = vpop.permute.xlu0 %2404
        %v2406 = vrot.slane %v2403, 1
        %v2407 = vrot.slane %v2405, 1
        %v2408 = vsel %vm483, %v2403, %v2406
        %v2409 = vsel %vm483, %v2405, %v2407
        %v2412 = vadd.f32 %v2336, %v2408
        %v2413 = vadd.f32 %v2337, %v2409
        %s2414 = sadd.s32 %s222, 31
        %s2415 = sld [smem:[#allocation2 + %s2414]]
        %v2416 = vstv %s2415
        %v2417 = vmul.f32 %v2136, %v2416
        %v2418 = vmul.f32 %v2138, %v2416
        %2421 = vrot.lane.b32.xlu0 %v2417, 111
        %v2422 = vpop.permute.xlu0 %2421
        %2423 = vrot.lane.b32.xlu0 %v2418, 111
        %v2424 = vpop.permute.xlu0 %2423
        %v2425 = vrot.slane %v2422, 1
        %v2426 = vrot.slane %v2424, 1
        %v2427 = vsel %vm483, %v2422, %v2425
        %v2428 = vsel %vm483, %v2424, %v2426
        %v2431 = vadd.f32 %v2355, %v2427
        %v2432 = vadd.f32 %v2356, %v2428
        %s2433 = sadd.s32 %s228, 31
        %s2434 = sld [smem:[#allocation2 + %s2433]]
        %v2435 = vstv %s2434
        %v2436 = vmul.f32 %v2136, %v2435
        %v2437 = vmul.f32 %v2138, %v2435
        %2440 = vrot.lane.b32.xlu0 %v2436, 111
        %v2441 = vpop.permute.xlu0 %2440
        %2442 = vrot.lane.b32.xlu0 %v2437, 111
        %v2443 = vpop.permute.xlu0 %2442
        %v2444 = vrot.slane %v2441, 1
        %v2445 = vrot.slane %v2443, 1
        %v2446 = vsel %vm483, %v2441, %v2444
        %v2447 = vsel %vm483, %v2443, %v2445
        %v2450 = vadd.f32 %v2374, %v2446
        %v2451 = vadd.f32 %v2375, %v2447
        %s2452 = sadd.s32 %s234, 31
        %s2453 = sld [smem:[#allocation2 + %s2452]]
        %v2454 = vstv %s2453
        %v2455 = vmul.f32 %v2136, %v2454
        %v2456 = vmul.f32 %v2138, %v2454
        %2459 = vrot.lane.b32.xlu0 %v2455, 111
        %v2460 = vpop.permute.xlu0 %2459
        %2461 = vrot.lane.b32.xlu0 %v2456, 111
        %v2462 = vpop.permute.xlu0 %2461
        %v2463 = vrot.slane %v2460, 1
        %v2464 = vrot.slane %v2462, 1
        %v2465 = vsel %vm483, %v2460, %v2463
        %v2466 = vsel %vm483, %v2462, %v2464
        %v2469 = vadd.f32 %v2393, %v2465
        %v2470 = vadd.f32 %v2394, %v2466
        %s2471 = sadd.s32 %s216, 32
        %s2472 = sld [smem:[#allocation2 + %s2471]]
        %v2473 = vstv %s2472
        %v2474 = vmul.f32 %v2136, %v2473
        %v2475 = vmul.f32 %v2138, %v2473
        %2478 = vrot.lane.b32.xlu0 %v2474, 110
        %v2479 = vpop.permute.xlu0 %2478
        %2480 = vrot.lane.b32.xlu0 %v2475, 110
        %v2481 = vpop.permute.xlu0 %2480
        %v2482 = vrot.slane %v2479, 1
        %v2483 = vrot.slane %v2481, 1
        %v2484 = vsel %vm560, %v2479, %v2482
        %v2485 = vsel %vm560, %v2481, %v2483
        %v2488 = vadd.f32 %v2412, %v2484
        %v2489 = vadd.f32 %v2413, %v2485
        %s2490 = sadd.s32 %s222, 32
        %s2491 = sld [smem:[#allocation2 + %s2490]]
        %v2492 = vstv %s2491
        %v2493 = vmul.f32 %v2136, %v2492
        %v2494 = vmul.f32 %v2138, %v2492
        %2497 = vrot.lane.b32.xlu0 %v2493, 110
        %v2498 = vpop.permute.xlu0 %2497
        %2499 = vrot.lane.b32.xlu0 %v2494, 110
        %v2500 = vpop.permute.xlu0 %2499
        %v2501 = vrot.slane %v2498, 1
        %v2502 = vrot.slane %v2500, 1
        %v2503 = vsel %vm560, %v2498, %v2501
        %v2504 = vsel %vm560, %v2500, %v2502
        %v2507 = vadd.f32 %v2431, %v2503
        %v2508 = vadd.f32 %v2432, %v2504
        %s2509 = sadd.s32 %s228, 32
        %s2510 = sld [smem:[#allocation2 + %s2509]]
        %v2511 = vstv %s2510
        %v2512 = vmul.f32 %v2136, %v2511
        %v2513 = vmul.f32 %v2138, %v2511
        %2516 = vrot.lane.b32.xlu0 %v2512, 110
        %v2517 = vpop.permute.xlu0 %2516
        %2518 = vrot.lane.b32.xlu0 %v2513, 110
        %v2519 = vpop.permute.xlu0 %2518
        %v2520 = vrot.slane %v2517, 1
        %v2521 = vrot.slane %v2519, 1
        %v2522 = vsel %vm560, %v2517, %v2520
        %v2523 = vsel %vm560, %v2519, %v2521
        %v2526 = vadd.f32 %v2450, %v2522
        %v2527 = vadd.f32 %v2451, %v2523
        %s2528 = sadd.s32 %s234, 32
        %s2529 = sld [smem:[#allocation2 + %s2528]]
        %v2530 = vstv %s2529
        %v2531 = vmul.f32 %v2136, %v2530
        %v2532 = vmul.f32 %v2138, %v2530
        %2535 = vrot.lane.b32.xlu0 %v2531, 110
        %v2536 = vpop.permute.xlu0 %2535
        %2537 = vrot.lane.b32.xlu0 %v2532, 110
        %v2538 = vpop.permute.xlu0 %2537
        %v2539 = vrot.slane %v2536, 1
        %v2540 = vrot.slane %v2538, 1
        %v2541 = vsel %vm560, %v2536, %v2539
        %v2542 = vsel %vm560, %v2538, %v2540
        %v2545 = vadd.f32 %v2469, %v2541
        %v2546 = vadd.f32 %v2470, %v2542
        %s2547 = sadd.s32 %s216, 33
        %s2548 = sld [smem:[#allocation2 + %s2547]]
        %v2549 = vstv %s2548
        %v2550 = vmul.f32 %v2136, %v2549
        %v2551 = vmul.f32 %v2138, %v2549
        %2554 = vrot.lane.b32.xlu0 %v2550, 96
        %v2555 = vpop.permute.xlu0 %2554
        %2556 = vrot.lane.b32.xlu0 %v2551, 96
        %v2557 = vpop.permute.xlu0 %2556
        %v2558 = vrot.slane %v2555, 1
        %v2559 = vrot.slane %v2557, 1
        %v2560 = vsel %vm637, %v2555, %v2558
        %v2561 = vsel %vm637, %v2557, %v2559
        %v2564 = vadd.f32 %v2488, %v2560
        %v2565 = vadd.f32 %v2489, %v2561
        %s2566 = sadd.s32 %s222, 33
        %s2567 = sld [smem:[#allocation2 + %s2566]]
        %v2568 = vstv %s2567
        %v2569 = vmul.f32 %v2136, %v2568
        %v2570 = vmul.f32 %v2138, %v2568
        %2573 = vrot.lane.b32.xlu0 %v2569, 96
        %v2574 = vpop.permute.xlu0 %2573
        %2575 = vrot.lane.b32.xlu0 %v2570, 96
        %v2576 = vpop.permute.xlu0 %2575
        %v2577 = vrot.slane %v2574, 1
        %v2578 = vrot.slane %v2576, 1
        %v2579 = vsel %vm637, %v2574, %v2577
        %v2580 = vsel %vm637, %v2576, %v2578
        %v2583 = vadd.f32 %v2507, %v2579
        %v2584 = vadd.f32 %v2508, %v2580
        %s2585 = sadd.s32 %s228, 33
        %s2586 = sld [smem:[#allocation2 + %s2585]]
        %v2587 = vstv %s2586
        %v2588 = vmul.f32 %v2136, %v2587
        %v2589 = vmul.f32 %v2138, %v2587
        %2592 = vrot.lane.b32.xlu0 %v2588, 96
        %v2593 = vpop.permute.xlu0 %2592
        %2594 = vrot.lane.b32.xlu0 %v2589, 96
        %v2595 = vpop.permute.xlu0 %2594
        %v2596 = vrot.slane %v2593, 1
        %v2597 = vrot.slane %v2595, 1
        %v2598 = vsel %vm637, %v2593, %v2596
        %v2599 = vsel %vm637, %v2595, %v2597
        %v2602 = vadd.f32 %v2526, %v2598
        %v2603 = vadd.f32 %v2527, %v2599
        %s2604 = sadd.s32 %s234, 33
        %s2605 = sld [smem:[#allocation2 + %s2604]]
        %v2606 = vstv %s2605
        %v2607 = vmul.f32 %v2136, %v2606
        %v2608 = vmul.f32 %v2138, %v2606
        %2611 = vrot.lane.b32.xlu0 %v2607, 96
        %v2612 = vpop.permute.xlu0 %2611
        %2613 = vrot.lane.b32.xlu0 %v2608, 96
        %v2614 = vpop.permute.xlu0 %2613
        %v2615 = vrot.slane %v2612, 1
        %v2616 = vrot.slane %v2614, 1
        %v2617 = vsel %vm637, %v2612, %v2615
        %v2618 = vsel %vm637, %v2614, %v2616
        %v2621 = vadd.f32 %v2545, %v2617
        %v2622 = vadd.f32 %v2546, %v2618
        %s2623 = sadd.s32 %s216, 34
        %s2624 = sld [smem:[#allocation2 + %s2623]]
        %v2625 = vstv %s2624
        %v2626 = vmul.f32 %v2136, %v2625
        %v2627 = vmul.f32 %v2138, %v2625
        %2630 = vrot.lane.b32.xlu0 %v2626, 95
        %v2631 = vpop.permute.xlu0 %2630
        %2632 = vrot.lane.b32.xlu0 %v2627, 95
        %v2633 = vpop.permute.xlu0 %2632
        %v2634 = vrot.slane %v2631, 1
        %v2635 = vrot.slane %v2633, 1
        %v2636 = vsel %vm714, %v2631, %v2634
        %v2637 = vsel %vm714, %v2633, %v2635
        %v2640 = vadd.f32 %v2564, %v2636
        %v2641 = vadd.f32 %v2565, %v2637
        %s2642 = sadd.s32 %s222, 34
        %s2643 = sld [smem:[#allocation2 + %s2642]]
        %v2644 = vstv %s2643
        %v2645 = vmul.f32 %v2136, %v2644
        %v2646 = vmul.f32 %v2138, %v2644
        %2649 = vrot.lane.b32.xlu0 %v2645, 95
        %v2650 = vpop.permute.xlu0 %2649
        %2651 = vrot.lane.b32.xlu0 %v2646, 95
        %v2652 = vpop.permute.xlu0 %2651
        %v2653 = vrot.slane %v2650, 1
        %v2654 = vrot.slane %v2652, 1
        %v2655 = vsel %vm714, %v2650, %v2653
        %v2656 = vsel %vm714, %v2652, %v2654
        %v2659 = vadd.f32 %v2583, %v2655
        %v2660 = vadd.f32 %v2584, %v2656
        %s2661 = sadd.s32 %s228, 34
        %s2662 = sld [smem:[#allocation2 + %s2661]]
        %v2663 = vstv %s2662
        %v2664 = vmul.f32 %v2136, %v2663
        %v2665 = vmul.f32 %v2138, %v2663
        %2668 = vrot.lane.b32.xlu0 %v2664, 95
        %v2669 = vpop.permute.xlu0 %2668
        %2670 = vrot.lane.b32.xlu0 %v2665, 95
        %v2671 = vpop.permute.xlu0 %2670
        %v2672 = vrot.slane %v2669, 1
        %v2673 = vrot.slane %v2671, 1
        %v2674 = vsel %vm714, %v2669, %v2672
        %v2675 = vsel %vm714, %v2671, %v2673
        %v2678 = vadd.f32 %v2602, %v2674
        %v2679 = vadd.f32 %v2603, %v2675
        %s2680 = sadd.s32 %s234, 34
        %s2681 = sld [smem:[#allocation2 + %s2680]]
        %v2682 = vstv %s2681
        %v2683 = vmul.f32 %v2136, %v2682
        %v2684 = vmul.f32 %v2138, %v2682
        %2687 = vrot.lane.b32.xlu0 %v2683, 95
        %v2688 = vpop.permute.xlu0 %2687
        %2689 = vrot.lane.b32.xlu0 %v2684, 95
        %v2690 = vpop.permute.xlu0 %2689
        %v2691 = vrot.slane %v2688, 1
        %v2692 = vrot.slane %v2690, 1
        %v2693 = vsel %vm714, %v2688, %v2691
        %v2694 = vsel %vm714, %v2690, %v2692
        %v2697 = vadd.f32 %v2621, %v2693
        %v2698 = vadd.f32 %v2622, %v2694
        %s2699 = sadd.s32 %s216, 35
        %s2700 = sld [smem:[#allocation2 + %s2699]]
        %v2701 = vstv %s2700
        %v2702 = vmul.f32 %v2136, %v2701
        %v2703 = vmul.f32 %v2138, %v2701
        %2706 = vrot.lane.b32.xlu0 %v2702, 94
        %v2707 = vpop.permute.xlu0 %2706
        %2708 = vrot.lane.b32.xlu0 %v2703, 94
        %v2709 = vpop.permute.xlu0 %2708
        %v2710 = vrot.slane %v2707, 1
        %v2711 = vrot.slane %v2709, 1
        %v2712 = vsel %vm791, %v2707, %v2710
        %v2713 = vsel %vm791, %v2709, %v2711
        %v2716 = vadd.f32 %v2640, %v2712
        %v2717 = vadd.f32 %v2641, %v2713
        %s2718 = sadd.s32 %s222, 35
        %s2719 = sld [smem:[#allocation2 + %s2718]]
        %v2720 = vstv %s2719
        %v2721 = vmul.f32 %v2136, %v2720
        %v2722 = vmul.f32 %v2138, %v2720
        %2725 = vrot.lane.b32.xlu0 %v2721, 94
        %v2726 = vpop.permute.xlu0 %2725
        %2727 = vrot.lane.b32.xlu0 %v2722, 94
        %v2728 = vpop.permute.xlu0 %2727
        %v2729 = vrot.slane %v2726, 1
        %v2730 = vrot.slane %v2728, 1
        %v2731 = vsel %vm791, %v2726, %v2729
        %v2732 = vsel %vm791, %v2728, %v2730
        %v2735 = vadd.f32 %v2659, %v2731
        %v2736 = vadd.f32 %v2660, %v2732
        %s2737 = sadd.s32 %s228, 35
        %s2738 = sld [smem:[#allocation2 + %s2737]]
        %v2739 = vstv %s2738
        %v2740 = vmul.f32 %v2136, %v2739
        %v2741 = vmul.f32 %v2138, %v2739
        %2744 = vrot.lane.b32.xlu0 %v2740, 94
        %v2745 = vpop.permute.xlu0 %2744
        %2746 = vrot.lane.b32.xlu0 %v2741, 94
        %v2747 = vpop.permute.xlu0 %2746
        %v2748 = vrot.slane %v2745, 1
        %v2749 = vrot.slane %v2747, 1
        %v2750 = vsel %vm791, %v2745, %v2748
        %v2751 = vsel %vm791, %v2747, %v2749
        %v2754 = vadd.f32 %v2678, %v2750
        %v2755 = vadd.f32 %v2679, %v2751
        %s2756 = sadd.s32 %s234, 35
        %s2757 = sld [smem:[#allocation2 + %s2756]]
        %v2758 = vstv %s2757
        %v2759 = vmul.f32 %v2136, %v2758
        %v2760 = vmul.f32 %v2138, %v2758
        %2763 = vrot.lane.b32.xlu0 %v2759, 94
        %v2764 = vpop.permute.xlu0 %2763
        %2765 = vrot.lane.b32.xlu0 %v2760, 94
        %v2766 = vpop.permute.xlu0 %2765
        %v2767 = vrot.slane %v2764, 1
        %v2768 = vrot.slane %v2766, 1
        %v2769 = vsel %vm791, %v2764, %v2767
        %v2770 = vsel %vm791, %v2766, %v2768
        %v2773 = vadd.f32 %v2697, %v2769
        %v2774 = vadd.f32 %v2698, %v2770
        %s2775 = sld [smem:[#allocation4 + %s212]]
        %v2776 = vstv %s2775
        %v2777 = vadd.f32 %v2716, %v2776
        %v2778 = vadd.f32 %v2717, %v2776
        %v2779 = vlaneseq
        %vm2780 = vcmp.ge.s32.totalorder %v2779, 0
        %vm2781 = vcmp.lt.s32.totalorder %v2779, 256
        %vm2782 = vmand %vm2780, %vm2781
        %2783 = vst.msk [vmem:[%s203] ss:$4 sm:$0x3] %vm2782, %v2777
        %s2784 = scalar_lea.vmem %s203, 8 [#allocation6]
        %2785 = vst.msk [vmem:[%s2784] ss:$4 sm:$0x3] %vm2782, %v2778
        %s2786 = sld [smem:[#allocation4 + %s221]]
        %v2787 = vstv %s2786
        %v2788 = vadd.f32 %v2735, %v2787
        %v2789 = vadd.f32 %v2736, %v2787
        %s2790 = scalar_lea.vmem %s203, 1 [#allocation6]
        %2791 = vst.msk [vmem:[%s2790] ss:$4 sm:$0x3] %vm2782, %v2788
        %s2792 = scalar_lea.vmem %s203, 9 [#allocation6]
        %2793 = vst.msk [vmem:[%s2792] ss:$4 sm:$0x3] %vm2782, %v2789
        %s2794 = sld [smem:[#allocation4 + %s227]]
        %v2795 = vstv %s2794
        %v2796 = vadd.f32 %v2754, %v2795
        %v2797 = vadd.f32 %v2755, %v2795
        %s2798 = scalar_lea.vmem %s203, 2 [#allocation6]
        %2799 = vst.msk [vmem:[%s2798] ss:$4 sm:$0x3] %vm2782, %v2796
        %s2800 = scalar_lea.vmem %s203, 10 [#allocation6]
        %2801 = vst.msk [vmem:[%s2800] ss:$4 sm:$0x3] %vm2782, %v2797
        %s2802 = sld [smem:[#allocation4 + %s233]]
        %v2803 = vstv %s2802
        %v2804 = vadd.f32 %v2773, %v2803
        %v2805 = vadd.f32 %v2774, %v2803
        %s2806 = scalar_lea.vmem %s203, 3 [#allocation6]
        %2807 = vst.msk [vmem:[%s2806] ss:$4 sm:$0x3] %vm2782, %v2804
        %s2808 = scalar_lea.vmem %s203, 11 [#allocation6]
        %2809 = vst.msk [vmem:[%s2808] ss:$4 sm:$0x3] %vm2782, %v2805
        %s2810 = sand.u32 %s106, 1
        %s2811 = sand.u32 %s106, 1
        %s2812 = smul.addr %s2811, 16
        %s2813 = scalar_lea.vmem [#allocation6], %s2812
        // Predicated region
        $region41: #{randconcat_conv2d_v2_forward.1} parent=31 // pred_check
          %p2814 = pneg %p116
        $region42: #{randconcat_conv2d_v2_forward.1} parent=31 // pred_check_branch
          %2816 = sbr.rel (%p2814) target = $region44
        $region43: #{randconcat_conv2d_v2_forward.1} parent=31 // pred_region
          %s2817 = smul.u32 2, %s20
          %s2818 = smul.addr %s21, 2
          %s2819 = smul.addr %s2817, 4
          %s2820 = sadd.s32 %s2818, %s2819
          %s2821 = smul.addr %s2820, 4
          %s2822 = scalar_lea.vmem %s3, %s2821
          // Predicated region
          $region45: #{randconcat_conv2d_v2_forward.1} parent=43 // pred_check
            _
          $region46: #{randconcat_conv2d_v2_forward.1} parent=43 // pred_check_branch
            %2824 = sbr.rel (0) target = $region48
          $region47: #{randconcat_conv2d_v2_forward.1} parent=43 // pred_region
            // Predicated region
            $region49: #{randconcat_conv2d_v2_forward.1} parent=47 // pred_check
              _
            $region50: #{randconcat_conv2d_v2_forward.1} parent=47 // pred_check_branch
              %2826 = sbr.rel (0) target = $region52
            $region51: #{randconcat_conv2d_v2_forward.1} parent=47 // pred_region
              // Predicated region
              $region64: #{randconcat_conv2d_v2_forward.1} parent=51 // pred_check
                _
              $region65: #{randconcat_conv2d_v2_forward.1} parent=51 // pred_check_branch
                %2843 = sbr.rel (0) target = $region67
              $region66: #{randconcat_conv2d_v2_forward.1} parent=51 // pred_region
                loop: start=0, step=1, limit=1
                $region68: #{randconcat_conv2d_v2_forward.1} parent=66 // loop_pre_header
                  _
                $region69: #{randconcat_conv2d_v2_forward.1} parent=66 // loop_header
                  %s2845 = sphi 0, %s2849
                  %p2846 = scmp.ge.s32.totalorder %s2845, 1
                  %s2850 = sphi %s2813, %s2813
                  %s2851 = sphi %s2822, %s2822
                $region70: #{randconcat_conv2d_v2_forward.1} parent=66 // loop_header_branch
                  %2848 = sbr.rel (%p2846) target = $region74
                $region71: #{randconcat_conv2d_v2_forward.1} parent=66 // loop_body
                  %v2852 = vld [vmem:[%s2850] sm:$0xff]
                  %2853 = vst [vmem:[%s2851] sm:$0xff] %v2852
                  %v2854 = vld [vmem:[%s2850 + $0x8] sm:$0xff]
                  %2855 = vst [vmem:[%s2851 + $0x10] sm:$0xff] %v2854
                $region72: #{randconcat_conv2d_v2_forward.1} parent=66 // loop_footer
                  %s2849 = sadd.s32 1, %s2845
                $region73: #{randconcat_conv2d_v2_forward.1} parent=66 // loop_footer_branch
                  %2844 = sbr.rel target = $region69
                $region74: #{randconcat_conv2d_v2_forward.1} parent=66 // loop_exit
                  _
              $region67: #{randconcat_conv2d_v2_forward.1} parent=51 // pred_fallthru
                _
              // Predicated region
              $region75: #{randconcat_conv2d_v2_forward.1} parent=51 // pred_check
                _
              $region76: #{randconcat_conv2d_v2_forward.1} parent=51 // pred_check_branch
                %2857 = sbr.rel target = $region78
              $region77: #{randconcat_conv2d_v2_forward.1} parent=51 // pred_region
                _
              $region78: #{randconcat_conv2d_v2_forward.1} parent=51 // pred_fallthru
                _
            $region52: #{randconcat_conv2d_v2_forward.1} parent=47 // pred_fallthru
              _
            // Predicated region
            $region53: #{randconcat_conv2d_v2_forward.1} parent=47 // pred_check
              _
            $region54: #{randconcat_conv2d_v2_forward.1} parent=47 // pred_check_branch
              %2828 = sbr.rel target = $region56
            $region55: #{randconcat_conv2d_v2_forward.1} parent=47 // pred_region
              loop: start=0, step=1, limit=1
              $region57: #{randconcat_conv2d_v2_forward.1} parent=55 // loop_pre_header
                _
              $region58: #{randconcat_conv2d_v2_forward.1} parent=55 // loop_header
                %s2831 = sphi 0, %s2835
                %p2832 = scmp.ge.s32.totalorder %s2831, 1
                %s2836 = sphi %s2813, %s2813
                %s2837 = sphi %s2822, %s2822
              $region59: #{randconcat_conv2d_v2_forward.1} parent=55 // loop_header_branch
                %2834 = sbr.rel (%p2832) target = $region63
              $region60: #{randconcat_conv2d_v2_forward.1} parent=55 // loop_body
                %v2838 = vld [vmem:[%s2836] sm:$0xff]
                %2839 = vst [vmem:[%s2837] sm:$0xff] %v2838
                %v2840 = vld [vmem:[%s2836 + $0x8] sm:$0xff]
                %2841 = vst [vmem:[%s2837 + $0x10] sm:$0xff] %v2840
              $region61: #{randconcat_conv2d_v2_forward.1} parent=55 // loop_footer
                %s2835 = sadd.s32 1, %s2831
              $region62: #{randconcat_conv2d_v2_forward.1} parent=55 // loop_footer_branch
                %2830 = sbr.rel target = $region58
              $region63: #{randconcat_conv2d_v2_forward.1} parent=55 // loop_exit
                _
            $region56: #{randconcat_conv2d_v2_forward.1} parent=47 // pred_fallthru
              _
          $region48: #{randconcat_conv2d_v2_forward.1} parent=43 // pred_fallthru
            _
          %2858 = vnop
        $region44: #{randconcat_conv2d_v2_forward.1} parent=31 // pred_fallthru
          _
      $region32: #{randconcat_conv2d_v2_forward.1} parent=5 // pred_fallthru
        _
      %p2859 = scmp.le.s32.totalorder 2, %s11
      // Predicated region
      $region79: #{randconcat_conv2d_v2_forward.1} parent=5 // pred_check
        %p2860 = pneg %p2859
      $region80: #{randconcat_conv2d_v2_forward.1} parent=5 // pred_check_branch
        %2862 = sbr.rel (%p2860) target = $region82
      $region81: #{randconcat_conv2d_v2_forward.1} parent=5 // pred_region
        %s2863 = ssub.s32 %s11, 2
        // Predicated region
        $region83: #{randconcat_conv2d_v2_forward.1} parent=81 // pred_check
          %p2864 = pneg %p122
        $region84: #{randconcat_conv2d_v2_forward.1} parent=81 // pred_check_branch
          %2866 = sbr.rel (%p2864) target = $region86
        $region85: #{randconcat_conv2d_v2_forward.1} parent=81 // pred_region
          %s2867 = sand.u32 %s107, 1
          %s2868 = sand.u32 %s107, 1
          %s2869 = smul.addr %s2868, 16
          %s2870 = scalar_lea.vmem [#allocation6], %s2869
        $region86: #{randconcat_conv2d_v2_forward.1} parent=81 // pred_fallthru
          _
      $region82: #{randconcat_conv2d_v2_forward.1} parent=5 // pred_fallthru
        _
    $region6: #{randconcat_conv2d_v2_forward.1} parent=1 // loop_footer
      %s15 = sadd.s32 1, %s11
    $region7: #{randconcat_conv2d_v2_forward.1} parent=1 // loop_footer_branch
      %10 = sbr.rel target = $region3
    $region8: #{randconcat_conv2d_v2_forward.1} parent=1 // loop_exit
      _
    %2871 = vsyncpa [#allocation3], 1
    %s2872 = scalar_lea.sflag [#allocation3], 1
    %2873 = vsyncpa %s2872, 1
    %2874 = vsyncpa [#allocation5], 1

</llo_original>
